<compile_context>
chip_gen: v6e
topology: v6e:2x2x1
jax: 0.10.0
libtpu: 0.0.40
codegen_flags: <defaults>
</compile_context>

<pallas_src>
import math
import functools

import jax
import jax.numpy as jnp
from jax.experimental import pallas as pl
from jax.experimental.pallas import tpu as pltpu


def _round_up(x, m):
    return ((x + m - 1) // m) * m


# ----------------------------------------------------------------------------
# Pallas kernels
# ----------------------------------------------------------------------------

def _linear_kernel(x_ref, w_ref, b_ref, o_ref, *, activation):
    x = x_ref[...].astype(jnp.bfloat16)
    w = w_ref[...].astype(jnp.bfloat16)
    y = jnp.dot(x, w, preferred_element_type=jnp.float32) + b_ref[...]
    if activation == "relu":
        y = jnp.maximum(y, 0.0)
    o_ref[...] = y


def pallas_linear(x, w, b, activation="none", tile_m=512, vmem_limit_bytes=None):
    """x: [M, K] f32, w: [K, N], b: [N] -> [M, N]. Row-tiled, parallel grid."""
    M, K = x.shape
    N = w.shape[1]
    TM = min(tile_m, _round_up(M, 8))
    Mp = _round_up(M, TM)
    if Mp != M:
        x = jnp.pad(x, ((0, Mp - M), (0, 0)))
    out = pl.pallas_call(
        functools.partial(_linear_kernel, activation=activation),
        out_shape=jax.ShapeDtypeStruct((Mp, N), jnp.float32),
        grid=(Mp // TM,),
        in_specs=[
            pl.BlockSpec((TM, K), lambda i: (i, 0)),
            pl.BlockSpec((K, N), lambda i: (0, 0)),
            pl.BlockSpec((1, N), lambda i: (0, 0)),
        ],
        out_specs=pl.BlockSpec((TM, N), lambda i: (i, 0)),
        compiler_params=pltpu.CompilerParams(
            dimension_semantics=("parallel",),
            vmem_limit_bytes=vmem_limit_bytes),
    )(x, w, b.reshape(1, N))
    return out[:M]


def _embed_proj_kernel(xc_ref, xl_ref, mc_ref, ml_ref,
                       wc_ref, bc_ref, wl_ref, bl_ref, o_ref):
    # embedding = char_mask * char_proj(raw_embed_char) + lex_mask * lex_proj(raw_embed)
    xc = xc_ref[...].astype(jnp.bfloat16)
    xl = xl_ref[...].astype(jnp.bfloat16)
    ec = jnp.dot(xc, wc_ref[...].astype(jnp.bfloat16),
                 preferred_element_type=jnp.float32) + bc_ref[...]
    el = jnp.dot(xl, wl_ref[...].astype(jnp.bfloat16),
                 preferred_element_type=jnp.float32) + bl_ref[...]
    o_ref[...] = ec * mc_ref[...] + el * ml_ref[...]


def pallas_char_lex_proj(xc, xl, mc, ml, wc, bc, wl, bl, tile_m=512):
    M, Dc = xc.shape
    Dl = xl.shape[1]
    H = wc.shape[1]
    TM = min(tile_m, _round_up(M, 8))
    Mp = _round_up(M, TM)
    if Mp != M:
        pad = ((0, Mp - M), (0, 0))
        xc = jnp.pad(xc, pad)
        xl = jnp.pad(xl, pad)
        mc = jnp.pad(mc, pad)
        ml = jnp.pad(ml, pad)
    out = pl.pallas_call(
        _embed_proj_kernel,
        out_shape=jax.ShapeDtypeStruct((Mp, H), jnp.float32),
        grid=(Mp // TM,),
        in_specs=[
            pl.BlockSpec((TM, Dc), lambda i: (i, 0)),
            pl.BlockSpec((TM, Dl), lambda i: (i, 0)),
            pl.BlockSpec((TM, 1), lambda i: (i, 0)),
            pl.BlockSpec((TM, 1), lambda i: (i, 0)),
            pl.BlockSpec((Dc, H), lambda i: (0, 0)),
            pl.BlockSpec((1, H), lambda i: (0, 0)),
            pl.BlockSpec((Dl, H), lambda i: (0, 0)),
            pl.BlockSpec((1, H), lambda i: (0, 0)),
        ],
        out_specs=pl.BlockSpec((TM, H), lambda i: (i, 0)),
        compiler_params=pltpu.CompilerParams(dimension_semantics=("parallel",)),
    )(xc, xl, mc, ml, wc, bc.reshape(1, H), wl, bl.reshape(1, H))
    return out[:M]


def _proj_add_ln_kernel(a_ref, r_ref, w_ref, b_ref, g_ref, bt_ref, o_ref, *, eps):
    # out = LayerNorm(a @ w + b + residual)
    a = a_ref[...].astype(jnp.bfloat16)
    w = w_ref[...].astype(jnp.bfloat16)
    z = jnp.dot(a, w, preferred_element_type=jnp.float32) + b_ref[...] + r_ref[...]
    mu = jnp.mean(z, axis=-1, keepdims=True)
    var = jnp.mean(jnp.square(z - mu), axis=-1, keepdims=True)
    o_ref[...] = (z - mu) * jax.lax.rsqrt(var + eps) * g_ref[...] + bt_ref[...]


def pallas_proj_add_ln(a, res, w, b, g, beta, eps=1e-5, tile_m=512):
    M, K = a.shape
    N = w.shape[1]
    TM = min(tile_m, _round_up(M, 8))
    Mp = _round_up(M, TM)
    if Mp != M:
        a = jnp.pad(a, ((0, Mp - M), (0, 0)))
        res = jnp.pad(res, ((0, Mp - M), (0, 0)))
    out = pl.pallas_call(
        functools.partial(_proj_add_ln_kernel, eps=eps),
        out_shape=jax.ShapeDtypeStruct((Mp, N), jnp.float32),
        grid=(Mp // TM,),
        in_specs=[
            pl.BlockSpec((TM, K), lambda i: (i, 0)),
            pl.BlockSpec((TM, N), lambda i: (i, 0)),
            pl.BlockSpec((K, N), lambda i: (0, 0)),
            pl.BlockSpec((1, N), lambda i: (0, 0)),
            pl.BlockSpec((1, N), lambda i: (0, 0)),
            pl.BlockSpec((1, N), lambda i: (0, 0)),
        ],
        out_specs=pl.BlockSpec((TM, N), lambda i: (i, 0)),
        compiler_params=pltpu.CompilerParams(dimension_semantics=("parallel",)),
    )(a, res, w, b.reshape(1, N), g.reshape(1, N), beta.reshape(1, N))
    return out[:M]


def _ffn_add_ln_kernel(x_ref, w1_ref, b1_ref, w2_ref, b2_ref, g_ref, bt_ref, o_ref, *, eps):
    # out = LayerNorm(relu(x @ w1 + b1) @ w2 + b2 + x); ff intermediate stays on-chip
    x = x_ref[...]
    h = jnp.dot(x.astype(jnp.bfloat16), w1_ref[...].astype(jnp.bfloat16),
                preferred_element_type=jnp.float32) + b1_ref[...]
    h = jnp.maximum(h, 0.0)
    y = jnp.dot(h.astype(jnp.bfloat16), w2_ref[...].astype(jnp.bfloat16),
                preferred_element_type=jnp.float32) + b2_ref[...]
    z = y + x
    mu = jnp.mean(z, axis=-1, keepdims=True)
    var = jnp.mean(jnp.square(z - mu), axis=-1, keepdims=True)
    o_ref[...] = (z - mu) * jax.lax.rsqrt(var + eps) * g_ref[...] + bt_ref[...]


def pallas_ffn_add_ln(x, w1, b1, w2, b2, g, beta, eps=1e-5, tile_m=512):
    M, H = x.shape
    F = w1.shape[1]
    TM = min(tile_m, _round_up(M, 8))
    Mp = _round_up(M, TM)
    if Mp != M:
        x = jnp.pad(x, ((0, Mp - M), (0, 0)))
    out = pl.pallas_call(
        functools.partial(_ffn_add_ln_kernel, eps=eps),
        out_shape=jax.ShapeDtypeStruct((Mp, H), jnp.float32),
        grid=(Mp // TM,),
        in_specs=[
            pl.BlockSpec((TM, H), lambda i: (i, 0)),
            pl.BlockSpec((H, F), lambda i: (0, 0)),
            pl.BlockSpec((1, F), lambda i: (0, 0)),
            pl.BlockSpec((F, H), lambda i: (0, 0)),
            pl.BlockSpec((1, H), lambda i: (0, 0)),
            pl.BlockSpec((1, H), lambda i: (0, 0)),
            pl.BlockSpec((1, H), lambda i: (0, 0)),
        ],
        out_specs=pl.BlockSpec((TM, H), lambda i: (i, 0)),
        compiler_params=pltpu.CompilerParams(dimension_semantics=("parallel",)),
    )(x, w1, b1.reshape(1, F), w2, b2.reshape(1, H), g.reshape(1, H), beta.reshape(1, H))
    return out[:M]


def _rel_attn_kernel(qu_ref, qv_ref, k_ref, v_ref, rel_ref, mask_ref, o_ref, *, nH, d):
    # One batch element per grid step; all heads processed here.
    # qu/qv already contain the u/v offsets and the 1/sqrt(d) scale (fused in QKV linear).
    qu = qu_ref[0]          # [L, H]
    qv = qv_ref[0]          # [L, H]
    k = k_ref[0]            # [L, H]
    v = v_ref[0]            # [L, H]
    rel = rel_ref[0]        # [L, L, H]   (H on lane axis)
    maskb = mask_ref[0]     # [1, L]      additive key mask (0 / -1e30), applied post-scale
    outs = []
    for h in range(nH):
        sl = slice(h * d, (h + 1) * d)
        q_u_h = qu[:, sl]
        q_v_h = qv[:, sl]
        k_h = k[:, sl]
        v_h = v[:, sl]
        rel_h = rel[:, :, sl]                                           # [L, L, d]
        ac = jnp.dot(q_u_h.astype(jnp.bfloat16), k_h.astype(jnp.bfloat16).T,
                     preferred_element_type=jnp.float32)                # [L, L]
        bd = jnp.sum(rel_h * q_v_h[:, None, :], axis=-1)                # [L, L]
        s = ac + bd + maskb
        s = s - jnp.max(s, axis=-1, keepdims=True)
        p = jnp.exp(s)
        l = jnp.sum(p, axis=-1, keepdims=True)
        o_h = jnp.dot(p.astype(jnp.bfloat16), v_h.astype(jnp.bfloat16),
                      preferred_element_type=jnp.float32)               # [L, d]
        outs.append(o_h * pl.reciprocal(l, approx=True))
    o_ref[0] = jnp.concatenate(outs, axis=-1)                           # single lane-dense store


def pallas_rel_attention(qu, qv, k, v, rel, mask_add, nH, d):
    B, L, H = qu.shape
    return pl.pallas_call(
        functools.partial(_rel_attn_kernel, nH=nH, d=d),
        out_shape=jax.ShapeDtypeStruct((B, L, H), jnp.float32),
        grid=(B,),
        in_specs=[
            pl.BlockSpec((1, L, H), lambda b: (b, 0, 0)),
            pl.BlockSpec((1, L, H), lambda b: (b, 0, 0)),
            pl.BlockSpec((1, L, H), lambda b: (b, 0, 0)),
            pl.BlockSpec((1, L, H), lambda b: (b, 0, 0)),
            pl.BlockSpec((1, L, L, H), lambda b: (b, 0, 0, 0)),
            pl.BlockSpec((1, 1, L), lambda b: (b, 0, 0)),
        ],
        out_specs=pl.BlockSpec((1, L, H), lambda b: (b, 0, 0)),
        compiler_params=pltpu.CompilerParams(dimension_semantics=("parallel",)),
    )(qu, qv, k, v, rel, mask_add)


# ----------------------------------------------------------------------------
# Plain-JAX glue (embedding gathers, pos tables, CRF decode, parameter init)
# ----------------------------------------------------------------------------

def seq_len_to_mask(seq_len, max_len):
    return jnp.arange(max_len)[None, :] < seq_len[:, None]


def get_pos_embedding(max_seq_len, dim):
    # sinusoidal table over relative positions [-max_seq_len, max_seq_len]
    pos = jnp.arange(-max_seq_len, max_seq_len + 1, dtype=jnp.float32)
    half = dim // 2
    inv = jnp.exp(jnp.arange(half, dtype=jnp.float32) * -(math.log(10000.0) / max(half - 1, 1)))
    ang = pos[:, None] * inv[None, :]
    return jnp.concatenate([jnp.sin(ang), jnp.cos(ang)], axis=-1)  # [2*max+1, dim]


def crf_viterbi_decode(logits, mask, trans, start_scores, end_scores):
    # TODO(synk): CRF viterbi is a sequential, data-dependent DP with backtracking;
    #             kept in lax.scan rather than a Pallas kernel.
    B, S, T = logits.shape
    maskf = mask
    vscore = logits[:, 0] + start_scores[None, :]

    def step(vprev, x):
        emit, m = x
        scores = vprev[:, :, None] + trans[None, :, :] + emit[:, None, :]
        best_prev = jnp.argmax(scores, axis=1)
        best_score = jnp.max(scores, axis=1)
        m_ = m[:, None]
        new_v = jnp.where(m_, best_score, vprev)
        bp = jnp.where(m_, best_prev,
                       jnp.broadcast_to(jnp.arange(T, dtype=best_prev.dtype)[None, :], (B, T)))
        return new_v, bp

    xs = (jnp.moveaxis(logits[:, 1:], 1, 0), jnp.moveaxis(maskf[:, 1:], 1, 0))
    vscore, backptrs = jax.lax.scan(step, vscore, xs)
    vscore = vscore + end_scores[None, :]
    last_tag = jnp.argmax(vscore, axis=-1)

    def back_step(tag, bp):
        prev = jnp.take_along_axis(bp, tag[:, None], axis=1)[:, 0]
        return prev, tag

    first_tag, tags_rest = jax.lax.scan(back_step, last_tag, backptrs, reverse=True)
    path = jnp.concatenate([first_tag[:, None], jnp.moveaxis(tags_rest, 0, 1)], axis=1)
    return jnp.where(maskf, path, 0)


def init_params(key, hp):
    H, nH = hp["hidden"], hp["num_heads"]
    d = H // nH
    Dl, Db = hp["lattice_dim"], hp["bigram_dim"]
    T = hp["label_size"]
    ff = hp["ff_size"]
    ki = iter(jax.random.split(key, 128))

    def nrm(shape, scale=0.02):
        return jax.random.normal(next(ki), shape, dtype=jnp.float32) * scale

    def dense(fan_in, shape):
        return nrm(shape, 1.0 / math.sqrt(fan_in))

    params = {
        "lattice_embed": nrm((hp["lattice_num"], Dl), 0.1),
        "bigram_embed": nrm((hp["bigram_num"], Db), 0.1),
        "char_proj_w": dense(Dl + Db, (Dl + Db, H)),
        "char_proj_b": jnp.zeros((H,), jnp.float32),
        "lex_proj_w": dense(Dl, (Dl, H)),
        "lex_proj_b": jnp.zeros((H,), jnp.float32),
        "pe_ss": get_pos_embedding(hp["pe_max"], H),
        "pe_se": get_pos_embedding(hp["pe_max"], H),
        "pe_es": get_pos_embedding(hp["pe_max"], H),
        "pe_ee": get_pos_embedding(hp["pe_max"], H),
        "pos_fusion_w": dense(4 * H, (4 * H, H)),
        "pos_fusion_b": jnp.zeros((H,), jnp.float32),
        "out_w": dense(H, (H, T)),
        "out_b": jnp.zeros((T,), jnp.float32),
        "crf_trans": nrm((T, T), 0.1),
        "crf_start": nrm((T,), 0.1),
        "crf_end": nrm((T,), 0.1),
    }
    layers = []
    for _ in range(hp["num_layers"]):
        layers.append({
            "wq": dense(H, (H, H)), "bq": jnp.zeros((H,), jnp.float32),
            "wk": dense(H, (H, H)), "bk": jnp.zeros((H,), jnp.float32),
            "wv": dense(H, (H, H)), "bv": jnp.zeros((H,), jnp.float32),
            "wo": dense(H, (H, H)), "bo": jnp.zeros((H,), jnp.float32),
            "u": nrm((nH, d), 0.02), "v": nrm((nH, d), 0.02),
            "ln1_g": jnp.ones((H,), jnp.float32), "ln1_b": jnp.zeros((H,), jnp.float32),
            "ln2_g": jnp.ones((H,), jnp.float32), "ln2_b": jnp.zeros((H,), jnp.float32),
            "ff_w1": dense(H, (H, ff)), "ff_b1": jnp.zeros((ff,), jnp.float32),
            "ff_w2": dense(ff, (ff, H)), "ff_b2": jnp.zeros((H,), jnp.float32),
        })
    params["layers"] = layers
    return params


# ----------------------------------------------------------------------------
# Forward pass (eval mode)
# ----------------------------------------------------------------------------

def forward(params, hp, lattice, bigrams, seq_len, lex_num, pos_s, pos_e, target=None):
    B, L = lattice.shape           # L = max_seq_len_and_lex_num
    S = bigrams.shape[1]           # S = max_seq_len (char positions)
    H, nH = hp["hidden"], hp["num_heads"]
    d = H // nH
    T = hp["label_size"]
    PE_MAX = hp["pe_max"]

    # --- embeddings (gathers = glue) ---
    raw_embed = jnp.take(params["lattice_embed"], lattice, axis=0)      # [B, L, Dl]
    big_embed = jnp.take(params["bigram_embed"], bigrams, axis=0)       # [B, S, Db]
    big_embed = jnp.concatenate(
        [big_embed, jnp.zeros((B, L - S, big_embed.shape[-1]), jnp.float32)], axis=1)
    raw_embed_char = jnp.concatenate([raw_embed, big_embed], axis=-1)   # [B, L, Dl+Db]
    # embed_dropout / gaz_dropout are identity in eval mode

    char_mask = seq_len_to_mask(seq_len, L)                             # [B, L]
    lex_mask = jnp.logical_xor(seq_len_to_mask(seq_len + lex_num, L), char_mask)

    Dc = raw_embed_char.shape[-1]
    Dl = raw_embed.shape[-1]
    embedding = pallas_char_lex_proj(
        raw_embed_char.reshape(B * L, Dc),
        raw_embed.reshape(B * L, Dl),
        char_mask.reshape(B * L, 1).astype(jnp.float32),
        lex_mask.reshape(B * L, 1).astype(jnp.float32),
        params["char_proj_w"], params["char_proj_b"],
        params["lex_proj_w"], params["lex_proj_b"],
    ).reshape(B, L, H)

    # --- FLAT four-position relative fusion (computed once, shared across layers) ---
    # TODO(synk): the four PE-table gathers could themselves be fused into the tiled
    #             pos-fusion kernel via scalar prefetch; kept as XLA glue here.
    def rel_idx(a, b_):
        return jnp.clip(a[:, :, None] - b_[:, None, :] + PE_MAX, 0, 2 * PE_MAX)

    pe4 = jnp.concatenate([
        jnp.take(params["pe_ss"], rel_idx(pos_s, pos_s), axis=0),
        jnp.take(params["pe_se"], rel_idx(pos_s, pos_e), axis=0),
        jnp.take(params["pe_es"], rel_idx(pos_e, pos_s), axis=0),
        jnp.take(params["pe_ee"], rel_idx(pos_e, pos_e), axis=0),
    ], axis=-1)                                                          # [B, L, L, 4H]
    rel = pallas_linear(pe4.reshape(B * L * L, 4 * H),
                        params["pos_fusion_w"], params["pos_fusion_b"],
                        activation="relu",
                        vmem_limit_bytes=48 * 1024 * 1024).reshape(B, L, L, H)
    # rel keeps H on the lane axis; no per-head transpose, consumed inside attention kernel.

    key_mask = seq_len_to_mask(seq_len + lex_num, L)                     # [B, L]
    mask_add = jnp.where(key_mask, 0.0, -1e30).astype(jnp.float32)[:, None, :]  # [B,1,L]

    # --- Transformer_Encoder (FLAT-style, layer_postprocess_sequence='an') ---
    # TODO(synk): Transformer_Encoder internals are not in the provided source;
    #             reconstructed as FLAT relative attention + FFN + add&norm.
    inv_sqrt_d = 1.0 / math.sqrt(d)
    x = embedding
    for lp in params["layers"]:
        xf = x.reshape(B * L, H)
        u_flat = lp["u"].reshape(H)
        v_flat = lp["v"].reshape(H)
        # fused QKV: columns = [qu | qv | k | v]; u/v offsets and 1/sqrt(d) folded in.
        w4 = jnp.concatenate(
            [lp["wq"] * inv_sqrt_d, lp["wq"] * inv_sqrt_d, lp["wk"], lp["wv"]], axis=1)
        b4 = jnp.concatenate(
            [(lp["bq"] + u_flat) * inv_sqrt_d, (lp["bq"] + v_flat) * inv_sqrt_d,
             lp["bk"], lp["bv"]], axis=0)
        quvkv = pallas_linear(xf, w4, b4).reshape(B, L, 4 * H)           # lane-dense 4H output
        qu = quvkv[..., 0 * H:1 * H]
        qv = quvkv[..., 1 * H:2 * H]
        k = quvkv[..., 2 * H:3 * H]
        v = quvkv[..., 3 * H:4 * H]

        attn = pallas_rel_attention(qu, qv, k, v, rel, mask_add, nH, d)  # [B, L, H]

        # wo-proj + residual + LayerNorm1 (one kernel)
        x1 = pallas_proj_add_ln(attn.reshape(B * L, H), xf,
                                lp["wo"], lp["bo"], lp["ln1_g"], lp["ln1_b"])
        # FFN + residual + LayerNorm2 (one kernel; ff intermediate stays in VMEM)
        x = pallas_ffn_add_ln(x1, lp["ff_w1"], lp["ff_b1"], lp["ff_w2"], lp["ff_b2"],
                              lp["ln2_g"], lp["ln2_b"]).reshape(B, L, H)

    # output_dropout is identity in eval mode
    encoded = x[:, :S, :]                                                # [B, S, H]

    # lane-dense output projection: pad T=5 up to 128, slice back in the wrapper
    T_pad = _round_up(max(T, 128), 128)
    out_w_p = jnp.pad(params["out_w"], ((0, 0), (0, T_pad - T)))
    out_b_p = jnp.pad(params["out_b"], (0, T_pad - T))
    pred = pallas_linear(encoded.reshape(B * S, H), out_w_p, out_b_p)[:, :T].reshape(B, S, T)

    mask = seq_len_to_mask(seq_len, S)
    path = crf_viterbi_decode(pred, mask, params["crf_trans"],
                              params["crf_start"], params["crf_end"])
    return {"pred": path}


# ----------------------------------------------------------------------------
# Main
# ----------------------------------------------------------------------------

if __name__ == "__main__":
    hp = dict(lattice_num=50, lattice_dim=32, bigram_num=60, bigram_dim=32,
              hidden=32, label_size=5, num_heads=4, num_layers=2,
              ff_size=64, pe_max=16)

    key = jax.random.PRNGKey(0)
    pkey, dkey = jax.random.split(key)
    params = init_params(pkey, hp)

    B, S, L = 2, 8, 12     # batch, max_seq_len (chars), max_seq_len_and_lex_num
    k1, k2, k3, k4 = jax.random.split(dkey, 4)
    lattice = jax.random.randint(k1, (B, L), 1, hp["lattice_num"], dtype=jnp.int32)
    bigrams = jax.random.randint(k2, (B, S), 1, hp["bigram_num"], dtype=jnp.int32)
    seq_len = jnp.array([8, 6], dtype=jnp.int32)
    lex_num = jnp.array([4, 3], dtype=jnp.int32)      # so max(seq_len+lex_num)=L
    pos_s = jax.random.randint(k3, (B, L), 0, S, dtype=jnp.int32)
    pos_e = jnp.minimum(pos_s + jax.random.randint(k4, (B, L), 0, 3, dtype=jnp.int32), S - 1)

    fwd = jax.jit(lambda p, *args: forward(p, hp, *args))
    out = fwd(params, lattice, bigrams, seq_len, lex_num, pos_s, pos_e)
    path = jax.block_until_ready(out["pred"])
    assert path.shape == (B, S)
    print("KERNEL_OK")
</pallas_src>

<mosaic_0001>
module attributes {stable_mosaic.version = 11 : i64} {
  func.func @_linear_kernel(%arg0: i32, %arg1: memref<288x128xf32, #tpu.memory_space<vmem>>, %arg2: memref<128x32xf32, #tpu.memory_space<vmem>>, %arg3: memref<1x32xf32, #tpu.memory_space<vmem>>, %arg4: memref<288x32xf32, #tpu.memory_space<vmem>>) attributes {dimension_semantics = [#tpu.dimension_semantics<parallel>], iteration_bounds = array<i64: 1>, scalar_prefetch = 0 : i64, scratch_operands = 0 : i64, tpu.core_type = #tpu.core_type<tc>, window_params = [{transform_indices = @transform_0, window_bounds = array<i64: 288, 128>}, {pipeline_mode = #tpu.pipeline_mode<synchronous>, transform_indices = @transform_1, window_bounds = array<i64: 128, 32>}, {pipeline_mode = #tpu.pipeline_mode<synchronous>, transform_indices = @transform_2, window_bounds = array<i64: 1, 32>}, {transform_indices = @transform_3, window_bounds = array<i64: 288, 32>}]} {
    %c0 = arith.constant 0 : index
    %c0_0 = arith.constant 0 : index
    %0 = vector.load %arg1[%c0, %c0_0] : memref<288x128xf32, #tpu.memory_space<vmem>>, vector<288x128xf32>
    %1 = arith.truncf %0 : vector<288x128xf32> to vector<288x128xbf16>
    %c0_1 = arith.constant 0 : index
    %c0_2 = arith.constant 0 : index
    %2 = vector.load %arg2[%c0_1, %c0_2] : memref<128x32xf32, #tpu.memory_space<vmem>>, vector<128x32xf32>
    %3 = arith.truncf %2 : vector<128x32xf32> to vector<128x32xbf16>
    %cst = arith.constant dense<0.000000e+00> : vector<288x32xf32>
    %4 = tpu.matmul %1, %3, %cst {dimension_numbers = #tpu.dot_dimension_numbers<[1], [0], [0], [1], [0, 0, 1, 1], [], []>} : vector<288x128xbf16>, vector<128x32xbf16>, vector<288x32xf32> -> vector<288x32xf32>
    %c0_3 = arith.constant 0 : index
    %c0_4 = arith.constant 0 : index
    %5 = vector.load %arg3[%c0_3, %c0_4] : memref<1x32xf32, #tpu.memory_space<vmem>>, vector<1x32xf32>
    %6 = vector.broadcast %5 : vector<1x32xf32> to vector<288x32xf32>
    %7 = arith.addf %4, %6 : vector<288x32xf32>
    %cst_5 = arith.constant 0.000000e+00 : f32
    %8 = vector.broadcast %cst_5 : f32 to vector<288x32xf32>
    %9 = arith.maximumf %7, %8 : vector<288x32xf32>
    %c0_6 = arith.constant 0 : index
    %c0_7 = arith.constant 0 : index
    %10 = vector.load %arg4[%c0_6, %c0_7] : memref<288x32xf32, #tpu.memory_space<vmem>>, vector<288x32xf32>
    tpu.vector_store %arg4[%c0_6, %c0_7], %9 {strides = array<i32>} : memref<288x32xf32, #tpu.memory_space<vmem>>, vector<288x32xf32>,
    return
  }
  func.func @transform_0(%arg0: i32) -> (i32, i32) {
    %c0_i32 = arith.constant 0 : i32
    %c0_i32_0 = arith.constant 0 : i32
    return %arg0, %c0_i32 : i32, i32
  }
  func.func @transform_1(%arg0: i32) -> (i32, i32) {
    %c0_i32 = arith.constant 0 : i32
    %c0_i32_0 = arith.constant 0 : i32
    %c0_i32_1 = arith.constant 0 : i32
    return %c0_i32, %c0_i32_0 : i32, i32
  }
  func.func @transform_2(%arg0: i32) -> (i32, i32) {
    %c0_i32 = arith.constant 0 : i32
    %c0_i32_0 = arith.constant 0 : i32
    %c0_i32_1 = arith.constant 0 : i32
    return %c0_i32, %c0_i32_0 : i32, i32
  }
  func.func @transform_3(%arg0: i32) -> (i32, i32) {
    %c0_i32 = arith.constant 0 : i32
    %c0_i32_0 = arith.constant 0 : i32
    return %arg0, %c0_i32 : i32, i32
  }
}

module attributes {stable_mosaic.version = 11 : i64} {
  func.func @_embed_proj_kernel(%arg0: i32, %arg1: memref<24x64xf32, #tpu.memory_space<vmem>>, %arg2: memref<24x32xf32, #tpu.memory_space<vmem>>, %arg3: memref<24x1xf32, #tpu.memory_space<vmem>>, %arg4: memref<24x1xf32, #tpu.memory_space<vmem>>, %arg5: memref<64x32xf32, #tpu.memory_space<vmem>>, %arg6: memref<1x32xf32, #tpu.memory_space<vmem>>, %arg7: memref<32x32xf32, #tpu.memory_space<vmem>>, %arg8: memref<1x32xf32, #tpu.memory_space<vmem>>, %arg9: memref<24x32xf32, #tpu.memory_space<vmem>>) attributes {dimension_semantics = [#tpu.dimension_semantics<parallel>], iteration_bounds = array<i64: 1>, scalar_prefetch = 0 : i64, scratch_operands = 0 : i64, tpu.core_type = #tpu.core_type<tc>, window_params = [{transform_indices = @transform_0, window_bounds = array<i64: 24, 64>}, {transform_indices = @transform_1, window_bounds = array<i64: 24, 32>}, {transform_indices = @transform_2, window_bounds = array<i64: 24, 1>}, {transform_indices = @transform_3, window_bounds = array<i64: 24, 1>}, {pipeline_mode = #tpu.pipeline_mode<synchronous>, transform_indices = @transform_4, window_bounds = array<i64: 64, 32>}, {pipeline_mode = #tpu.pipeline_mode<synchronous>, transform_indices = @transform_5, window_bounds = array<i64: 1, 32>}, {pipeline_mode = #tpu.pipeline_mode<synchronous>, transform_indices = @transform_6, window_bounds = array<i64: 32, 32>}, {pipeline_mode = #tpu.pipeline_mode<synchronous>, transform_indices = @transform_7, window_bounds = array<i64: 1, 32>}, {transform_indices = @transform_8, window_bounds = array<i64: 24, 32>}]} {
    %c0 = arith.constant 0 : index
    %c0_0 = arith.constant 0 : index
    %0 = vector.load %arg1[%c0, %c0_0] : memref<24x64xf32, #tpu.memory_space<vmem>>, vector<24x64xf32>
    %1 = arith.truncf %0 : vector<24x64xf32> to vector<24x64xbf16>
    %c0_1 = arith.constant 0 : index
    %c0_2 = arith.constant 0 : index
    %2 = vector.load %arg2[%c0_1, %c0_2] : memref<24x32xf32, #tpu.memory_space<vmem>>, vector<24x32xf32>
    %3 = arith.truncf %2 : vector<24x32xf32> to vector<24x32xbf16>
    %c0_3 = arith.constant 0 : index
    %c0_4 = arith.constant 0 : index
    %4 = vector.load %arg5[%c0_3, %c0_4] : memref<64x32xf32, #tpu.memory_space<vmem>>, vector<64x32xf32>
    %5 = arith.truncf %4 : vector<64x32xf32> to vector<64x32xbf16>
    %cst = arith.constant dense<0.000000e+00> : vector<24x32xf32>
    %6 = tpu.matmul %1, %5, %cst {dimension_numbers = #tpu.dot_dimension_numbers<[1], [0], [0], [1], [0, 0, 1, 1], [], []>} : vector<24x64xbf16>, vector<64x32xbf16>, vector<24x32xf32> -> vector<24x32xf32>
    %c0_5 = arith.constant 0 : index
    %c0_6 = arith.constant 0 : index
    %7 = vector.load %arg6[%c0_5, %c0_6] : memref<1x32xf32, #tpu.memory_space<vmem>>, vector<1x32xf32>
    %8 = vector.broadcast %7 : vector<1x32xf32> to vector<24x32xf32>
    %9 = arith.addf %6, %8 : vector<24x32xf32>
    %c0_7 = arith.constant 0 : index
    %c0_8 = arith.constant 0 : index
    %10 = vector.load %arg7[%c0_7, %c0_8] : memref<32x32xf32, #tpu.memory_space<vmem>>, vector<32x32xf32>
    %11 = arith.truncf %10 : vector<32x32xf32> to vector<32x32xbf16>
    %cst_9 = arith.constant dense<0.000000e+00> : vector<24x32xf32>
    %12 = tpu.matmul %3, %11, %cst_9 {dimension_numbers = #tpu.dot_dimension_numbers<[1], [0], [0], [1], [0, 0, 1, 1], [], []>} : vector<24x32xbf16>, vector<32x32xbf16>, vector<24x32xf32> -> vector<24x32xf32>
    %c0_10 = arith.constant 0 : index
    %c0_11 = arith.constant 0 : index
    %13 = vector.load %arg8[%c0_10, %c0_11] : memref<1x32xf32, #tpu.memory_space<vmem>>, vector<1x32xf32>
    %14 = vector.broadcast %13 : vector<1x32xf32> to vector<24x32xf32>
    %15 = arith.addf %12, %14 : vector<24x32xf32>
    %c0_12 = arith.constant 0 : index
    %c0_13 = arith.constant 0 : index
    %16 = vector.load %arg3[%c0_12, %c0_13] : memref<24x1xf32, #tpu.memory_space<vmem>>, vector<24x1xf32>
    %17 = vector.broadcast %16 : vector<24x1xf32> to vector<24x32xf32>
    %18 = arith.mulf %9, %17 : vector<24x32xf32>
    %c0_14 = arith.constant 0 : index
    %c0_15 = arith.constant 0 : index
    %19 = vector.load %arg4[%c0_14, %c0_15] : memref<24x1xf32, #tpu.memory_space<vmem>>, vector<24x1xf32>
    %20 = vector.broadcast %19 : vector<24x1xf32> to vector<24x32xf32>
    %21 = arith.mulf %15, %20 : vector<24x32xf32>
    %22 = arith.addf %18, %21 : vector<24x32xf32>
    %c0_16 = arith.constant 0 : index
    %c0_17 = arith.constant 0 : index
    %23 = vector.load %arg9[%c0_16, %c0_17] : memref<24x32xf32, #tpu.memory_space<vmem>>, vector<24x32xf32>
    tpu.vector_store %arg9[%c0_16, %c0_17], %22 {strides = array<i32>} : memref<24x32xf32, #tpu.memory_space<vmem>>, vector<24x32xf32>,
    return
  }
  func.func @transform_0(%arg0: i32) -> (i32, i32) {
    %c0_i32 = arith.constant 0 : i32
    %c0_i32_0 = arith.constant 0 : i32
    return %arg0, %c0_i32 : i32, i32
  }
  func.func @transform_1(%arg0: i32) -> (i32, i32) {
    %c0_i32 = arith.constant 0 : i32
    %c0_i32_0 = arith.constant 0 : i32
    return %arg0, %c0_i32 : i32, i32
  }
  func.func @transform_2(%arg0: i32) -> (i32, i32) {
    %c0_i32 = arith.constant 0 : i32
    %c0_i32_0 = arith.constant 0 : i32
    return %arg0, %c0_i32 : i32, i32
  }
  func.func @transform_3(%arg0: i32) -> (i32, i32) {
    %c0_i32 = arith.constant 0 : i32
    %c0_i32_0 = arith.constant 0 : i32
    return %arg0, %c0_i32 : i32, i32
  }
  func.func @transform_4(%arg0: i32) -> (i32, i32) {
    %c0_i32 = arith.constant 0 : i32
    %c0_i32_0 = arith.constant 0 : i32
    %c0_i32_1 = arith.constant 0 : i32
    return %c0_i32, %c0_i32_0 : i32, i32
  }
  func.func @transform_5(%arg0: i32) -> (i32, i32) {
    %c0_i32 = arith.constant 0 : i32
    %c0_i32_0 = arith.constant 0 : i32
    %c0_i32_1 = arith.constant 0 : i32
    return %c0_i32, %c0_i32_0 : i32, i32
  }
  func.func @transform_6(%arg0: i32) -> (i32, i32) {
    %c0_i32 = arith.constant 0 : i32
    %c0_i32_0 = arith.constant 0 : i32
    %c0_i32_1 = arith.constant 0 : i32
    return %c0_i32, %c0_i32_0 : i32, i32
  }
  func.func @transform_7(%arg0: i32) -> (i32, i32) {
    %c0_i32 = arith.constant 0 : i32
    %c0_i32_0 = arith.constant 0 : i32
    %c0_i32_1 = arith.constant 0 : i32
    return %c0_i32, %c0_i32_0 : i32, i32
  }
  func.func @transform_8(%arg0: i32) -> (i32, i32) {
    %c0_i32 = arith.constant 0 : i32
    %c0_i32_0 = arith.constant 0 : i32
    return %arg0, %c0_i32 : i32, i32
  }
}

module attributes {stable_mosaic.version = 11 : i64} {
  func.func @_linear_kernel(%arg0: i32, %arg1: memref<24x32xf32, #tpu.memory_space<vmem>>, %arg2: memref<32x128xf32, #tpu.memory_space<vmem>>, %arg3: memref<1x128xf32, #tpu.memory_space<vmem>>, %arg4: memref<24x128xf32, #tpu.memory_space<vmem>>) attributes {dimension_semantics = [#tpu.dimension_semantics<parallel>], iteration_bounds = array<i64: 1>, scalar_prefetch = 0 : i64, scratch_operands = 0 : i64, tpu.core_type = #tpu.core_type<tc>, window_params = [{transform_indices = @transform_0, window_bounds = array<i64: 24, 32>}, {pipeline_mode = #tpu.pipeline_mode<synchronous>, transform_indices = @transform_1, window_bounds = array<i64: 32, 128>}, {pipeline_mode = #tpu.pipeline_mode<synchronous>, transform_indices = @transform_2, window_bounds = array<i64: 1, 128>}, {transform_indices = @transform_3, window_bounds = array<i64: 24, 128>}]} {
    %c0 = arith.constant 0 : index
    %c0_0 = arith.constant 0 : index
    %0 = vector.load %arg1[%c0, %c0_0] : memref<24x32xf32, #tpu.memory_space<vmem>>, vector<24x32xf32>
    %1 = arith.truncf %0 : vector<24x32xf32> to vector<24x32xbf16>
    %c0_1 = arith.constant 0 : index
    %c0_2 = arith.constant 0 : index
    %2 = vector.load %arg2[%c0_1, %c0_2] : memref<32x128xf32, #tpu.memory_space<vmem>>, vector<32x128xf32>
    %3 = arith.truncf %2 : vector<32x128xf32> to vector<32x128xbf16>
    %cst = arith.constant dense<0.000000e+00> : vector<24x128xf32>
    %4 = tpu.matmul %1, %3, %cst {dimension_numbers = #tpu.dot_dimension_numbers<[1], [0], [0], [1], [0, 0, 1, 1], [], []>} : vector<24x32xbf16>, vector<32x128xbf16>, vector<24x128xf32> -> vector<24x128xf32>
    %c0_3 = arith.constant 0 : index
    %c0_4 = arith.constant 0 : index
    %5 = vector.load %arg3[%c0_3, %c0_4] : memref<1x128xf32, #tpu.memory_space<vmem>>, vector<1x128xf32>
    %6 = vector.broadcast %5 : vector<1x128xf32> to vector<24x128xf32>
    %7 = arith.addf %4, %6 : vector<24x128xf32>
    %c0_5 = arith.constant 0 : index
    %c0_6 = arith.constant 0 : index
    %8 = vector.load %arg4[%c0_5, %c0_6] : memref<24x128xf32, #tpu.memory_space<vmem>>, vector<24x128xf32>
    tpu.vector_store %arg4[%c0_5, %c0_6], %7 {strides = array<i32>} : memref<24x128xf32, #tpu.memory_space<vmem>>, vector<24x128xf32>,
    return
  }
  func.func @transform_0(%arg0: i32) -> (i32, i32) {
    %c0_i32 = arith.constant 0 : i32
    %c0_i32_0 = arith.constant 0 : i32
    return %arg0, %c0_i32 : i32, i32
  }
  func.func @transform_1(%arg0: i32) -> (i32, i32) {
    %c0_i32 = arith.constant 0 : i32
    %c0_i32_0 = arith.constant 0 : i32
    %c0_i32_1 = arith.constant 0 : i32
    return %c0_i32, %c0_i32_0 : i32, i32
  }
  func.func @transform_2(%arg0: i32) -> (i32, i32) {
    %c0_i32 = arith.constant 0 : i32
    %c0_i32_0 = arith.constant 0 : i32
    %c0_i32_1 = arith.constant 0 : i32
    return %c0_i32, %c0_i32_0 : i32, i32
  }
  func.func @transform_3(%arg0: i32) -> (i32, i32) {
    %c0_i32 = arith.constant 0 : i32
    %c0_i32_0 = arith.constant 0 : i32
    return %arg0, %c0_i32 : i32, i32
  }
}

module attributes {stable_mosaic.version = 11 : i64} {
  func.func @_rel_attn_kernel(%arg0: i32, %arg1: memref<1x12x32xf32, #tpu.memory_space<vmem>>, %arg2: memref<1x12x32xf32, #tpu.memory_space<vmem>>, %arg3: memref<1x12x32xf32, #tpu.memory_space<vmem>>, %arg4: memref<1x12x32xf32, #tpu.memory_space<vmem>>, %arg5: memref<1x12x12x32xf32, #tpu.memory_space<vmem>>, %arg6: memref<1x1x12xf32, #tpu.memory_space<vmem>>, %arg7: memref<1x12x32xf32, #tpu.memory_space<vmem>>) attributes {dimension_semantics = [#tpu.dimension_semantics<parallel>], iteration_bounds = array<i64: 2>, scalar_prefetch = 0 : i64, scratch_operands = 0 : i64, tpu.core_type = #tpu.core_type<tc>, window_params = [{transform_indices = @transform_0, window_bounds = array<i64: 1, 12, 32>}, {transform_indices = @transform_1, window_bounds = array<i64: 1, 12, 32>}, {transform_indices = @transform_2, window_bounds = array<i64: 1, 12, 32>}, {transform_indices = @transform_3, window_bounds = array<i64: 1, 12, 32>}, {transform_indices = @transform_4, window_bounds = array<i64: 1, 12, 12, 32>}, {transform_indices = @transform_5, window_bounds = array<i64: 1, 1, 12>}, {transform_indices = @transform_6, window_bounds = array<i64: 1, 12, 32>}]} {
    %c0 = arith.constant 0 : index
    %c0_0 = arith.constant 0 : index
    %c0_1 = arith.constant 0 : index
    %0 = vector.load %arg1[%c0, %c0_0, %c0_1] : memref<1x12x32xf32, #tpu.memory_space<vmem>>, vector<1x12x32xf32>
    %1 = vector.shape_cast %0 : vector<1x12x32xf32> to vector<12x32xf32>
    %c0_2 = arith.constant 0 : index
    %c0_3 = arith.constant 0 : index
    %c0_4 = arith.constant 0 : index
    %2 = vector.load %arg2[%c0_2, %c0_3, %c0_4] : memref<1x12x32xf32, #tpu.memory_space<vmem>>, vector<1x12x32xf32>
    %3 = vector.shape_cast %2 : vector<1x12x32xf32> to vector<12x32xf32>
    %c0_5 = arith.constant 0 : index
    %c0_6 = arith.constant 0 : index
    %c0_7 = arith.constant 0 : index
    %4 = vector.load %arg3[%c0_5, %c0_6, %c0_7] : memref<1x12x32xf32, #tpu.memory_space<vmem>>, vector<1x12x32xf32>
    %5 = vector.shape_cast %4 : vector<1x12x32xf32> to vector<12x32xf32>
    %c0_8 = arith.constant 0 : index
    %c0_9 = arith.constant 0 : index
    %c0_10 = arith.constant 0 : index
    %6 = vector.load %arg4[%c0_8, %c0_9, %c0_10] : memref<1x12x32xf32, #tpu.memory_space<vmem>>, vector<1x12x32xf32>
    %7 = vector.shape_cast %6 : vector<1x12x32xf32> to vector<12x32xf32>
    %c0_11 = arith.constant 0 : index
    %c0_12 = arith.constant 0 : index
    %c0_13 = arith.constant 0 : index
    %c0_14 = arith.constant 0 : index
    %8 = vector.load %arg5[%c0_11, %c0_12, %c0_13, %c0_14] : memref<1x12x12x32xf32, #tpu.memory_space<vmem>>, vector<1x12x12x32xf32>
    %9 = vector.shape_cast %8 : vector<1x12x12x32xf32> to vector<12x12x32xf32>
    %c0_15 = arith.constant 0 : index
    %c0_16 = arith.constant 0 : index
    %c0_17 = arith.constant 0 : index
    %10 = vector.load %arg6[%c0_15, %c0_16, %c0_17] : memref<1x1x12xf32, #tpu.memory_space<vmem>>, vector<1x1x12xf32>
    %11 = vector.shape_cast %10 : vector<1x1x12xf32> to vector<1x12xf32>
    %12 = vector.extract_strided_slice %1 {offsets = [0, 0], sizes = [12, 8], strides = [1, 1]} : vector<12x32xf32> to vector<12x8xf32>
    %13 = vector.extract_strided_slice %3 {offsets = [0, 0], sizes = [12, 8], strides = [1, 1]} : vector<12x32xf32> to vector<12x8xf32>
    %14 = vector.extract_strided_slice %5 {offsets = [0, 0], sizes = [12, 8], strides = [1, 1]} : vector<12x32xf32> to vector<12x8xf32>
    %15 = vector.extract_strided_slice %7 {offsets = [0, 0], sizes = [12, 8], strides = [1, 1]} : vector<12x32xf32> to vector<12x8xf32>
    %16 = vector.extract_strided_slice %9 {offsets = [0, 0, 0], sizes = [12, 12, 8], strides = [1, 1, 1]} : vector<12x12x32xf32> to vector<12x12x8xf32>
    %17 = arith.truncf %12 : vector<12x8xf32> to vector<12x8xbf16>
    %18 = arith.truncf %14 : vector<12x8xf32> to vector<12x8xbf16>
    %19 = tpu.transpose %18, [1, 0] : vector<12x8xbf16> -> vector<8x12xbf16>
    %cst = arith.constant dense<0.000000e+00> : vector<12x12xf32>
    %20 = tpu.matmul %17, %19, %cst {dimension_numbers = #tpu.dot_dimension_numbers<[1], [0], [0], [1], [0, 0, 1, 1], [], []>} : vector<12x8xbf16>, vector<8x12xbf16>, vector<12x12xf32> -> vector<12x12xf32>
    %21 = vector.shape_cast %13 : vector<12x8xf32> to vector<12x1x8xf32>
    %22 = vector.broadcast %21 : vector<12x1x8xf32> to vector<12x12x8xf32>
    %23 = arith.mulf %16, %22 : vector<12x12x8xf32>
    %cst_18 = arith.constant dense<0.000000e+00> : vector<12x12xf32>
    %24 = vector.multi_reduction <add>, %23, %cst_18 [2] : vector<12x12x8xf32> to vector<12x12xf32>
    %25 = arith.addf %20, %24 : vector<12x12xf32>
    %26 = vector.broadcast %11 : vector<1x12xf32> to vector<12x12xf32>
    %27 = arith.addf %25, %26 : vector<12x12xf32>
    %cst_19 = arith.constant dense<0xFF800000> : vector<12xf32>
    %28 = vector.multi_reduction <maximumf>, %27, %cst_19 [1] : vector<12x12xf32> to vector<12xf32>
    %29 = vector.shape_cast %28 : vector<12xf32> to vector<12x1xf32>
    %30 = vector.broadcast %29 : vector<12x1xf32> to vector<12x12xf32>
    %31 = arith.subf %27, %30 : vector<12x12xf32>
    %32 = math.exp %31 : vector<12x12xf32>
    %cst_20 = arith.constant dense<0.000000e+00> : vector<12xf32>
    %33 = vector.multi_reduction <add>, %32, %cst_20 [1] : vector<12x12xf32> to vector<12xf32>
    %34 = vector.shape_cast %33 : vector<12xf32> to vector<12x1xf32>
    %35 = arith.truncf %32 : vector<12x12xf32> to vector<12x12xbf16>
    %36 = arith.truncf %15 : vector<12x8xf32> to vector<12x8xbf16>
    %cst_21 = arith.constant dense<0.000000e+00> : vector<12x8xf32>
    %37 = tpu.matmul %35, %36, %cst_21 {dimension_numbers = #tpu.dot_dimension_numbers<[1], [0], [0], [1], [0, 0, 1, 1], [], []>} : vector<12x12xbf16>, vector<12x8xbf16>, vector<12x8xf32> -> vector<12x8xf32>
    %38 = tpu.reciprocal %34 {approx = true} : vector<12x1xf32> -> vector<12x1xf32>
    %39 = vector.broadcast %38 : vector<12x1xf32> to vector<12x8xf32>
    %40 = arith.mulf %37, %39 : vector<12x8xf32>
    %41 = vector.extract_strided_slice %1 {offsets = [0, 8], sizes = [12, 8], strides = [1, 1]} : vector<12x32xf32> to vector<12x8xf32>
    %42 = vector.extract_strided_slice %3 {offsets = [0, 8], sizes = [12, 8], strides = [1, 1]} : vector<12x32xf32> to vector<12x8xf32>
    %43 = vector.extract_strided_slice %5 {offsets = [0, 8], sizes = [12, 8], strides = [1, 1]} : vector<12x32xf32> to vector<12x8xf32>
    %44 = vector.extract_strided_slice %7 {offsets = [0, 8], sizes = [12, 8], strides = [1, 1]} : vector<12x32xf32> to vector<12x8xf32>
    %45 = vector.extract_strided_slice %9 {offsets = [0, 0, 8], sizes = [12, 12, 8], strides = [1, 1, 1]} : vector<12x12x32xf32> to vector<12x12x8xf32>
    %46 = arith.truncf %41 : vector<12x8xf32> to vector<12x8xbf16>
    %47 = arith.truncf %43 : vector<12x8xf32> to vector<12x8xbf16>
    %48 = tpu.transpose %47, [1, 0] : vector<12x8xbf16> -> vector<8x12xbf16>
    %cst_22 = arith.constant dense<0.000000e+00> : vector<12x12xf32>
    %49 = tpu.matmul %46, %48, %cst_22 {dimension_numbers = #tpu.dot_dimension_numbers<[1], [0], [0], [1], [0, 0, 1, 1], [], []>} : vector<12x8xbf16>, vector<8x12xbf16>, vector<12x12xf32> -> vector<12x12xf32>
    %50 = vector.shape_cast %42 : vector<12x8xf32> to vector<12x1x8xf32>
    %51 = vector.broadcast %50 : vector<12x1x8xf32> to vector<12x12x8xf32>
    %52 = arith.mulf %45, %51 : vector<12x12x8xf32>
    %cst_23 = arith.constant dense<0.000000e+00> : vector<12x12xf32>
    %53 = vector.multi_reduction <add>, %52, %cst_23 [2] : vector<12x12x8xf32> to vector<12x12xf32>
    %54 = arith.addf %49, %53 : vector<12x12xf32>
    %55 = vector.broadcast %11 : vector<1x12xf32> to vector<12x12xf32>
    %56 = arith.addf %54, %55 : vector<12x12xf32>
    %cst_24 = arith.constant dense<0xFF800000> : vector<12xf32>
    %57 = vector.multi_reduction <maximumf>, %56, %cst_24 [1] : vector<12x12xf32> to vector<12xf32>
    %58 = vector.shape_cast %57 : vector<12xf32> to vector<12x1xf32>
    %59 = vector.broadcast %58 : vector<12x1xf32> to vector<12x12xf32>
    %60 = arith.subf %56, %59 : vector<12x12xf32>
    %61 = math.exp %60 : vector<12x12xf32>
    %cst_25 = arith.constant dense<0.000000e+00> : vector<12xf32>
    %62 = vector.multi_reduction <add>, %61, %cst_25 [1] : vector<12x12xf32> to vector<12xf32>
    %63 = vector.shape_cast %62 : vector<12xf32> to vector<12x1xf32>
    %64 = arith.truncf %61 : vector<12x12xf32> to vector<12x12xbf16>
    %65 = arith.truncf %44 : vector<12x8xf32> to vector<12x8xbf16>
    %cst_26 = arith.constant dense<0.000000e+00> : vector<12x8xf32>
    %66 = tpu.matmul %64, %65, %cst_26 {dimension_numbers = #tpu.dot_dimension_numbers<[1], [0], [0], [1], [0, 0, 1, 1], [], []>} : vector<12x12xbf16>, vector<12x8xbf16>, vector<12x8xf32> -> vector<12x8xf32>
    %67 = tpu.reciprocal %63 {approx = true} : vector<12x1xf32> -> vector<12x1xf32>
    %68 = vector.broadcast %67 : vector<12x1xf32> to vector<12x8xf32>
    %69 = arith.mulf %66, %68 : vector<12x8xf32>
    %70 = vector.extract_strided_slice %1 {offsets = [0, 16], sizes = [12, 8], strides = [1, 1]} : vector<12x32xf32> to vector<12x8xf32>
    %71 = vector.extract_strided_slice %3 {offsets = [0, 16], sizes = [12, 8], strides = [1, 1]} : vector<12x32xf32> to vector<12x8xf32>
    %72 = vector.extract_strided_slice %5 {offsets = [0, 16], sizes = [12, 8], strides = [1, 1]} : vector<12x32xf32> to vector<12x8xf32>
    %73 = vector.extract_strided_slice %7 {offsets = [0, 16], sizes = [12, 8], strides = [1, 1]} : vector<12x32xf32> to vector<12x8xf32>
    %74 = vector.extract_strided_slice %9 {offsets = [0, 0, 16], sizes = [12, 12, 8], strides = [1, 1, 1]} : vector<12x12x32xf32> to vector<12x12x8xf32>
    %75 = arith.truncf %70 : vector<12x8xf32> to vector<12x8xbf16>
    %76 = arith.truncf %72 : vector<12x8xf32> to vector<12x8xbf16>
    %77 = tpu.transpose %76, [1, 0] : vector<12x8xbf16> -> vector<8x12xbf16>
    %cst_27 = arith.constant dense<0.000000e+00> : vector<12x12xf32>
    %78 = tpu.matmul %75, %77, %cst_27 {dimension_numbers = #tpu.dot_dimension_numbers<[1], [0], [0], [1], [0, 0, 1, 1], [], []>} : vector<12x8xbf16>, vector<8x12xbf16>, vector<12x12xf32> -> vector<12x12xf32>
    %79 = vector.shape_cast %71 : vector<12x8xf32> to vector<12x1x8xf32>
    %80 = vector.broadcast %79 : vector<12x1x8xf32> to vector<12x12x8xf32>
    %81 = arith.mulf %74, %80 : vector<12x12x8xf32>
    %cst_28 = arith.constant dense<0.000000e+00> : vector<12x12xf32>
    %82 = vector.multi_reduction <add>, %81, %cst_28 [2] : vector<12x12x8xf32> to vector<12x12xf32>
    %83 = arith.addf %78, %82 : vector<12x12xf32>
    %84 = vector.broadcast %11 : vector<1x12xf32> to vector<12x12xf32>
    %85 = arith.addf %83, %84 : vector<12x12xf32>
    %cst_29 = arith.constant dense<0xFF800000> : vector<12xf32>
    %86 = vector.multi_reduction <maximumf>, %85, %cst_29 [1] : vector<12x12xf32> to vector<12xf32>
    %87 = vector.shape_cast %86 : vector<12xf32> to vector<12x1xf32>
    %88 = vector.broadcast %87 : vector<12x1xf32> to vector<12x12xf32>
    %89 = arith.subf %85, %88 : vector<12x12xf32>
    %90 = math.exp %89 : vector<12x12xf32>
    %cst_30 = arith.constant dense<0.000000e+00> : vector<12xf32>
    %91 = vector.multi_reduction <add>, %90, %cst_30 [1] : vector<12x12xf32> to vector<12xf32>
    %92 = vector.shape_cast %91 : vector<12xf32> to vector<12x1xf32>
    %93 = arith.truncf %90 : vector<12x12xf32> to vector<12x12xbf16>
    %94 = arith.truncf %73 : vector<12x8xf32> to vector<12x8xbf16>
    %cst_31 = arith.constant dense<0.000000e+00> : vector<12x8xf32>
    %95 = tpu.matmul %93, %94, %cst_31 {dimension_numbers = #tpu.dot_dimension_numbers<[1], [0], [0], [1], [0, 0, 1, 1], [], []>} : vector<12x12xbf16>, vector<12x8xbf16>, vector<12x8xf32> -> vector<12x8xf32>
    %96 = tpu.reciprocal %92 {approx = true} : vector<12x1xf32> -> vector<12x1xf32>
    %97 = vector.broadcast %96 : vector<12x1xf32> to vector<12x8xf32>
    %98 = arith.mulf %95, %97 : vector<12x8xf32>
    %99 = vector.extract_strided_slice %1 {offsets = [0, 24], sizes = [12, 8], strides = [1, 1]} : vector<12x32xf32> to vector<12x8xf32>
    %100 = vector.extract_strided_slice %3 {offsets = [0, 24], sizes = [12, 8], strides = [1, 1]} : vector<12x32xf32> to vector<12x8xf32>
    %101 = vector.extract_strided_slice %5 {offsets = [0, 24], sizes = [12, 8], strides = [1, 1]} : vector<12x32xf32> to vector<12x8xf32>
    %102 = vector.extract_strided_slice %7 {offsets = [0, 24], sizes = [12, 8], strides = [1, 1]} : vector<12x32xf32> to vector<12x8xf32>
    %103 = vector.extract_strided_slice %9 {offsets = [0, 0, 24], sizes = [12, 12, 8], strides = [1, 1, 1]} : vector<12x12x32xf32> to vector<12x12x8xf32>
    %104 = arith.truncf %99 : vector<12x8xf32> to vector<12x8xbf16>
    %105 = arith.truncf %101 : vector<12x8xf32> to vector<12x8xbf16>
    %106 = tpu.transpose %105, [1, 0] : vector<12x8xbf16> -> vector<8x12xbf16>
    %cst_32 = arith.constant dense<0.000000e+00> : vector<12x12xf32>
    %107 = tpu.matmul %104, %106, %cst_32 {dimension_numbers = #tpu.dot_dimension_numbers<[1], [0], [0], [1], [0, 0, 1, 1], [], []>} : vector<12x8xbf16>, vector<8x12xbf16>, vector<12x12xf32> -> vector<12x12xf32>
    %108 = vector.shape_cast %100 : vector<12x8xf32> to vector<12x1x8xf32>
    %109 = vector.broadcast %108 : vector<12x1x8xf32> to vector<12x12x8xf32>
    %110 = arith.mulf %103, %109 : vector<12x12x8xf32>
    %cst_33 = arith.constant dense<0.000000e+00> : vector<12x12xf32>
    %111 = vector.multi_reduction <add>, %110, %cst_33 [2] : vector<12x12x8xf32> to vector<12x12xf32>
    %112 = arith.addf %107, %111 : vector<12x12xf32>
    %113 = vector.broadcast %11 : vector<1x12xf32> to vector<12x12xf32>
    %114 = arith.addf %112, %113 : vector<12x12xf32>
    %cst_34 = arith.constant dense<0xFF800000> : vector<12xf32>
    %115 = vector.multi_reduction <maximumf>, %114, %cst_34 [1] : vector<12x12xf32> to vector<12xf32>
    %116 = vector.shape_cast %115 : vector<12xf32> to vector<12x1xf32>
    %117 = vector.broadcast %116 : vector<12x1xf32> to vector<12x12xf32>
    %118 = arith.subf %114, %117 : vector<12x12xf32>
    %119 = math.exp %118 : vector<12x12xf32>
    %cst_35 = arith.constant dense<0.000000e+00> : vector<12xf32>
    %120 = vector.multi_reduction <add>, %119, %cst_35 [1] : vector<12x12xf32> to vector<12xf32>
    %121 = vector.shape_cast %120 : vector<12xf32> to vector<12x1xf32>
    %122 = arith.truncf %119 : vector<12x12xf32> to vector<12x12xbf16>
    %123 = arith.truncf %102 : vector<12x8xf32> to vector<12x8xbf16>
    %cst_36 = arith.constant dense<0.000000e+00> : vector<12x8xf32>
    %124 = tpu.matmul %122, %123, %cst_36 {dimension_numbers = #tpu.dot_dimension_numbers<[1], [0], [0], [1], [0, 0, 1, 1], [], []>} : vector<12x12xbf16>, vector<12x8xbf16>, vector<12x8xf32> -> vector<12x8xf32>
    %125 = tpu.reciprocal %121 {approx = true} : vector<12x1xf32> -> vector<12x1xf32>
    %126 = vector.broadcast %125 : vector<12x1xf32> to vector<12x8xf32>
    %127 = arith.mulf %124, %126 : vector<12x8xf32>
    %128 = tpu.concatenate %40, %69, %98, %127 in 1 : vector<12x8xf32>, vector<12x8xf32>, vector<12x8xf32>, vector<12x8xf32> -> vector<12x32xf32>
    %c0_37 = arith.constant 0 : index
    %c0_38 = arith.constant 0 : index
    %c0_39 = arith.constant 0 : index
    %129 = vector.load %arg7[%c0_37, %c0_38, %c0_39] : memref<1x12x32xf32, #tpu.memory_space<vmem>>, vector<1x12x32xf32>
    %130 = vector.shape_cast %129 : vector<1x12x32xf32> to vector<12x32xf32>
    %131 = vector.shape_cast %128 : vector<12x32xf32> to vector<1x12x32xf32>
    tpu.vector_store %arg7[%c0_37, %c0_38, %c0_39], %131 {strides = array<i32>} : memref<1x12x32xf32, #tpu.memory_space<vmem>>, vector<1x12x32xf32>,
    return
  }
  func.func @transform_0(%arg0: i32) -> (i32, i32, i32) {
    %c0_i32 = arith.constant 0 : i32
    %c0_i32_0 = arith.constant 0 : i32
    %c0_i32_1 = arith.constant 0 : i32
    return %arg0, %c0_i32, %c0_i32_0 : i32, i32, i32
  }
  func.func @transform_1(%arg0: i32) -> (i32, i32, i32) {
    %c0_i32 = arith.constant 0 : i32
    %c0_i32_0 = arith.constant 0 : i32
    %c0_i32_1 = arith.constant 0 : i32
    return %arg0, %c0_i32, %c0_i32_0 : i32, i32, i32
  }
  func.func @transform_2(%arg0: i32) -> (i32, i32, i32) {
    %c0_i32 = arith.constant 0 : i32
    %c0_i32_0 = arith.constant 0 : i32
    %c0_i32_1 = arith.constant 0 : i32
    return %arg0, %c0_i32, %c0_i32_0 : i32, i32, i32
  }
  func.func @transform_3(%arg0: i32) -> (i32, i32, i32) {
    %c0_i32 = arith.constant 0 : i32
    %c0_i32_0 = arith.constant 0 : i32
    %c0_i32_1 = arith.constant 0 : i32
    return %arg0, %c0_i32, %c0_i32_0 : i32, i32, i32
  }
  func.func @transform_4(%arg0: i32) -> (i32, i32, i32, i32) {
    %c0_i32 = arith.constant 0 : i32
    %c0_i32_0 = arith.constant 0 : i32
    %c0_i32_1 = arith.constant 0 : i32
    %c0_i32_2 = arith.constant 0 : i32
    return %arg0, %c0_i32, %c0_i32_0, %c0_i32_1 : i32, i32, i32, i32
  }
  func.func @transform_5(%arg0: i32) -> (i32, i32, i32) {
    %c0_i32 = arith.constant 0 : i32
    %c0_i32_0 = arith.constant 0 : i32
    %c0_i32_1 = arith.constant 0 : i32
    return %arg0, %c0_i32, %c0_i32_0 : i32, i32, i32
  }
  func.func @transform_6(%arg0: i32) -> (i32, i32, i32) {
    %c0_i32 = arith.constant 0 : i32
    %c0_i32_0 = arith.constant 0 : i32
    %c0_i32_1 = arith.constant 0 : i32
    return %arg0, %c0_i32, %c0_i32_0 : i32, i32, i32
  }
}

module attributes {stable_mosaic.version = 11 : i64} {
  func.func @_proj_add_ln_kernel(%arg0: i32, %arg1: memref<24x32xf32, #tpu.memory_space<vmem>>, %arg2: memref<24x32xf32, #tpu.memory_space<vmem>>, %arg3: memref<32x32xf32, #tpu.memory_space<vmem>>, %arg4: memref<1x32xf32, #tpu.memory_space<vmem>>, %arg5: memref<1x32xf32, #tpu.memory_space<vmem>>, %arg6: memref<1x32xf32, #tpu.memory_space<vmem>>, %arg7: memref<24x32xf32, #tpu.memory_space<vmem>>) attributes {dimension_semantics = [#tpu.dimension_semantics<parallel>], iteration_bounds = array<i64: 1>, scalar_prefetch = 0 : i64, scratch_operands = 0 : i64, tpu.core_type = #tpu.core_type<tc>, window_params = [{transform_indices = @transform_0, window_bounds = array<i64: 24, 32>}, {transform_indices = @transform_1, window_bounds = array<i64: 24, 32>}, {pipeline_mode = #tpu.pipeline_mode<synchronous>, transform_indices = @transform_2, window_bounds = array<i64: 32, 32>}, {pipeline_mode = #tpu.pipeline_mode<synchronous>, transform_indices = @transform_3, window_bounds = array<i64: 1, 32>}, {pipeline_mode = #tpu.pipeline_mode<synchronous>, transform_indices = @transform_4, window_bounds = array<i64: 1, 32>}, {pipeline_mode = #tpu.pipeline_mode<synchronous>, transform_indices = @transform_5, window_bounds = array<i64: 1, 32>}, {transform_indices = @transform_6, window_bounds = array<i64: 24, 32>}]} {
    %c0 = arith.constant 0 : index
    %c0_0 = arith.constant 0 : index
    %0 = vector.load %arg1[%c0, %c0_0] : memref<24x32xf32, #tpu.memory_space<vmem>>, vector<24x32xf32>
    %1 = arith.truncf %0 : vector<24x32xf32> to vector<24x32xbf16>
    %c0_1 = arith.constant 0 : index
    %c0_2 = arith.constant 0 : index
    %2 = vector.load %arg3[%c0_1, %c0_2] : memref<32x32xf32, #tpu.memory_space<vmem>>, vector<32x32xf32>
    %3 = arith.truncf %2 : vector<32x32xf32> to vector<32x32xbf16>
    %cst = arith.constant dense<0.000000e+00> : vector<24x32xf32>
    %4 = tpu.matmul %1, %3, %cst {dimension_numbers = #tpu.dot_dimension_numbers<[1], [0], [0], [1], [0, 0, 1, 1], [], []>} : vector<24x32xbf16>, vector<32x32xbf16>, vector<24x32xf32> -> vector<24x32xf32>
    %c0_3 = arith.constant 0 : index
    %c0_4 = arith.constant 0 : index
    %5 = vector.load %arg4[%c0_3, %c0_4] : memref<1x32xf32, #tpu.memory_space<vmem>>, vector<1x32xf32>
    %6 = vector.broadcast %5 : vector<1x32xf32> to vector<24x32xf32>
    %7 = arith.addf %4, %6 : vector<24x32xf32>
    %c0_5 = arith.constant 0 : index
    %c0_6 = arith.constant 0 : index
    %8 = vector.load %arg2[%c0_5, %c0_6] : memref<24x32xf32, #tpu.memory_space<vmem>>, vector<24x32xf32>
    %9 = arith.addf %7, %8 : vector<24x32xf32>
    %cst_7 = arith.constant dense<0.000000e+00> : vector<24xf32>
    %10 = vector.multi_reduction <add>, %9, %cst_7 [1] : vector<24x32xf32> to vector<24xf32>
    %11 = vector.shape_cast %10 : vector<24xf32> to vector<24x1xf32>
    %cst_8 = arith.constant 3.200000e+01 : f32
    %12 = vector.broadcast %cst_8 : f32 to vector<24x1xf32>
    %13 = arith.divf %11, %12 : vector<24x1xf32>
    %14 = vector.broadcast %13 : vector<24x1xf32> to vector<24x32xf32>
    %15 = arith.subf %9, %14 : vector<24x32xf32>
    %16 = arith.mulf %15, %15 : vector<24x32xf32>
    %cst_9 = arith.constant dense<0.000000e+00> : vector<24xf32>
    %17 = vector.multi_reduction <add>, %16, %cst_9 [1] : vector<24x32xf32> to vector<24xf32>
    %18 = vector.shape_cast %17 : vector<24xf32> to vector<24x1xf32>
    %cst_10 = arith.constant 3.200000e+01 : f32
    %19 = vector.broadcast %cst_10 : f32 to vector<24x1xf32>
    %20 = arith.divf %18, %19 : vector<24x1xf32>
    %21 = vector.broadcast %13 : vector<24x1xf32> to vector<24x32xf32>
    %22 = arith.subf %9, %21 : vector<24x32xf32>
    %cst_11 = arith.constant 9.99999974E-6 : f32
    %23 = vector.broadcast %cst_11 : f32 to vector<24x1xf32>
    %24 = arith.addf %20, %23 : vector<24x1xf32>
    %25 = math.rsqrt %24 : vector<24x1xf32>
    %26 = vector.broadcast %25 : vector<24x1xf32> to vector<24x32xf32>
    %27 = arith.mulf %22, %26 : vector<24x32xf32>
    %c0_12 = arith.constant 0 : index
    %c0_13 = arith.constant 0 : index
    %28 = vector.load %arg5[%c0_12, %c0_13] : memref<1x32xf32, #tpu.memory_space<vmem>>, vector<1x32xf32>
    %29 = vector.broadcast %28 : vector<1x32xf32> to vector<24x32xf32>
    %30 = arith.mulf %27, %29 : vector<24x32xf32>
    %c0_14 = arith.constant 0 : index
    %c0_15 = arith.constant 0 : index
    %31 = vector.load %arg6[%c0_14, %c0_15] : memref<1x32xf32, #tpu.memory_space<vmem>>, vector<1x32xf32>
    %32 = vector.broadcast %31 : vector<1x32xf32> to vector<24x32xf32>
    %33 = arith.addf %30, %32 : vector<24x32xf32>
    %c0_16 = arith.constant 0 : index
    %c0_17 = arith.constant 0 : index
    %34 = vector.load %arg7[%c0_16, %c0_17] : memref<24x32xf32, #tpu.memory_space<vmem>>, vector<24x32xf32>
    tpu.vector_store %arg7[%c0_16, %c0_17], %33 {strides = array<i32>} : memref<24x32xf32, #tpu.memory_space<vmem>>, vector<24x32xf32>,
    return
  }
  func.func @transform_0(%arg0: i32) -> (i32, i32) {
    %c0_i32 = arith.constant 0 : i32
    %c0_i32_0 = arith.constant 0 : i32
    return %arg0, %c0_i32 : i32, i32
  }
  func.func @transform_1(%arg0: i32) -> (i32, i32) {
    %c0_i32 = arith.constant 0 : i32
    %c0_i32_0 = arith.constant 0 : i32
    return %arg0, %c0_i32 : i32, i32
  }
  func.func @transform_2(%arg0: i32) -> (i32, i32) {
    %c0_i32 = arith.constant 0 : i32
    %c0_i32_0 = arith.constant 0 : i32
    %c0_i32_1 = arith.constant 0 : i32
    return %c0_i32, %c0_i32_0 : i32, i32
  }
  func.func @transform_3(%arg0: i32) -> (i32, i32) {
    %c0_i32 = arith.constant 0 : i32
    %c0_i32_0 = arith.constant 0 : i32
    %c0_i32_1 = arith.constant 0 : i32
    return %c0_i32, %c0_i32_0 : i32, i32
  }
  func.func @transform_4(%arg0: i32) -> (i32, i32) {
    %c0_i32 = arith.constant 0 : i32
    %c0_i32_0 = arith.constant 0 : i32
    %c0_i32_1 = arith.constant 0 : i32
    return %c0_i32, %c0_i32_0 : i32, i32
  }
  func.func @transform_5(%arg0: i32) -> (i32, i32) {
    %c0_i32 = arith.constant 0 : i32
    %c0_i32_0 = arith.constant 0 : i32
    %c0_i32_1 = arith.constant 0 : i32
    return %c0_i32, %c0_i32_0 : i32, i32
  }
  func.func @transform_6(%arg0: i32) -> (i32, i32) {
    %c0_i32 = arith.constant 0 : i32
    %c0_i32_0 = arith.constant 0 : i32
    return %arg0, %c0_i32 : i32, i32
  }
}

module attributes {stable_mosaic.version = 11 : i64} {
  func.func @_ffn_add_ln_kernel(%arg0: i32, %arg1: memref<24x32xf32, #tpu.memory_space<vmem>>, %arg2: memref<32x64xf32, #tpu.memory_space<vmem>>, %arg3: memref<1x64xf32, #tpu.memory_space<vmem>>, %arg4: memref<64x32xf32, #tpu.memory_space<vmem>>, %arg5: memref<1x32xf32, #tpu.memory_space<vmem>>, %arg6: memref<1x32xf32, #tpu.memory_space<vmem>>, %arg7: memref<1x32xf32, #tpu.memory_space<vmem>>, %arg8: memref<24x32xf32, #tpu.memory_space<vmem>>) attributes {dimension_semantics = [#tpu.dimension_semantics<parallel>], iteration_bounds = array<i64: 1>, scalar_prefetch = 0 : i64, scratch_operands = 0 : i64, tpu.core_type = #tpu.core_type<tc>, window_params = [{transform_indices = @transform_0, window_bounds = array<i64: 24, 32>}, {pipeline_mode = #tpu.pipeline_mode<synchronous>, transform_indices = @transform_1, window_bounds = array<i64: 32, 64>}, {pipeline_mode = #tpu.pipeline_mode<synchronous>, transform_indices = @transform_2, window_bounds = array<i64: 1, 64>}, {pipeline_mode = #tpu.pipeline_mode<synchronous>, transform_indices = @transform_3, window_bounds = array<i64: 64, 32>}, {pipeline_mode = #tpu.pipeline_mode<synchronous>, transform_indices = @transform_4, window_bounds = array<i64: 1, 32>}, {pipeline_mode = #tpu.pipeline_mode<synchronous>, transform_indices = @transform_5, window_bounds = array<i64: 1, 32>}, {pipeline_mode = #tpu.pipeline_mode<synchronous>, transform_indices = @transform_6, window_bounds = array<i64: 1, 32>}, {transform_indices = @transform_7, window_bounds = array<i64: 24, 32>}]} {
    %c0 = arith.constant 0 : index
    %c0_0 = arith.constant 0 : index
    %0 = vector.load %arg1[%c0, %c0_0] : memref<24x32xf32, #tpu.memory_space<vmem>>, vector<24x32xf32>
    %1 = arith.truncf %0 : vector<24x32xf32> to vector<24x32xbf16>
    %c0_1 = arith.constant 0 : index
    %c0_2 = arith.constant 0 : index
    %2 = vector.load %arg2[%c0_1, %c0_2] : memref<32x64xf32, #tpu.memory_space<vmem>>, vector<32x64xf32>
    %3 = arith.truncf %2 : vector<32x64xf32> to vector<32x64xbf16>
    %cst = arith.constant dense<0.000000e+00> : vector<24x64xf32>
    %4 = tpu.matmul %1, %3, %cst {dimension_numbers = #tpu.dot_dimension_numbers<[1], [0], [0], [1], [0, 0, 1, 1], [], []>} : vector<24x32xbf16>, vector<32x64xbf16>, vector<24x64xf32> -> vector<24x64xf32>
    %c0_3 = arith.constant 0 : index
    %c0_4 = arith.constant 0 : index
    %5 = vector.load %arg3[%c0_3, %c0_4] : memref<1x64xf32, #tpu.memory_space<vmem>>, vector<1x64xf32>
    %6 = vector.broadcast %5 : vector<1x64xf32> to vector<24x64xf32>
    %7 = arith.addf %4, %6 : vector<24x64xf32>
    %cst_5 = arith.constant 0.000000e+00 : f32
    %8 = vector.broadcast %cst_5 : f32 to vector<24x64xf32>
    %9 = arith.maximumf %7, %8 : vector<24x64xf32>
    %10 = arith.truncf %9 : vector<24x64xf32> to vector<24x64xbf16>
    %c0_6 = arith.constant 0 : index
    %c0_7 = arith.constant 0 : index
    %11 = vector.load %arg4[%c0_6, %c0_7] : memref<64x32xf32, #tpu.memory_space<vmem>>, vector<64x32xf32>
    %12 = arith.truncf %11 : vector<64x32xf32> to vector<64x32xbf16>
    %cst_8 = arith.constant dense<0.000000e+00> : vector<24x32xf32>
    %13 = tpu.matmul %10, %12, %cst_8 {dimension_numbers = #tpu.dot_dimension_numbers<[1], [0], [0], [1], [0, 0, 1, 1], [], []>} : vector<24x64xbf16>, vector<64x32xbf16>, vector<24x32xf32> -> vector<24x32xf32>
    %c0_9 = arith.constant 0 : index
    %c0_10 = arith.constant 0 : index
    %14 = vector.load %arg5[%c0_9, %c0_10] : memref<1x32xf32, #tpu.memory_space<vmem>>, vector<1x32xf32>
    %15 = vector.broadcast %14 : vector<1x32xf32> to vector<24x32xf32>
    %16 = arith.addf %13, %15 : vector<24x32xf32>
    %17 = arith.addf %16, %0 : vector<24x32xf32>
    %cst_11 = arith.constant dense<0.000000e+00> : vector<24xf32>
    %18 = vector.multi_reduction <add>, %17, %cst_11 [1] : vector<24x32xf32> to vector<24xf32>
    %19 = vector.shape_cast %18 : vector<24xf32> to vector<24x1xf32>
    %cst_12 = arith.constant 3.200000e+01 : f32
    %20 = vector.broadcast %cst_12 : f32 to vector<24x1xf32>
    %21 = arith.divf %19, %20 : vector<24x1xf32>
    %22 = vector.broadcast %21 : vector<24x1xf32> to vector<24x32xf32>
    %23 = arith.subf %17, %22 : vector<24x32xf32>
    %24 = arith.mulf %23, %23 : vector<24x32xf32>
    %cst_13 = arith.constant dense<0.000000e+00> : vector<24xf32>
    %25 = vector.multi_reduction <add>, %24, %cst_13 [1] : vector<24x32xf32> to vector<24xf32>
    %26 = vector.shape_cast %25 : vector<24xf32> to vector<24x1xf32>
    %cst_14 = arith.constant 3.200000e+01 : f32
    %27 = vector.broadcast %cst_14 : f32 to vector<24x1xf32>
    %28 = arith.divf %26, %27 : vector<24x1xf32>
    %29 = vector.broadcast %21 : vector<24x1xf32> to vector<24x32xf32>
    %30 = arith.subf %17, %29 : vector<24x32xf32>
    %cst_15 = arith.constant 9.99999974E-6 : f32
    %31 = vector.broadcast %cst_15 : f32 to vector<24x1xf32>
    %32 = arith.addf %28, %31 : vector<24x1xf32>
    %33 = math.rsqrt %32 : vector<24x1xf32>
    %34 = vector.broadcast %33 : vector<24x1xf32> to vector<24x32xf32>
    %35 = arith.mulf %30, %34 : vector<24x32xf32>
    %c0_16 = arith.constant 0 : index
    %c0_17 = arith.constant 0 : index
    %36 = vector.load %arg6[%c0_16, %c0_17] : memref<1x32xf32, #tpu.memory_space<vmem>>, vector<1x32xf32>
    %37 = vector.broadcast %36 : vector<1x32xf32> to vector<24x32xf32>
    %38 = arith.mulf %35, %37 : vector<24x32xf32>
    %c0_18 = arith.constant 0 : index
    %c0_19 = arith.constant 0 : index
    %39 = vector.load %arg7[%c0_18, %c0_19] : memref<1x32xf32, #tpu.memory_space<vmem>>, vector<1x32xf32>
    %40 = vector.broadcast %39 : vector<1x32xf32> to vector<24x32xf32>
    %41 = arith.addf %38, %40 : vector<24x32xf32>
    %c0_20 = arith.constant 0 : index
    %c0_21 = arith.constant 0 : index
    %42 = vector.load %arg8[%c0_20, %c0_21] : memref<24x32xf32, #tpu.memory_space<vmem>>, vector<24x32xf32>
    tpu.vector_store %arg8[%c0_20, %c0_21], %41 {strides = array<i32>} : memref<24x32xf32, #tpu.memory_space<vmem>>, vector<24x32xf32>,
    return
  }
  func.func @transform_0(%arg0: i32) -> (i32, i32) {
    %c0_i32 = arith.constant 0 : i32
    %c0_i32_0 = arith.constant 0 : i32
    return %arg0, %c0_i32 : i32, i32
  }
  func.func @transform_1(%arg0: i32) -> (i32, i32) {
    %c0_i32 = arith.constant 0 : i32
    %c0_i32_0 = arith.constant 0 : i32
    %c0_i32_1 = arith.constant 0 : i32
    return %c0_i32, %c0_i32_0 : i32, i32
  }
  func.func @transform_2(%arg0: i32) -> (i32, i32) {
    %c0_i32 = arith.constant 0 : i32
    %c0_i32_0 = arith.constant 0 : i32
    %c0_i32_1 = arith.constant 0 : i32
    return %c0_i32, %c0_i32_0 : i32, i32
  }
  func.func @transform_3(%arg0: i32) -> (i32, i32) {
    %c0_i32 = arith.constant 0 : i32
    %c0_i32_0 = arith.constant 0 : i32
    %c0_i32_1 = arith.constant 0 : i32
    return %c0_i32, %c0_i32_0 : i32, i32
  }
  func.func @transform_4(%arg0: i32) -> (i32, i32) {
    %c0_i32 = arith.constant 0 : i32
    %c0_i32_0 = arith.constant 0 : i32
    %c0_i32_1 = arith.constant 0 : i32
    return %c0_i32, %c0_i32_0 : i32, i32
  }
  func.func @transform_5(%arg0: i32) -> (i32, i32) {
    %c0_i32 = arith.constant 0 : i32
    %c0_i32_0 = arith.constant 0 : i32
    %c0_i32_1 = arith.constant 0 : i32
    return %c0_i32, %c0_i32_0 : i32, i32
  }
  func.func @transform_6(%arg0: i32) -> (i32, i32) {
    %c0_i32 = arith.constant 0 : i32
    %c0_i32_0 = arith.constant 0 : i32
    %c0_i32_1 = arith.constant 0 : i32
    return %c0_i32, %c0_i32_0 : i32, i32
  }
  func.func @transform_7(%arg0: i32) -> (i32, i32) {
    %c0_i32 = arith.constant 0 : i32
    %c0_i32_0 = arith.constant 0 : i32
    return %arg0, %c0_i32 : i32, i32
  }
}

module attributes {stable_mosaic.version = 11 : i64} {
  func.func @_linear_kernel(%arg0: i32, %arg1: memref<16x32xf32, #tpu.memory_space<vmem>>, %arg2: memref<32x128xf32, #tpu.memory_space<vmem>>, %arg3: memref<1x128xf32, #tpu.memory_space<vmem>>, %arg4: memref<16x128xf32, #tpu.memory_space<vmem>>) attributes {dimension_semantics = [#tpu.dimension_semantics<parallel>], iteration_bounds = array<i64: 1>, scalar_prefetch = 0 : i64, scratch_operands = 0 : i64, tpu.core_type = #tpu.core_type<tc>, window_params = [{transform_indices = @transform_0, window_bounds = array<i64: 16, 32>}, {pipeline_mode = #tpu.pipeline_mode<synchronous>, transform_indices = @transform_1, window_bounds = array<i64: 32, 128>}, {pipeline_mode = #tpu.pipeline_mode<synchronous>, transform_indices = @transform_2, window_bounds = array<i64: 1, 128>}, {transform_indices = @transform_3, window_bounds = array<i64: 16, 128>}]} {
    %c0 = arith.constant 0 : index
    %c0_0 = arith.constant 0 : index
    %0 = vector.load %arg1[%c0, %c0_0] : memref<16x32xf32, #tpu.memory_space<vmem>>, vector<16x32xf32>
    %1 = arith.truncf %0 : vector<16x32xf32> to vector<16x32xbf16>
    %c0_1 = arith.constant 0 : index
    %c0_2 = arith.constant 0 : index
    %2 = vector.load %arg2[%c0_1, %c0_2] : memref<32x128xf32, #tpu.memory_space<vmem>>, vector<32x128xf32>
    %3 = arith.truncf %2 : vector<32x128xf32> to vector<32x128xbf16>
    %cst = arith.constant dense<0.000000e+00> : vector<16x128xf32>
    %4 = tpu.matmul %1, %3, %cst {dimension_numbers = #tpu.dot_dimension_numbers<[1], [0], [0], [1], [0, 0, 1, 1], [], []>} : vector<16x32xbf16>, vector<32x128xbf16>, vector<16x128xf32> -> vector<16x128xf32>
    %c0_3 = arith.constant 0 : index
    %c0_4 = arith.constant 0 : index
    %5 = vector.load %arg3[%c0_3, %c0_4] : memref<1x128xf32, #tpu.memory_space<vmem>>, vector<1x128xf32>
    %6 = vector.broadcast %5 : vector<1x128xf32> to vector<16x128xf32>
    %7 = arith.addf %4, %6 : vector<16x128xf32>
    %c0_5 = arith.constant 0 : index
    %c0_6 = arith.constant 0 : index
    %8 = vector.load %arg4[%c0_5, %c0_6] : memref<16x128xf32, #tpu.memory_space<vmem>>, vector<16x128xf32>
    tpu.vector_store %arg4[%c0_5, %c0_6], %7 {strides = array<i32>} : memref<16x128xf32, #tpu.memory_space<vmem>>, vector<16x128xf32>,
    return
  }
  func.func @transform_0(%arg0: i32) -> (i32, i32) {
    %c0_i32 = arith.constant 0 : i32
    %c0_i32_0 = arith.constant 0 : i32
    return %arg0, %c0_i32 : i32, i32
  }
  func.func @transform_1(%arg0: i32) -> (i32, i32) {
    %c0_i32 = arith.constant 0 : i32
    %c0_i32_0 = arith.constant 0 : i32
    %c0_i32_1 = arith.constant 0 : i32
    return %c0_i32, %c0_i32_0 : i32, i32
  }
  func.func @transform_2(%arg0: i32) -> (i32, i32) {
    %c0_i32 = arith.constant 0 : i32
    %c0_i32_0 = arith.constant 0 : i32
    %c0_i32_1 = arith.constant 0 : i32
    return %c0_i32, %c0_i32_0 : i32, i32
  }
  func.func @transform_3(%arg0: i32) -> (i32, i32) {
    %c0_i32 = arith.constant 0 : i32
    %c0_i32_0 = arith.constant 0 : i32
    return %arg0, %c0_i32 : i32, i32
  }
}

</mosaic_0001>

<llo_original>
// kernel: _lambda_.12
$region0: #{_lambda_.12}
  #allocation0 [shape = 'u32[]', space=smem, size = 0x4, offset = 0x4, fixed_abs, tag = 'smem constant byte address 0x4 - core index']
  #allocation1 [shape = 'u32[144,128]{1,0:T(1,128)}', space=vmem, size = 0x12000, scoped, tag = 'internal scratch']
  %s0 = inlined_call_operand.vmem [shape: f32[288,128], index: 0, kind: input, shape index: {}]
  %s1 = inlined_call_operand.vmem [shape: f32[128,32], index: 1, kind: input, shape index: {}]
  %s2 = inlined_call_operand.vmem [shape: f32[1,32], index: 2, kind: input, shape index: {}]
  %s3 = inlined_call_operand.vmem [shape: f32[288,32], index: 3, kind: output, shape index: {}]
  %s4 = sld [smem:[#allocation0]]
  $region22: #{_lambda_.12} parent=0
    _
  %s6 = ssub.s32 1, %s4
  %s7 = scalar_select 0, %s6, %s4
  // Predicated region
  $region2: #{_lambda_.12} parent=0 // pred_check
    _
  $region3: #{_lambda_.12} parent=0 // pred_check_branch
    %9 = sbr.rel (0) target = $region5
  $region4: #{_lambda_.12} parent=0 // pred_region
    _
  $region5: #{_lambda_.12} parent=0 // pred_fallthru
    _
  // Predicated region
  $region6: #{_lambda_.12} parent=0 // pred_check
    _
  $region7: #{_lambda_.12} parent=0 // pred_check_branch
    %11 = sbr.rel (0) target = $region9
  $region8: #{_lambda_.12} parent=0 // pred_region
    _
  $region9: #{_lambda_.12} parent=0 // pred_fallthru
    _
  // Predicated region
  $region10: #{_lambda_.12} parent=0 // pred_check
    _
  $region11: #{_lambda_.12} parent=0 // pred_check_branch
    %13 = sbr.rel (0) target = $region13
  $region12: #{_lambda_.12} parent=0 // pred_region
    _
  $region13: #{_lambda_.12} parent=0 // pred_fallthru
    _
  %v15 = vld [vmem:[%s0] sm:$0xff]
  %v16 = vld [vmem:[%s0 + $0x8] sm:$0xff]
  %v17 = vld [vmem:[%s0 + $0x10] sm:$0xff]
  %v18 = vld [vmem:[%s0 + $0x18] sm:$0xff]
  %v19 = vld [vmem:[%s0 + $0x20] sm:$0xff]
  %v20 = vld [vmem:[%s0 + $0x28] sm:$0xff]
  %v21 = vld [vmem:[%s0 + $0x30] sm:$0xff]
  %v22 = vld [vmem:[%s0 + $0x38] sm:$0xff]
  %v23 = vld [vmem:[%s0 + $0x40] sm:$0xff]
  %v24 = vld [vmem:[%s0 + $0x48] sm:$0xff]
  %v25 = vld [vmem:[%s0 + $0x50] sm:$0xff]
  %v26 = vld [vmem:[%s0 + $0x58] sm:$0xff]
  %v27 = vld [vmem:[%s0 + $0x60] sm:$0xff]
  %v28 = vld [vmem:[%s0 + $0x68] sm:$0xff]
  %v29 = vld [vmem:[%s0 + $0x70] sm:$0xff]
  %v30 = vld [vmem:[%s0 + $0x78] sm:$0xff]
  %v31 = vld [vmem:[%s0 + $0x80] sm:$0xff]
  %v32 = vld [vmem:[%s0 + $0x88] sm:$0xff]
  %v33 = vld [vmem:[%s0 + $0x90] sm:$0xff]
  %v34 = vld [vmem:[%s0 + $0x98] sm:$0xff]
  %v35 = vld [vmem:[%s0 + $0xa0] sm:$0xff]
  %v36 = vld [vmem:[%s0 + $0xa8] sm:$0xff]
  %v37 = vld [vmem:[%s0 + $0xb0] sm:$0xff]
  %v38 = vld [vmem:[%s0 + $0xb8] sm:$0xff]
  %v39 = vld [vmem:[%s0 + $0xc0] sm:$0xff]
  %v40 = vld [vmem:[%s0 + $0xc8] sm:$0xff]
  %v41 = vld [vmem:[%s0 + $0xd0] sm:$0xff]
  %v42 = vld [vmem:[%s0 + $0xd8] sm:$0xff]
  %v43 = vld [vmem:[%s0 + $0xe0] sm:$0xff]
  %v44 = vld [vmem:[%s0 + $0xe8] sm:$0xff]
  %v45 = vld [vmem:[%s0 + $0xf0] sm:$0xff]
  %v46 = vld [vmem:[%s0 + $0xf8] sm:$0xff]
  %v47 = vld [vmem:[%s0 + $0x100] sm:$0xff]
  %v48 = vld [vmem:[%s0 + $0x108] sm:$0xff]
  %v49 = vld [vmem:[%s0 + $0x110] sm:$0xff]
  %v50 = vld [vmem:[%s0 + $0x118] sm:$0xff]
  %v51 = vpack.c.bf16 %v16, %v15
  %v52 = vpack.c.bf16 %v18, %v17
  %v53 = vpack.c.bf16 %v20, %v19
  %v54 = vpack.c.bf16 %v22, %v21
  %v55 = vpack.c.bf16 %v24, %v23
  %v56 = vpack.c.bf16 %v26, %v25
  %v57 = vpack.c.bf16 %v28, %v27
  %v58 = vpack.c.bf16 %v30, %v29
  %v59 = vpack.c.bf16 %v32, %v31
  %v60 = vpack.c.bf16 %v34, %v33
  %v61 = vpack.c.bf16 %v36, %v35
  %v62 = vpack.c.bf16 %v38, %v37
  %v63 = vpack.c.bf16 %v40, %v39
  %v64 = vpack.c.bf16 %v42, %v41
  %v65 = vpack.c.bf16 %v44, %v43
  %v66 = vpack.c.bf16 %v46, %v45
  %v67 = vpack.c.bf16 %v48, %v47
  %v68 = vpack.c.bf16 %v50, %v49
  %v69 = vld [vmem:[%s1] sm:$0xff]
  %v70 = vld [vmem:[%s1 + $0x8] sm:$0xff]
  %v71 = vld [vmem:[%s1 + $0x10] sm:$0xff]
  %v72 = vld [vmem:[%s1 + $0x18] sm:$0xff]
  %v73 = vld [vmem:[%s1 + $0x20] sm:$0xff]
  %v74 = vld [vmem:[%s1 + $0x28] sm:$0xff]
  %v75 = vld [vmem:[%s1 + $0x30] sm:$0xff]
  %v76 = vld [vmem:[%s1 + $0x38] sm:$0xff]
  %v77 = vld [vmem:[%s1 + $0x40] sm:$0xff]
  %v78 = vld [vmem:[%s1 + $0x48] sm:$0xff]
  %v79 = vld [vmem:[%s1 + $0x50] sm:$0xff]
  %v80 = vld [vmem:[%s1 + $0x58] sm:$0xff]
  %v81 = vld [vmem:[%s1 + $0x60] sm:$0xff]
  %v82 = vld [vmem:[%s1 + $0x68] sm:$0xff]
  %v83 = vld [vmem:[%s1 + $0x70] sm:$0xff]
  %v84 = vld [vmem:[%s1 + $0x78] sm:$0xff]
  %v85 = vpack.c.bf16 %v70, %v69
  %v86 = vpack.c.bf16 %v72, %v71
  %v87 = vpack.c.bf16 %v74, %v73
  %v88 = vpack.c.bf16 %v76, %v75
  %v89 = vpack.c.bf16 %v78, %v77
  %v90 = vpack.c.bf16 %v80, %v79
  %v91 = vpack.c.bf16 %v82, %v81
  %v92 = vpack.c.bf16 %v84, %v83
  %v93 = vld [vmem:[%s2] sm:$0x1]
  %v95 = vlaneseq
  %v96 = vshrl.u32 %v95, 7
  %v97 = vsub.s32 0, %v96
  %v98 = vrot.slane %v93, %v97
  %100 = vmatprep.subr.bf16.mxu0 0
  %101 = vmatpush1.bf16.msra.mxu0 %v92
  %102 = vmatprep.subr.bf16.mxu0 0
  %103 = vmatpush1.bf16.msra.mxu0 %v91
  %104 = vmatprep.subr.bf16.mxu0 0
  %105 = vmatpush1.bf16.msra.mxu0 %v90
  %106 = vmatprep.subr.bf16.mxu0 0
  %107 = vmatpush1.bf16.msra.mxu0 %v89
  %108 = vmatprep.subr.bf16.mxu0 0
  %109 = vmatpush1.bf16.msra.mxu0 %v88
  %110 = vmatprep.subr.bf16.mxu0 0
  %111 = vmatpush1.bf16.msra.mxu0 %v87
  %112 = vmatprep.subr.bf16.mxu0 0
  %113 = vmatpush1.bf16.msra.mxu0 %v86
  %114 = vmatprep.subr.bf16.mxu0 0
  %115 = vmatpush1.bf16.msra.mxu0 %v85
  %116 = vmatprep.subr.bf16.mxu0 0
  %117 = vmatpush2.bf16.msra.mxu0 0
  %118 = vmatprep.subr.bf16.mxu0 0
  %119 = vmatpush2.bf16.msra.mxu0 0
  %120 = vmatprep.subr.bf16.mxu0 0
  %121 = vmatpush2.bf16.msra.mxu0 0
  %122 = vmatprep.subr.bf16.mxu0 0
  %123 = vmatpush2.bf16.msra.mxu0 0
  %124 = vmatprep.subr.bf16.mxu0 0
  %125 = vmatpush2.bf16.msra.mxu0 0
  %126 = vmatprep.subr.bf16.mxu0 0
  %127 = vmatpush2.bf16.msra.mxu0 0
  %128 = vmatprep.subr.bf16.mxu0 0
  %129 = vmatpush2.bf16.msra.mxu0 0
  %130 = vmatprep.subr.bf16.mxu0 0
  %131 = vmatpush2.bf16.msra.mxu0 0
  %132 = vmatprep.mubr.bf16.mxu0 0
  %133 = vmatmul.mubr.bf16.gmra.mxu0 %v51
  %v134 = vpop.f32.mrf.mxu0
  %v135 = vadd.f32 %v98, %v134
  %v136 = vpop.f32.mrf.mxu0
  %v137 = vpop.f32.mrf.mxu0
  %v138 = vadd.f32 %v98, %v137
  %v139 = vpop.f32.mrf.mxu0
  %140 = vmatprep.mubr.bf16.mxu0 0
  %141 = vmatmul.mubr.bf16.gmra.mxu0 %v52
  %v142 = vpop.f32.mrf.mxu0
  %v143 = vadd.f32 %v98, %v142
  %v144 = vpop.f32.mrf.mxu0
  %v145 = vpop.f32.mrf.mxu0
  %v146 = vadd.f32 %v98, %v145
  %v147 = vpop.f32.mrf.mxu0
  %148 = vmatprep.mubr.bf16.mxu0 0
  %149 = vmatmul.mubr.bf16.gmra.mxu0 %v53
  %v150 = vpop.f32.mrf.mxu0
  %v151 = vadd.f32 %v98, %v150
  %v152 = vpop.f32.mrf.mxu0
  %v153 = vpop.f32.mrf.mxu0
  %v154 = vadd.f32 %v98, %v153
  %v155 = vpop.f32.mrf.mxu0
  %156 = vmatprep.mubr.bf16.mxu0 0
  %157 = vmatmul.mubr.bf16.gmra.mxu0 %v54
  %v158 = vpop.f32.mrf.mxu0
  %v159 = vadd.f32 %v98, %v158
  %v160 = vpop.f32.mrf.mxu0
  %v161 = vpop.f32.mrf.mxu0
  %v162 = vadd.f32 %v98, %v161
  %v163 = vpop.f32.mrf.mxu0
  %164 = vmatprep.mubr.bf16.mxu0 0
  %165 = vmatmul.mubr.bf16.gmra.mxu0 %v55
  %v166 = vpop.f32.mrf.mxu0
  %v167 = vadd.f32 %v98, %v166
  %v168 = vpop.f32.mrf.mxu0
  %v169 = vpop.f32.mrf.mxu0
  %v170 = vadd.f32 %v98, %v169
  %v171 = vpop.f32.mrf.mxu0
  %172 = vmatprep.mubr.bf16.mxu0 0
  %173 = vmatmul.mubr.bf16.gmra.mxu0 %v56
  %v174 = vpop.f32.mrf.mxu0
  %v175 = vadd.f32 %v98, %v174
  %v176 = vpop.f32.mrf.mxu0
  %v177 = vpop.f32.mrf.mxu0
  %v178 = vadd.f32 %v98, %v177
  %v179 = vpop.f32.mrf.mxu0
  %180 = vmatprep.mubr.bf16.mxu0 0
  %181 = vmatmul.mubr.bf16.gmra.mxu0 %v57
  %v182 = vpop.f32.mrf.mxu0
  %v183 = vadd.f32 %v98, %v182
  %v184 = vpop.f32.mrf.mxu0
  %v185 = vpop.f32.mrf.mxu0
  %v186 = vadd.f32 %v98, %v185
  %v187 = vpop.f32.mrf.mxu0
  %188 = vmatprep.mubr.bf16.mxu0 0
  %189 = vmatmul.mubr.bf16.gmra.mxu0 %v58
  %v190 = vpop.f32.mrf.mxu0
  %v191 = vadd.f32 %v98, %v190
  %v192 = vpop.f32.mrf.mxu0
  %v193 = vpop.f32.mrf.mxu0
  %v194 = vadd.f32 %v98, %v193
  %v195 = vpop.f32.mrf.mxu0
  %196 = vmatprep.mubr.bf16.mxu0 0
  %197 = vmatmul.mubr.bf16.gmra.mxu0 %v59
  %v198 = vpop.f32.mrf.mxu0
  %v199 = vadd.f32 %v98, %v198
  %v200 = vpop.f32.mrf.mxu0
  %v201 = vpop.f32.mrf.mxu0
  %v202 = vadd.f32 %v98, %v201
  %v203 = vpop.f32.mrf.mxu0
  %204 = vmatprep.mubr.bf16.mxu0 0
  %205 = vmatmul.mubr.bf16.gmra.mxu0 %v60
  %v206 = vpop.f32.mrf.mxu0
  %v207 = vadd.f32 %v98, %v206
  %v208 = vpop.f32.mrf.mxu0
  %v209 = vpop.f32.mrf.mxu0
  %v210 = vadd.f32 %v98, %v209
  %v211 = vpop.f32.mrf.mxu0
  %212 = vmatprep.mubr.bf16.mxu0 0
  %213 = vmatmul.mubr.bf16.gmra.mxu0 %v61
  %v214 = vpop.f32.mrf.mxu0
  %v215 = vadd.f32 %v98, %v214
  %v216 = vpop.f32.mrf.mxu0
  %v217 = vpop.f32.mrf.mxu0
  %v218 = vadd.f32 %v98, %v217
  %v219 = vpop.f32.mrf.mxu0
  %220 = vmatprep.mubr.bf16.mxu0 0
  %221 = vmatmul.mubr.bf16.gmra.mxu0 %v62
  %v222 = vpop.f32.mrf.mxu0
  %v223 = vadd.f32 %v98, %v222
  %v224 = vpop.f32.mrf.mxu0
  %v225 = vpop.f32.mrf.mxu0
  %v226 = vadd.f32 %v98, %v225
  %v227 = vpop.f32.mrf.mxu0
  %228 = vmatprep.mubr.bf16.mxu0 0
  %229 = vmatmul.mubr.bf16.gmra.mxu0 %v63
  %v230 = vpop.f32.mrf.mxu0
  %v231 = vadd.f32 %v98, %v230
  %v232 = vpop.f32.mrf.mxu0
  %v233 = vpop.f32.mrf.mxu0
  %v234 = vadd.f32 %v98, %v233
  %v235 = vpop.f32.mrf.mxu0
  %236 = vmatprep.mubr.bf16.mxu0 0
  %237 = vmatmul.mubr.bf16.gmra.mxu0 %v64
  %v238 = vpop.f32.mrf.mxu0
  %v239 = vadd.f32 %v98, %v238
  %v240 = vpop.f32.mrf.mxu0
  %v241 = vpop.f32.mrf.mxu0
  %v242 = vadd.f32 %v98, %v241
  %v243 = vpop.f32.mrf.mxu0
  %244 = vmatprep.mubr.bf16.mxu0 0
  %245 = vmatmul.mubr.bf16.gmra.mxu0 %v65
  %v246 = vpop.f32.mrf.mxu0
  %v247 = vadd.f32 %v98, %v246
  %v248 = vpop.f32.mrf.mxu0
  %v249 = vpop.f32.mrf.mxu0
  %v250 = vadd.f32 %v98, %v249
  %v251 = vpop.f32.mrf.mxu0
  %252 = vmatprep.mubr.bf16.mxu0 0
  %253 = vmatmul.mubr.bf16.gmra.mxu0 %v66
  %v254 = vpop.f32.mrf.mxu0
  %v255 = vadd.f32 %v98, %v254
  %v256 = vpop.f32.mrf.mxu0
  %v257 = vpop.f32.mrf.mxu0
  %v258 = vadd.f32 %v98, %v257
  %v259 = vpop.f32.mrf.mxu0
  %260 = vmatprep.mubr.bf16.mxu0 0
  %261 = vmatmul.mubr.bf16.gmra.mxu0 %v67
  %v262 = vpop.f32.mrf.mxu0
  %v263 = vadd.f32 %v98, %v262
  %v264 = vpop.f32.mrf.mxu0
  %v265 = vpop.f32.mrf.mxu0
  %v266 = vadd.f32 %v98, %v265
  %v267 = vpop.f32.mrf.mxu0
  %268 = vmatprep.mubr.bf16.mxu0 0
  %269 = vmatmul.mubr.bf16.gmra.mxu0 %v68
  %v270 = vpop.f32.mrf.mxu0
  %v271 = vadd.f32 %v98, %v270
  %v272 = vpop.f32.mrf.mxu0
  %v273 = vpop.f32.mrf.mxu0
  %v274 = vadd.f32 %v98, %v273
  %v275 = vpop.f32.mrf.mxu0
  %276 = vdwg.mxu0
  %v277 = vmax.f32 %v135, 0.0
  %v278 = vmax.f32 %v138, 0.0
  %v279 = vmax.f32 %v143, 0.0
  %v280 = vmax.f32 %v146, 0.0
  %v281 = vmax.f32 %v151, 0.0
  %v282 = vmax.f32 %v154, 0.0
  %v283 = vmax.f32 %v159, 0.0
  %v284 = vmax.f32 %v162, 0.0
  %v285 = vmax.f32 %v167, 0.0
  %v286 = vmax.f32 %v170, 0.0
  %v287 = vmax.f32 %v175, 0.0
  %v288 = vmax.f32 %v178, 0.0
  %v289 = vmax.f32 %v183, 0.0
  %v290 = vmax.f32 %v186, 0.0
  %v291 = vmax.f32 %v191, 0.0
  %v292 = vmax.f32 %v194, 0.0
  %v293 = vmax.f32 %v199, 0.0
  %v294 = vmax.f32 %v202, 0.0
  %v295 = vmax.f32 %v207, 0.0
  %v296 = vmax.f32 %v210, 0.0
  %v297 = vmax.f32 %v215, 0.0
  %v298 = vmax.f32 %v218, 0.0
  %v299 = vmax.f32 %v223, 0.0
  %v300 = vmax.f32 %v226, 0.0
  %v301 = vmax.f32 %v231, 0.0
  %v302 = vmax.f32 %v234, 0.0
  %v303 = vmax.f32 %v239, 0.0
  %v304 = vmax.f32 %v242, 0.0
  %v305 = vmax.f32 %v247, 0.0
  %v306 = vmax.f32 %v250, 0.0
  %v307 = vmax.f32 %v255, 0.0
  %v308 = vmax.f32 %v258, 0.0
  %v309 = vmax.f32 %v263, 0.0
  %v310 = vmax.f32 %v266, 0.0
  %v311 = vmax.f32 %v271, 0.0
  %v312 = vmax.f32 %v274, 0.0
  %vm313 = vcmask 261120
  %314 = vst.msk [vmem:[%s3] sm:$0xff] %vm313, %v277
  %315 = vst.msk [vmem:[%s3 + $0x8] sm:$0xff] %vm313, %v278
  %316 = vst.msk [vmem:[%s3 + $0x10] sm:$0xff] %vm313, %v279
  %317 = vst.msk [vmem:[%s3 + $0x18] sm:$0xff] %vm313, %v280
  %318 = vst.msk [vmem:[%s3 + $0x20] sm:$0xff] %vm313, %v281
  %319 = vst.msk [vmem:[%s3 + $0x28] sm:$0xff] %vm313, %v282
  %320 = vst.msk [vmem:[%s3 + $0x30] sm:$0xff] %vm313, %v283
  %321 = vst.msk [vmem:[%s3 + $0x38] sm:$0xff] %vm313, %v284
  %322 = vst.msk [vmem:[%s3 + $0x40] sm:$0xff] %vm313, %v285
  %323 = vst.msk [vmem:[%s3 + $0x48] sm:$0xff] %vm313, %v286
  %324 = vst.msk [vmem:[%s3 + $0x50] sm:$0xff] %vm313, %v287
  %325 = vst.msk [vmem:[%s3 + $0x58] sm:$0xff] %vm313, %v288
  %326 = vst.msk [vmem:[%s3 + $0x60] sm:$0xff] %vm313, %v289
  %327 = vst.msk [vmem:[%s3 + $0x68] sm:$0xff] %vm313, %v290
  %328 = vst.msk [vmem:[%s3 + $0x70] sm:$0xff] %vm313, %v291
  %329 = vst.msk [vmem:[%s3 + $0x78] sm:$0xff] %vm313, %v292
  %330 = vst.msk [vmem:[%s3 + $0x80] sm:$0xff] %vm313, %v293
  %331 = vst.msk [vmem:[%s3 + $0x88] sm:$0xff] %vm313, %v294
  %332 = vst.msk [vmem:[%s3 + $0x90] sm:$0xff] %vm313, %v295
  %333 = vst.msk [vmem:[%s3 + $0x98] sm:$0xff] %vm313, %v296
  %334 = vst.msk [vmem:[%s3 + $0xa0] sm:$0xff] %vm313, %v297
  %335 = vst.msk [vmem:[%s3 + $0xa8] sm:$0xff] %vm313, %v298
  %336 = vst.msk [vmem:[%s3 + $0xb0] sm:$0xff] %vm313, %v299
  %337 = vst.msk [vmem:[%s3 + $0xb8] sm:$0xff] %vm313, %v300
  %338 = vst.msk [vmem:[%s3 + $0xc0] sm:$0xff] %vm313, %v301
  %339 = vst.msk [vmem:[%s3 + $0xc8] sm:$0xff] %vm313, %v302
  %340 = vst.msk [vmem:[%s3 + $0xd0] sm:$0xff] %vm313, %v303
  %341 = vst.msk [vmem:[%s3 + $0xd8] sm:$0xff] %vm313, %v304
  %342 = vst.msk [vmem:[%s3 + $0xe0] sm:$0xff] %vm313, %v305
  %343 = vst.msk [vmem:[%s3 + $0xe8] sm:$0xff] %vm313, %v306
  %344 = vst.msk [vmem:[%s3 + $0xf0] sm:$0xff] %vm313, %v307
  %345 = vst.msk [vmem:[%s3 + $0xf8] sm:$0xff] %vm313, %v308
  %346 = vst.msk [vmem:[%s3 + $0x100] sm:$0xff] %vm313, %v309
  %347 = vst.msk [vmem:[%s3 + $0x108] sm:$0xff] %vm313, %v310
  %348 = vst.msk [vmem:[%s3 + $0x110] sm:$0xff] %vm313, %v311
  %349 = vst.msk [vmem:[%s3 + $0x118] sm:$0xff] %vm313, %v312
  // Predicated region
  $region14: #{_lambda_.12} parent=0 // pred_check
    _
  $region15: #{_lambda_.12} parent=0 // pred_check_branch
    %351 = sbr.rel (0) target = $region17
  $region16: #{_lambda_.12} parent=0 // pred_region
    _
  $region17: #{_lambda_.12} parent=0 // pred_fallthru
    _
  // Predicated region
  $region18: #{_lambda_.12} parent=0 // pred_check
    _
  $region19: #{_lambda_.12} parent=0 // pred_check_branch
    %353 = sbr.rel (0) target = $region21
  $region20: #{_lambda_.12} parent=0 // pred_region
    _
  $region21: #{_lambda_.12} parent=0 // pred_fallthru
    _

// kernel: _lambda_.11
$region0: #{_lambda_.11}
  #allocation0 [shape = 'u32[]', space=smem, size = 0x4, offset = 0x4, fixed_abs, tag = 'smem constant byte address 0x4 - core index']
  #allocation1 [shape = 'u32[144,128]{1,0:T(1,128)}', space=vmem, size = 0x12000, scoped, tag = 'internal scratch']
  %s0 = inlined_call_operand.vmem [shape: f32[24,64], index: 0, kind: input, shape index: {}]
  %s1 = inlined_call_operand.vmem [shape: f32[24,32], index: 1, kind: input, shape index: {}]
  %s2 = inlined_call_operand.vmem [shape: f32[24,1], index: 2, kind: input, shape index: {}]
  %s3 = inlined_call_operand.vmem [shape: f32[24,1], index: 3, kind: input, shape index: {}]
  %s4 = inlined_call_operand.vmem [shape: f32[64,32], index: 4, kind: input, shape index: {}]
  %s5 = inlined_call_operand.vmem [shape: f32[1,32], index: 5, kind: input, shape index: {}]
  %s6 = inlined_call_operand.vmem [shape: f32[32,32], index: 6, kind: input, shape index: {}]
  %s7 = inlined_call_operand.vmem [shape: f32[1,32], index: 7, kind: input, shape index: {}]
  %s8 = inlined_call_operand.vmem [shape: f32[24,32], index: 8, kind: output, shape index: {}]
  %s9 = sld [smem:[#allocation0]]
  $region42: #{_lambda_.11} parent=0
    _
  %s11 = ssub.s32 1, %s9
  %s12 = scalar_select 0, %s11, %s9
  // Predicated region
  $region2: #{_lambda_.11} parent=0 // pred_check
    _
  $region3: #{_lambda_.11} parent=0 // pred_check_branch
    %14 = sbr.rel (0) target = $region5
  $region4: #{_lambda_.11} parent=0 // pred_region
    _
  $region5: #{_lambda_.11} parent=0 // pred_fallthru
    _
  // Predicated region
  $region6: #{_lambda_.11} parent=0 // pred_check
    _
  $region7: #{_lambda_.11} parent=0 // pred_check_branch
    %16 = sbr.rel (0) target = $region9
  $region8: #{_lambda_.11} parent=0 // pred_region
    _
  $region9: #{_lambda_.11} parent=0 // pred_fallthru
    _
  // Predicated region
  $region10: #{_lambda_.11} parent=0 // pred_check
    _
  $region11: #{_lambda_.11} parent=0 // pred_check_branch
    %18 = sbr.rel (0) target = $region13
  $region12: #{_lambda_.11} parent=0 // pred_region
    _
  $region13: #{_lambda_.11} parent=0 // pred_fallthru
    _
  // Predicated region
  $region14: #{_lambda_.11} parent=0 // pred_check
    _
  $region15: #{_lambda_.11} parent=0 // pred_check_branch
    %20 = sbr.rel (0) target = $region17
  $region16: #{_lambda_.11} parent=0 // pred_region
    _
  $region17: #{_lambda_.11} parent=0 // pred_fallthru
    _
  // Predicated region
  $region18: #{_lambda_.11} parent=0 // pred_check
    _
  $region19: #{_lambda_.11} parent=0 // pred_check_branch
    %22 = sbr.rel (0) target = $region21
  $region20: #{_lambda_.11} parent=0 // pred_region
    _
  $region21: #{_lambda_.11} parent=0 // pred_fallthru
    _
  // Predicated region
  $region22: #{_lambda_.11} parent=0 // pred_check
    _
  $region23: #{_lambda_.11} parent=0 // pred_check_branch
    %24 = sbr.rel (0) target = $region25
  $region24: #{_lambda_.11} parent=0 // pred_region
    _
  $region25: #{_lambda_.11} parent=0 // pred_fallthru
    _
  // Predicated region
  $region26: #{_lambda_.11} parent=0 // pred_check
    _
  $region27: #{_lambda_.11} parent=0 // pred_check_branch
    %26 = sbr.rel (0) target = $region29
  $region28: #{_lambda_.11} parent=0 // pred_region
    _
  $region29: #{_lambda_.11} parent=0 // pred_fallthru
    _
  // Predicated region
  $region30: #{_lambda_.11} parent=0 // pred_check
    _
  $region31: #{_lambda_.11} parent=0 // pred_check_branch
    %28 = sbr.rel (0) target = $region33
  $region32: #{_lambda_.11} parent=0 // pred_region
    _
  $region33: #{_lambda_.11} parent=0 // pred_fallthru
    _
  %v30 = vld [vmem:[%s0] sm:$0xff]
  %v31 = vld [vmem:[%s0 + $0x8] sm:$0xff]
  %v32 = vld [vmem:[%s0 + $0x10] sm:$0xff]
  %v33 = vpack.c.bf16 %v31, %v30
  %v34 = vpack.c.bf16 %v32, %v32
  %v35 = vld [vmem:[%s1] sm:$0xff]
  %v36 = vld [vmem:[%s1 + $0x8] sm:$0xff]
  %v37 = vld [vmem:[%s1 + $0x10] sm:$0xff]
  %v38 = vpack.c.bf16 %v36, %v35
  %v39 = vpack.c.bf16 %v37, %v37
  %v40 = vld [vmem:[%s4] sm:$0xff]
  %v41 = vld [vmem:[%s4 + $0x8] sm:$0xff]
  %v42 = vld [vmem:[%s4 + $0x10] sm:$0xff]
  %v43 = vld [vmem:[%s4 + $0x18] sm:$0xff]
  %v44 = vld [vmem:[%s4 + $0x20] sm:$0xff]
  %v45 = vld [vmem:[%s4 + $0x28] sm:$0xff]
  %v46 = vld [vmem:[%s4 + $0x30] sm:$0xff]
  %v47 = vld [vmem:[%s4 + $0x38] sm:$0xff]
  %v48 = vpack.c.bf16 %v41, %v40
  %v49 = vpack.c.bf16 %v43, %v42
  %v50 = vpack.c.bf16 %v45, %v44
  %v51 = vpack.c.bf16 %v47, %v46
  %v52 = vld [vmem:[%s5] sm:$0x1]
  %v54 = vlaneseq
  %v55 = vshrl.u32 %v54, 7
  %v56 = vsub.s32 0, %v55
  %v57 = vrot.slane %v52, %v56
  %vm59 = vcmask 523264
  %v61 = vsel %vm59, %v33, 0
  %v64 = vsel %vm59, %v34, 0
  %66 = vmatprep.subr.bf16.mxu0 0
  %67 = vmatpush1.bf16.msra.mxu0 0
  %68 = vmatprep.subr.bf16.mxu0 0
  %69 = vmatpush1.bf16.msra.mxu0 0
  %70 = vmatprep.subr.bf16.mxu0 0
  %71 = vmatpush1.bf16.msra.mxu0 0
  %72 = vmatprep.subr.bf16.mxu0 0
  %73 = vmatpush1.bf16.msra.mxu0 0
  %74 = vmatprep.subr.bf16.mxu0 0
  %75 = vmatpush1.bf16.msra.mxu0 %v51
  %76 = vmatprep.subr.bf16.mxu0 0
  %77 = vmatpush1.bf16.msra.mxu0 %v50
  %78 = vmatprep.subr.bf16.mxu0 0
  %79 = vmatpush1.bf16.msra.mxu0 %v49
  %80 = vmatprep.subr.bf16.mxu0 0
  %81 = vmatpush1.bf16.msra.mxu0 %v48
  %82 = vmatprep.subr.bf16.mxu0 0
  %83 = vmatpush2.bf16.msra.mxu0 0
  %84 = vmatprep.subr.bf16.mxu0 0
  %85 = vmatpush2.bf16.msra.mxu0 0
  %86 = vmatprep.subr.bf16.mxu0 0
  %87 = vmatpush2.bf16.msra.mxu0 0
  %88 = vmatprep.subr.bf16.mxu0 0
  %89 = vmatpush2.bf16.msra.mxu0 0
  %90 = vmatprep.subr.bf16.mxu0 0
  %91 = vmatpush2.bf16.msra.mxu0 0
  %92 = vmatprep.subr.bf16.mxu0 0
  %93 = vmatpush2.bf16.msra.mxu0 0
  %94 = vmatprep.subr.bf16.mxu0 0
  %95 = vmatpush2.bf16.msra.mxu0 0
  %96 = vmatprep.subr.bf16.mxu0 0
  %97 = vmatpush2.bf16.msra.mxu0 0
  %98 = vmatprep.mubr.bf16.mxu0 0
  %99 = vmatmul.mubr.bf16.gmra.mxu0 %v61
  %v100 = vpop.f32.mrf.mxu0
  %v101 = vadd.f32 %v57, %v100
  %v102 = vpop.f32.mrf.mxu0
  %v103 = vpop.f32.mrf.mxu0
  %v104 = vadd.f32 %v57, %v103
  %v105 = vpop.f32.mrf.mxu0
  %106 = vmatprep.mubr.bf16.mxu0 0
  %107 = vmatmul.mubr.bf16.gmra.mxu0 %v64
  %v108 = vpop.f32.mrf.mxu0
  %v109 = vadd.f32 %v57, %v108
  %v110 = vpop.f32.mrf.mxu0
  %v111 = vpop.f32.mrf.mxu0
  %v112 = vpop.f32.mrf.mxu0
  %113 = vdwg.mxu0
  %v114 = vld [vmem:[%s6] sm:$0xff]
  %v115 = vld [vmem:[%s6 + $0x8] sm:$0xff]
  %v116 = vld [vmem:[%s6 + $0x10] sm:$0xff]
  %v117 = vld [vmem:[%s6 + $0x18] sm:$0xff]
  %v118 = vpack.c.bf16 %v115, %v114
  %v119 = vpack.c.bf16 %v117, %v116
  %v120 = vld [vmem:[%s7] sm:$0x1]
  %v122 = vlaneseq
  %v123 = vshrl.u32 %v122, 7
  %v124 = vsub.s32 0, %v123
  %v125 = vrot.slane %v120, %v124
  %vm127 = vcmask 261120
  %v129 = vsel %vm127, %v38, 0
  %v132 = vsel %vm127, %v39, 0
  %134 = vmatprep.subr.bf16.mxu0 0
  %135 = vmatpush1.bf16.msra.mxu0 0
  %136 = vmatprep.subr.bf16.mxu0 0
  %137 = vmatpush1.bf16.msra.mxu0 0
  %138 = vmatprep.subr.bf16.mxu0 0
  %139 = vmatpush1.bf16.msra.mxu0 0
  %140 = vmatprep.subr.bf16.mxu0 0
  %141 = vmatpush1.bf16.msra.mxu0 0
  %142 = vmatprep.subr.bf16.mxu0 0
  %143 = vmatpush1.bf16.msra.mxu0 0
  %144 = vmatprep.subr.bf16.mxu0 0
  %145 = vmatpush1.bf16.msra.mxu0 0
  %146 = vmatprep.subr.bf16.mxu0 0
  %147 = vmatpush1.bf16.msra.mxu0 %v119
  %148 = vmatprep.subr.bf16.mxu0 0
  %149 = vmatpush1.bf16.msra.mxu0 %v118
  %150 = vmatprep.subr.bf16.mxu0 0
  %151 = vmatpush2.bf16.msra.mxu0 0
  %152 = vmatprep.subr.bf16.mxu0 0
  %153 = vmatpush2.bf16.msra.mxu0 0
  %154 = vmatprep.subr.bf16.mxu0 0
  %155 = vmatpush2.bf16.msra.mxu0 0
  %156 = vmatprep.subr.bf16.mxu0 0
  %157 = vmatpush2.bf16.msra.mxu0 0
  %158 = vmatprep.subr.bf16.mxu0 0
  %159 = vmatpush2.bf16.msra.mxu0 0
  %160 = vmatprep.subr.bf16.mxu0 0
  %161 = vmatpush2.bf16.msra.mxu0 0
  %162 = vmatprep.subr.bf16.mxu0 0
  %163 = vmatpush2.bf16.msra.mxu0 0
  %164 = vmatprep.subr.bf16.mxu0 0
  %165 = vmatpush2.bf16.msra.mxu0 0
  %166 = vmatprep.mubr.bf16.mxu0 0
  %167 = vmatmul.mubr.bf16.gmra.mxu0 %v129
  %v168 = vpop.f32.mrf.mxu0
  %v169 = vadd.f32 %v125, %v168
  %v170 = vpop.f32.mrf.mxu0
  %v171 = vpop.f32.mrf.mxu0
  %v172 = vadd.f32 %v125, %v171
  %v173 = vpop.f32.mrf.mxu0
  %174 = vmatprep.mubr.bf16.mxu0 0
  %175 = vmatmul.mubr.bf16.gmra.mxu0 %v132
  %v176 = vpop.f32.mrf.mxu0
  %v177 = vadd.f32 %v125, %v176
  %v178 = vpop.f32.mrf.mxu0
  %v179 = vpop.f32.mrf.mxu0
  %v180 = vpop.f32.mrf.mxu0
  %181 = vdwg.mxu0
  %v182 = vld [vmem:[%s2] sm:$0xff]
  %v183 = vld [vmem:[%s2 + $0x8] sm:$0xff]
  %v184 = vld [vmem:[%s2 + $0x10] sm:$0xff]
  %186 = vset.pattern.permute.xlu0 0
  %187 = vperm.xlu0 %186, %v182
  %v188 = vpop.permute.xlu0 %187
  %191 = vset.pattern.permute.xlu0 0
  %192 = vperm.xlu0 %191, %v183
  %v193 = vpop.permute.xlu0 %192
  %196 = vset.pattern.permute.xlu0 0
  %197 = vperm.xlu0 %196, %v184
  %v198 = vpop.permute.xlu0 %197
  %v200 = vmul.f32 %v101, %v188
  %v201 = vmul.f32 %v104, %v193
  %v202 = vmul.f32 %v109, %v198
  %v203 = vld [vmem:[%s3] sm:$0xff]
  %v204 = vld [vmem:[%s3 + $0x8] sm:$0xff]
  %v205 = vld [vmem:[%s3 + $0x10] sm:$0xff]
  %207 = vset.pattern.permute.xlu0 0
  %208 = vperm.xlu0 %207, %v203
  %v209 = vpop.permute.xlu0 %208
  %212 = vset.pattern.permute.xlu0 0
  %213 = vperm.xlu0 %212, %v204
  %v214 = vpop.permute.xlu0 %213
  %217 = vset.pattern.permute.xlu0 0
  %218 = vperm.xlu0 %217, %v205
  %v219 = vpop.permute.xlu0 %218
  %v221 = vmul.f32 %v169, %v209
  %v222 = vmul.f32 %v172, %v214
  %v223 = vmul.f32 %v177, %v219
  %v224 = vadd.f32 %v200, %v221
  %v225 = vadd.f32 %v201, %v222
  %v226 = vadd.f32 %v202, %v223
  %227 = vst.msk [vmem:[%s8] sm:$0xff] %vm127, %v224
  %228 = vst.msk [vmem:[%s8 + $0x8] sm:$0xff] %vm127, %v225
  %229 = vst.msk [vmem:[%s8 + $0x10] sm:$0xff] %vm127, %v226
  // Predicated region
  $region34: #{_lambda_.11} parent=0 // pred_check
    _
  $region35: #{_lambda_.11} parent=0 // pred_check_branch
    %231 = sbr.rel (0) target = $region37
  $region36: #{_lambda_.11} parent=0 // pred_region
    _
  $region37: #{_lambda_.11} parent=0 // pred_fallthru
    _
  // Predicated region
  $region38: #{_lambda_.11} parent=0 // pred_check
    _
  $region39: #{_lambda_.11} parent=0 // pred_check_branch
    %233 = sbr.rel (0) target = $region41
  $region40: #{_lambda_.11} parent=0 // pred_region
    _
  $region41: #{_lambda_.11} parent=0 // pred_fallthru
    _

// kernel: _lambda_.13
$region0: #{_lambda_.13}
  #allocation0 [shape = 'u32[]', space=smem, size = 0x4, offset = 0x4, fixed_abs, tag = 'smem constant byte address 0x4 - core index']
  #allocation1 [shape = 'u32[144,128]{1,0:T(1,128)}', space=vmem, size = 0x12000, scoped, tag = 'internal scratch']
  %s0 = inlined_call_operand.vmem [shape: f32[24,32], index: 0, kind: input, shape index: {}]
  %s1 = inlined_call_operand.vmem [shape: f32[32,128], index: 1, kind: input, shape index: {}]
  %s2 = inlined_call_operand.vmem [shape: f32[1,128], index: 2, kind: input, shape index: {}]
  %s3 = inlined_call_operand.vmem [shape: f32[24,128], index: 3, kind: output, shape index: {}]
  %s4 = sld [smem:[#allocation0]]
  $region22: #{_lambda_.13} parent=0
    _
  %s6 = ssub.s32 1, %s4
  %s7 = scalar_select 0, %s6, %s4
  // Predicated region
  $region2: #{_lambda_.13} parent=0 // pred_check
    _
  $region3: #{_lambda_.13} parent=0 // pred_check_branch
    %9 = sbr.rel (0) target = $region5
  $region4: #{_lambda_.13} parent=0 // pred_region
    _
  $region5: #{_lambda_.13} parent=0 // pred_fallthru
    _
  // Predicated region
  $region6: #{_lambda_.13} parent=0 // pred_check
    _
  $region7: #{_lambda_.13} parent=0 // pred_check_branch
    %11 = sbr.rel (0) target = $region9
  $region8: #{_lambda_.13} parent=0 // pred_region
    _
  $region9: #{_lambda_.13} parent=0 // pred_fallthru
    _
  // Predicated region
  $region10: #{_lambda_.13} parent=0 // pred_check
    _
  $region11: #{_lambda_.13} parent=0 // pred_check_branch
    %13 = sbr.rel (0) target = $region13
  $region12: #{_lambda_.13} parent=0 // pred_region
    _
  $region13: #{_lambda_.13} parent=0 // pred_fallthru
    _
  %v15 = vld [vmem:[%s0] sm:$0xff]
  %v16 = vld [vmem:[%s0 + $0x8] sm:$0xff]
  %v17 = vld [vmem:[%s0 + $0x10] sm:$0xff]
  %v18 = vpack.c.bf16 %v16, %v15
  %v19 = vpack.c.bf16 %v17, %v17
  %v20 = vld [vmem:[%s1] sm:$0xff]
  %v21 = vld [vmem:[%s1 + $0x8] sm:$0xff]
  %v22 = vld [vmem:[%s1 + $0x10] sm:$0xff]
  %v23 = vld [vmem:[%s1 + $0x18] sm:$0xff]
  %v24 = vpack.c.bf16 %v21, %v20
  %v25 = vpack.c.bf16 %v23, %v22
  %v26 = vld [vmem:[%s2] sm:$0x1]
  %v28 = vlaneseq
  %v29 = vshrl.u32 %v28, 7
  %v30 = vsub.s32 0, %v29
  %v31 = vrot.slane %v26, %v30
  %vm33 = vcmask 261120
  %v35 = vsel %vm33, %v18, 0
  %v38 = vsel %vm33, %v19, 0
  %40 = vmatprep.subr.bf16.mxu0 0
  %41 = vmatpush1.bf16.msra.mxu0 0
  %42 = vmatprep.subr.bf16.mxu0 0
  %43 = vmatpush1.bf16.msra.mxu0 0
  %44 = vmatprep.subr.bf16.mxu0 0
  %45 = vmatpush1.bf16.msra.mxu0 0
  %46 = vmatprep.subr.bf16.mxu0 0
  %47 = vmatpush1.bf16.msra.mxu0 0
  %48 = vmatprep.subr.bf16.mxu0 0
  %49 = vmatpush1.bf16.msra.mxu0 0
  %50 = vmatprep.subr.bf16.mxu0 0
  %51 = vmatpush1.bf16.msra.mxu0 0
  %52 = vmatprep.subr.bf16.mxu0 0
  %53 = vmatpush1.bf16.msra.mxu0 %v25
  %54 = vmatprep.subr.bf16.mxu0 0
  %55 = vmatpush1.bf16.msra.mxu0 %v24
  %56 = vmatprep.subr.bf16.mxu0 0
  %57 = vmatpush2.bf16.msra.mxu0 0
  %58 = vmatprep.subr.bf16.mxu0 0
  %59 = vmatpush2.bf16.msra.mxu0 0
  %60 = vmatprep.subr.bf16.mxu0 0
  %61 = vmatpush2.bf16.msra.mxu0 0
  %62 = vmatprep.subr.bf16.mxu0 0
  %63 = vmatpush2.bf16.msra.mxu0 0
  %64 = vmatprep.subr.bf16.mxu0 0
  %65 = vmatpush2.bf16.msra.mxu0 0
  %66 = vmatprep.subr.bf16.mxu0 0
  %67 = vmatpush2.bf16.msra.mxu0 0
  %68 = vmatprep.subr.bf16.mxu0 0
  %69 = vmatpush2.bf16.msra.mxu0 0
  %70 = vmatprep.subr.bf16.mxu0 0
  %71 = vmatpush2.bf16.msra.mxu0 0
  %72 = vmatprep.mubr.bf16.mxu0 0
  %73 = vmatmul.mubr.bf16.gmra.mxu0 %v35
  %v74 = vpop.f32.mrf.mxu0
  %v75 = vadd.f32 %v31, %v74
  %v76 = vpop.f32.mrf.mxu0
  %v77 = vpop.f32.mrf.mxu0
  %v78 = vadd.f32 %v31, %v77
  %v79 = vpop.f32.mrf.mxu0
  %80 = vmatprep.mubr.bf16.mxu0 0
  %81 = vmatmul.mubr.bf16.gmra.mxu0 %v38
  %v82 = vpop.f32.mrf.mxu0
  %v83 = vadd.f32 %v31, %v82
  %v84 = vpop.f32.mrf.mxu0
  %v85 = vpop.f32.mrf.mxu0
  %v86 = vpop.f32.mrf.mxu0
  %87 = vdwg.mxu0
  %88 = vst [vmem:[%s3] sm:$0xff] %v75
  %89 = vst [vmem:[%s3 + $0x8] sm:$0xff] %v78
  %90 = vst [vmem:[%s3 + $0x10] sm:$0xff] %v83
  // Predicated region
  $region14: #{_lambda_.13} parent=0 // pred_check
    _
  $region15: #{_lambda_.13} parent=0 // pred_check_branch
    %92 = sbr.rel (0) target = $region17
  $region16: #{_lambda_.13} parent=0 // pred_region
    _
  $region17: #{_lambda_.13} parent=0 // pred_fallthru
    _
  // Predicated region
  $region18: #{_lambda_.13} parent=0 // pred_check
    _
  $region19: #{_lambda_.13} parent=0 // pred_check_branch
    %94 = sbr.rel (0) target = $region21
  $region20: #{_lambda_.13} parent=0 // pred_region
    _
  $region21: #{_lambda_.13} parent=0 // pred_fallthru
    _

// kernel: _lambda_.15
$region0: #{_lambda_.15}
  #allocation0 [shape = 'u32[]', space=smem, size = 0x4, offset = 0x4, fixed_abs, tag = 'smem constant byte address 0x4 - core index']
  #allocation1 [shape = 'u32[144,128]{1,0:T(1,128)}', space=vmem, size = 0x12000, scoped, tag = 'internal scratch']
  %s0 = inlined_call_operand.vmem [shape: f32[24,32], index: 0, kind: input, shape index: {}]
  %s1 = inlined_call_operand.vmem [shape: f32[24,32], index: 1, kind: input, shape index: {}]
  %s2 = inlined_call_operand.vmem [shape: f32[32,32], index: 2, kind: input, shape index: {}]
  %s3 = inlined_call_operand.vmem [shape: f32[1,32], index: 3, kind: input, shape index: {}]
  %s4 = inlined_call_operand.vmem [shape: f32[1,32], index: 4, kind: input, shape index: {}]
  %s5 = inlined_call_operand.vmem [shape: f32[1,32], index: 5, kind: input, shape index: {}]
  %s6 = inlined_call_operand.vmem [shape: f32[24,32], index: 6, kind: output, shape index: {}]
  %s7 = sld [smem:[#allocation0]]
  $region34: #{_lambda_.15} parent=0
    _
  %s9 = ssub.s32 1, %s7
  %s10 = scalar_select 0, %s9, %s7
  // Predicated region
  $region2: #{_lambda_.15} parent=0 // pred_check
    _
  $region3: #{_lambda_.15} parent=0 // pred_check_branch
    %12 = sbr.rel (0) target = $region5
  $region4: #{_lambda_.15} parent=0 // pred_region
    _
  $region5: #{_lambda_.15} parent=0 // pred_fallthru
    _
  // Predicated region
  $region6: #{_lambda_.15} parent=0 // pred_check
    _
  $region7: #{_lambda_.15} parent=0 // pred_check_branch
    %14 = sbr.rel (0) target = $region9
  $region8: #{_lambda_.15} parent=0 // pred_region
    _
  $region9: #{_lambda_.15} parent=0 // pred_fallthru
    _
  // Predicated region
  $region10: #{_lambda_.15} parent=0 // pred_check
    _
  $region11: #{_lambda_.15} parent=0 // pred_check_branch
    %16 = sbr.rel (0) target = $region13
  $region12: #{_lambda_.15} parent=0 // pred_region
    _
  $region13: #{_lambda_.15} parent=0 // pred_fallthru
    _
  // Predicated region
  $region14: #{_lambda_.15} parent=0 // pred_check
    _
  $region15: #{_lambda_.15} parent=0 // pred_check_branch
    %18 = sbr.rel (0) target = $region17
  $region16: #{_lambda_.15} parent=0 // pred_region
    _
  $region17: #{_lambda_.15} parent=0 // pred_fallthru
    _
  // Predicated region
  $region18: #{_lambda_.15} parent=0 // pred_check
    _
  $region19: #{_lambda_.15} parent=0 // pred_check_branch
    %20 = sbr.rel (0) target = $region21
  $region20: #{_lambda_.15} parent=0 // pred_region
    _
  $region21: #{_lambda_.15} parent=0 // pred_fallthru
    _
  // Predicated region
  $region22: #{_lambda_.15} parent=0 // pred_check
    _
  $region23: #{_lambda_.15} parent=0 // pred_check_branch
    %22 = sbr.rel (0) target = $region25
  $region24: #{_lambda_.15} parent=0 // pred_region
    _
  $region25: #{_lambda_.15} parent=0 // pred_fallthru
    _
  %v24 = vld [vmem:[%s0] sm:$0xff]
  %v25 = vld [vmem:[%s0 + $0x8] sm:$0xff]
  %v26 = vld [vmem:[%s0 + $0x10] sm:$0xff]
  %v27 = vpack.c.bf16 %v25, %v24
  %v28 = vpack.c.bf16 %v26, %v26
  %v29 = vld [vmem:[%s2] sm:$0xff]
  %v30 = vld [vmem:[%s2 + $0x8] sm:$0xff]
  %v31 = vld [vmem:[%s2 + $0x10] sm:$0xff]
  %v32 = vld [vmem:[%s2 + $0x18] sm:$0xff]
  %v33 = vpack.c.bf16 %v30, %v29
  %v34 = vpack.c.bf16 %v32, %v31
  %v35 = vld [vmem:[%s3] sm:$0x1]
  %v37 = vlaneseq
  %v38 = vshrl.u32 %v37, 7
  %v39 = vsub.s32 0, %v38
  %v40 = vrot.slane %v35, %v39
  %vm42 = vcmask 261120
  %v44 = vsel %vm42, %v27, 0
  %v47 = vsel %vm42, %v28, 0
  %49 = vmatprep.subr.bf16.mxu0 0
  %50 = vmatpush1.bf16.msra.mxu0 0
  %51 = vmatprep.subr.bf16.mxu0 0
  %52 = vmatpush1.bf16.msra.mxu0 0
  %53 = vmatprep.subr.bf16.mxu0 0
  %54 = vmatpush1.bf16.msra.mxu0 0
  %55 = vmatprep.subr.bf16.mxu0 0
  %56 = vmatpush1.bf16.msra.mxu0 0
  %57 = vmatprep.subr.bf16.mxu0 0
  %58 = vmatpush1.bf16.msra.mxu0 0
  %59 = vmatprep.subr.bf16.mxu0 0
  %60 = vmatpush1.bf16.msra.mxu0 0
  %61 = vmatprep.subr.bf16.mxu0 0
  %62 = vmatpush1.bf16.msra.mxu0 %v34
  %63 = vmatprep.subr.bf16.mxu0 0
  %64 = vmatpush1.bf16.msra.mxu0 %v33
  %65 = vmatprep.subr.bf16.mxu0 0
  %66 = vmatpush2.bf16.msra.mxu0 0
  %67 = vmatprep.subr.bf16.mxu0 0
  %68 = vmatpush2.bf16.msra.mxu0 0
  %69 = vmatprep.subr.bf16.mxu0 0
  %70 = vmatpush2.bf16.msra.mxu0 0
  %71 = vmatprep.subr.bf16.mxu0 0
  %72 = vmatpush2.bf16.msra.mxu0 0
  %73 = vmatprep.subr.bf16.mxu0 0
  %74 = vmatpush2.bf16.msra.mxu0 0
  %75 = vmatprep.subr.bf16.mxu0 0
  %76 = vmatpush2.bf16.msra.mxu0 0
  %77 = vmatprep.subr.bf16.mxu0 0
  %78 = vmatpush2.bf16.msra.mxu0 0
  %79 = vmatprep.subr.bf16.mxu0 0
  %80 = vmatpush2.bf16.msra.mxu0 0
  %81 = vmatprep.mubr.bf16.mxu0 0
  %82 = vmatmul.mubr.bf16.gmra.mxu0 %v44
  %v83 = vpop.f32.mrf.mxu0
  %v84 = vadd.f32 %v40, %v83
  %v85 = vpop.f32.mrf.mxu0
  %v86 = vpop.f32.mrf.mxu0
  %v87 = vadd.f32 %v40, %v86
  %v88 = vpop.f32.mrf.mxu0
  %89 = vmatprep.mubr.bf16.mxu0 0
  %90 = vmatmul.mubr.bf16.gmra.mxu0 %v47
  %v91 = vpop.f32.mrf.mxu0
  %v92 = vadd.f32 %v40, %v91
  %v93 = vpop.f32.mrf.mxu0
  %v94 = vpop.f32.mrf.mxu0
  %v95 = vpop.f32.mrf.mxu0
  %96 = vdwg.mxu0
  %v97 = vld [vmem:[%s1] sm:$0xff]
  %v98 = vld [vmem:[%s1 + $0x8] sm:$0xff]
  %v99 = vld [vmem:[%s1 + $0x10] sm:$0xff]
  %v100 = vadd.f32 %v84, %v97
  %v101 = vadd.f32 %v87, %v98
  %v102 = vadd.f32 %v92, %v99
  %v103 = vsel %vm42, %v100, 0.0
  %104 = vadd.xlane.f32.xlu0 %v103
  %v105 = vpop.xlane.xlu0 %104
  %v106 = vsel %vm42, %v101, 0.0
  %107 = vadd.xlane.f32.xlu0 %v106
  %v108 = vpop.xlane.xlu0 %107
  %v109 = vsel %vm42, %v102, 0.0
  %110 = vadd.xlane.f32.xlu0 %v109
  %v111 = vpop.xlane.xlu0 %110
  %v112 = vrcp.pop 32.0
  %v113 = vmul.f32 %v105, %v112
  %v114 = vmul.f32 %v108, %v112
  %v115 = vmul.f32 %v111, %v112
  %v116 = vsub.f32 %v100, %v113
  %v117 = vsub.f32 %v101, %v114
  %v118 = vsub.f32 %v102, %v115
  %v119 = vmul.f32 %v116, %v116
  %v120 = vmul.f32 %v117, %v117
  %v121 = vmul.f32 %v118, %v118
  %v122 = vsel %vm42, %v119, 0.0
  %123 = vadd.xlane.f32.xlu0 %v122
  %v124 = vpop.xlane.xlu0 %123
  %v125 = vsel %vm42, %v120, 0.0
  %126 = vadd.xlane.f32.xlu0 %v125
  %v127 = vpop.xlane.xlu0 %126
  %v128 = vsel %vm42, %v121, 0.0
  %129 = vadd.xlane.f32.xlu0 %v128
  %v130 = vpop.xlane.xlu0 %129
  %v131 = vmul.f32 %v124, %v112
  %v132 = vmul.f32 %v127, %v112
  %v133 = vmul.f32 %v130, %v112
  %v134 = vadd.f32 %v131, 1e-05
  %v135 = vadd.f32 %v132, 1e-05
  %v136 = vadd.f32 %v133, 1e-05
  %v137 = vrsqrt.pop %v134
  %v138 = vrsqrt.pop %v135
  %v139 = vrsqrt.pop %v136
  %v140 = vmul.f32 %v116, %v137
  %v141 = vmul.f32 %v117, %v138
  %v142 = vmul.f32 %v118, %v139
  %v143 = vld [vmem:[%s4] sm:$0x1]
  %v145 = vlaneseq
  %v146 = vshrl.u32 %v145, 7
  %v147 = vsub.s32 0, %v146
  %v148 = vrot.slane %v143, %v147
  %v150 = vmul.f32 %v140, %v148
  %v151 = vmul.f32 %v141, %v148
  %v152 = vmul.f32 %v142, %v148
  %v153 = vld [vmem:[%s5] sm:$0x1]
  %v155 = vlaneseq
  %v156 = vshrl.u32 %v155, 7
  %v157 = vsub.s32 0, %v156
  %v158 = vrot.slane %v153, %v157
  %v160 = vadd.f32 %v150, %v158
  %v161 = vadd.f32 %v151, %v158
  %v162 = vadd.f32 %v152, %v158
  %163 = vst.msk [vmem:[%s6] sm:$0xff] %vm42, %v160
  %164 = vst.msk [vmem:[%s6 + $0x8] sm:$0xff] %vm42, %v161
  %165 = vst.msk [vmem:[%s6 + $0x10] sm:$0xff] %vm42, %v162
  // Predicated region
  $region26: #{_lambda_.15} parent=0 // pred_check
    _
  $region27: #{_lambda_.15} parent=0 // pred_check_branch
    %167 = sbr.rel (0) target = $region29
  $region28: #{_lambda_.15} parent=0 // pred_region
    _
  $region29: #{_lambda_.15} parent=0 // pred_fallthru
    _
  // Predicated region
  $region30: #{_lambda_.15} parent=0 // pred_check
    _
  $region31: #{_lambda_.15} parent=0 // pred_check_branch
    %169 = sbr.rel (0) target = $region33
  $region32: #{_lambda_.15} parent=0 // pred_region
    _
  $region33: #{_lambda_.15} parent=0 // pred_fallthru
    _

// kernel: _lambda_.21
$region0: #{_lambda_.21}
  #allocation0 [shape = 'u32[]', space=smem, size = 0x4, offset = 0x4, fixed_abs, tag = 'smem constant byte address 0x4 - core index']
  #allocation1 [shape = 'u32[144,128]{1,0:T(1,128)}', space=vmem, size = 0x12000, scoped, tag = 'internal scratch']
  %s0 = inlined_call_operand.vmem [shape: f32[16,32], index: 0, kind: input, shape index: {}]
  %s1 = inlined_call_operand.vmem [shape: f32[32,128], index: 1, kind: input, shape index: {}]
  %s2 = inlined_call_operand.vmem [shape: f32[1,128], index: 2, kind: input, shape index: {}]
  %s3 = inlined_call_operand.vmem [shape: f32[16,128], index: 3, kind: output, shape index: {}]
  %s4 = sld [smem:[#allocation0]]
  $region22: #{_lambda_.21} parent=0
    _
  %s6 = ssub.s32 1, %s4
  %s7 = scalar_select 0, %s6, %s4
  // Predicated region
  $region2: #{_lambda_.21} parent=0 // pred_check
    _
  $region3: #{_lambda_.21} parent=0 // pred_check_branch
    %9 = sbr.rel (0) target = $region5
  $region4: #{_lambda_.21} parent=0 // pred_region
    _
  $region5: #{_lambda_.21} parent=0 // pred_fallthru
    _
  // Predicated region
  $region6: #{_lambda_.21} parent=0 // pred_check
    _
  $region7: #{_lambda_.21} parent=0 // pred_check_branch
    %11 = sbr.rel (0) target = $region9
  $region8: #{_lambda_.21} parent=0 // pred_region
    _
  $region9: #{_lambda_.21} parent=0 // pred_fallthru
    _
  // Predicated region
  $region10: #{_lambda_.21} parent=0 // pred_check
    _
  $region11: #{_lambda_.21} parent=0 // pred_check_branch
    %13 = sbr.rel (0) target = $region13
  $region12: #{_lambda_.21} parent=0 // pred_region
    _
  $region13: #{_lambda_.21} parent=0 // pred_fallthru
    _
  %v15 = vld [vmem:[%s0] sm:$0xff]
  %v16 = vld [vmem:[%s0 + $0x8] sm:$0xff]
  %v17 = vpack.c.bf16 %v16, %v15
  %v18 = vld [vmem:[%s1] sm:$0xff]
  %v19 = vld [vmem:[%s1 + $0x8] sm:$0xff]
  %v20 = vld [vmem:[%s1 + $0x10] sm:$0xff]
  %v21 = vld [vmem:[%s1 + $0x18] sm:$0xff]
  %v22 = vpack.c.bf16 %v19, %v18
  %v23 = vpack.c.bf16 %v21, %v20
  %v24 = vld [vmem:[%s2] sm:$0x1]
  %v26 = vlaneseq
  %v27 = vshrl.u32 %v26, 7
  %v28 = vsub.s32 0, %v27
  %v29 = vrot.slane %v24, %v28
  %vm31 = vcmask 261120
  %v33 = vsel %vm31, %v17, 0
  %35 = vmatprep.subr.bf16.mxu0 0
  %36 = vmatpush1.bf16.msra.mxu0 0
  %37 = vmatprep.subr.bf16.mxu0 0
  %38 = vmatpush1.bf16.msra.mxu0 0
  %39 = vmatprep.subr.bf16.mxu0 0
  %40 = vmatpush1.bf16.msra.mxu0 0
  %41 = vmatprep.subr.bf16.mxu0 0
  %42 = vmatpush1.bf16.msra.mxu0 0
  %43 = vmatprep.subr.bf16.mxu0 0
  %44 = vmatpush1.bf16.msra.mxu0 0
  %45 = vmatprep.subr.bf16.mxu0 0
  %46 = vmatpush1.bf16.msra.mxu0 0
  %47 = vmatprep.subr.bf16.mxu0 0
  %48 = vmatpush1.bf16.msra.mxu0 %v23
  %49 = vmatprep.subr.bf16.mxu0 0
  %50 = vmatpush1.bf16.msra.mxu0 %v22
  %51 = vmatprep.subr.bf16.mxu0 0
  %52 = vmatpush2.bf16.msra.mxu0 0
  %53 = vmatprep.subr.bf16.mxu0 0
  %54 = vmatpush2.bf16.msra.mxu0 0
  %55 = vmatprep.subr.bf16.mxu0 0
  %56 = vmatpush2.bf16.msra.mxu0 0
  %57 = vmatprep.subr.bf16.mxu0 0
  %58 = vmatpush2.bf16.msra.mxu0 0
  %59 = vmatprep.subr.bf16.mxu0 0
  %60 = vmatpush2.bf16.msra.mxu0 0
  %61 = vmatprep.subr.bf16.mxu0 0
  %62 = vmatpush2.bf16.msra.mxu0 0
  %63 = vmatprep.subr.bf16.mxu0 0
  %64 = vmatpush2.bf16.msra.mxu0 0
  %65 = vmatprep.subr.bf16.mxu0 0
  %66 = vmatpush2.bf16.msra.mxu0 0
  %67 = vmatprep.mubr.bf16.mxu0 0
  %68 = vmatmul.mubr.bf16.gmra.mxu0 %v33
  %v69 = vpop.f32.mrf.mxu0
  %v70 = vadd.f32 %v29, %v69
  %v71 = vpop.f32.mrf.mxu0
  %v72 = vpop.f32.mrf.mxu0
  %v73 = vadd.f32 %v29, %v72
  %v74 = vpop.f32.mrf.mxu0
  %75 = vdwg.mxu0
  %76 = vst [vmem:[%s3] sm:$0xff] %v70
  %77 = vst [vmem:[%s3 + $0x8] sm:$0xff] %v73
  // Predicated region
  $region14: #{_lambda_.21} parent=0 // pred_check
    _
  $region15: #{_lambda_.21} parent=0 // pred_check_branch
    %79 = sbr.rel (0) target = $region17
  $region16: #{_lambda_.21} parent=0 // pred_region
    _
  $region17: #{_lambda_.21} parent=0 // pred_fallthru
    _
  // Predicated region
  $region18: #{_lambda_.21} parent=0 // pred_check
    _
  $region19: #{_lambda_.21} parent=0 // pred_check_branch
    %81 = sbr.rel (0) target = $region21
  $region20: #{_lambda_.21} parent=0 // pred_region
    _
  $region21: #{_lambda_.21} parent=0 // pred_fallthru
    _

// kernel: _lambda_.16
$region0: #{_lambda_.16}
  #allocation0 [shape = 'u32[]', space=smem, size = 0x4, offset = 0x4, fixed_abs, tag = 'smem constant byte address 0x4 - core index']
  #allocation1 [shape = 'u32[144,128]{1,0:T(1,128)}', space=vmem, size = 0x12000, scoped, tag = 'internal scratch']
  %s0 = inlined_call_operand.vmem [shape: f32[24,32], index: 0, kind: input, shape index: {}]
  %s1 = inlined_call_operand.vmem [shape: f32[32,64], index: 1, kind: input, shape index: {}]
  %s2 = inlined_call_operand.vmem [shape: f32[1,64], index: 2, kind: input, shape index: {}]
  %s3 = inlined_call_operand.vmem [shape: f32[64,32], index: 3, kind: input, shape index: {}]
  %s4 = inlined_call_operand.vmem [shape: f32[1,32], index: 4, kind: input, shape index: {}]
  %s5 = inlined_call_operand.vmem [shape: f32[1,32], index: 5, kind: input, shape index: {}]
  %s6 = inlined_call_operand.vmem [shape: f32[1,32], index: 6, kind: input, shape index: {}]
  %s7 = inlined_call_operand.vmem [shape: f32[24,32], index: 7, kind: output, shape index: {}]
  %s8 = sld [smem:[#allocation0]]
  $region38: #{_lambda_.16} parent=0
    _
  %s10 = ssub.s32 1, %s8
  %s11 = scalar_select 0, %s10, %s8
  // Predicated region
  $region2: #{_lambda_.16} parent=0 // pred_check
    _
  $region3: #{_lambda_.16} parent=0 // pred_check_branch
    %13 = sbr.rel (0) target = $region5
  $region4: #{_lambda_.16} parent=0 // pred_region
    _
  $region5: #{_lambda_.16} parent=0 // pred_fallthru
    _
  // Predicated region
  $region6: #{_lambda_.16} parent=0 // pred_check
    _
  $region7: #{_lambda_.16} parent=0 // pred_check_branch
    %15 = sbr.rel (0) target = $region9
  $region8: #{_lambda_.16} parent=0 // pred_region
    _
  $region9: #{_lambda_.16} parent=0 // pred_fallthru
    _
  // Predicated region
  $region10: #{_lambda_.16} parent=0 // pred_check
    _
  $region11: #{_lambda_.16} parent=0 // pred_check_branch
    %17 = sbr.rel (0) target = $region13
  $region12: #{_lambda_.16} parent=0 // pred_region
    _
  $region13: #{_lambda_.16} parent=0 // pred_fallthru
    _
  // Predicated region
  $region14: #{_lambda_.16} parent=0 // pred_check
    _
  $region15: #{_lambda_.16} parent=0 // pred_check_branch
    %19 = sbr.rel (0) target = $region17
  $region16: #{_lambda_.16} parent=0 // pred_region
    _
  $region17: #{_lambda_.16} parent=0 // pred_fallthru
    _
  // Predicated region
  $region18: #{_lambda_.16} parent=0 // pred_check
    _
  $region19: #{_lambda_.16} parent=0 // pred_check_branch
    %21 = sbr.rel (0) target = $region21
  $region20: #{_lambda_.16} parent=0 // pred_region
    _
  $region21: #{_lambda_.16} parent=0 // pred_fallthru
    _
  // Predicated region
  $region22: #{_lambda_.16} parent=0 // pred_check
    _
  $region23: #{_lambda_.16} parent=0 // pred_check_branch
    %23 = sbr.rel (0) target = $region25
  $region24: #{_lambda_.16} parent=0 // pred_region
    _
  $region25: #{_lambda_.16} parent=0 // pred_fallthru
    _
  // Predicated region
  $region26: #{_lambda_.16} parent=0 // pred_check
    _
  $region27: #{_lambda_.16} parent=0 // pred_check_branch
    %25 = sbr.rel (0) target = $region29
  $region28: #{_lambda_.16} parent=0 // pred_region
    _
  $region29: #{_lambda_.16} parent=0 // pred_fallthru
    _
  %v27 = vld [vmem:[%s0] sm:$0xff]
  %v28 = vld [vmem:[%s0 + $0x8] sm:$0xff]
  %v29 = vld [vmem:[%s0 + $0x10] sm:$0xff]
  %v30 = vpack.c.bf16 %v28, %v27
  %v31 = vpack.c.bf16 %v29, %v29
  %v32 = vld [vmem:[%s1] sm:$0xff]
  %v33 = vld [vmem:[%s1 + $0x8] sm:$0xff]
  %v34 = vld [vmem:[%s1 + $0x10] sm:$0xff]
  %v35 = vld [vmem:[%s1 + $0x18] sm:$0xff]
  %v36 = vpack.c.bf16 %v33, %v32
  %v37 = vpack.c.bf16 %v35, %v34
  %v38 = vld [vmem:[%s2] sm:$0x1]
  %v40 = vlaneseq
  %v41 = vshrl.u32 %v40, 7
  %v42 = vsub.s32 0, %v41
  %v43 = vrot.slane %v38, %v42
  %vm45 = vcmask 261120
  %v47 = vsel %vm45, %v30, 0
  %v50 = vsel %vm45, %v31, 0
  %52 = vmatprep.subr.bf16.mxu0 0
  %53 = vmatpush1.bf16.msra.mxu0 0
  %54 = vmatprep.subr.bf16.mxu0 0
  %55 = vmatpush1.bf16.msra.mxu0 0
  %56 = vmatprep.subr.bf16.mxu0 0
  %57 = vmatpush1.bf16.msra.mxu0 0
  %58 = vmatprep.subr.bf16.mxu0 0
  %59 = vmatpush1.bf16.msra.mxu0 0
  %60 = vmatprep.subr.bf16.mxu0 0
  %61 = vmatpush1.bf16.msra.mxu0 0
  %62 = vmatprep.subr.bf16.mxu0 0
  %63 = vmatpush1.bf16.msra.mxu0 0
  %64 = vmatprep.subr.bf16.mxu0 0
  %65 = vmatpush1.bf16.msra.mxu0 %v37
  %66 = vmatprep.subr.bf16.mxu0 0
  %67 = vmatpush1.bf16.msra.mxu0 %v36
  %68 = vmatprep.subr.bf16.mxu0 0
  %69 = vmatpush2.bf16.msra.mxu0 0
  %70 = vmatprep.subr.bf16.mxu0 0
  %71 = vmatpush2.bf16.msra.mxu0 0
  %72 = vmatprep.subr.bf16.mxu0 0
  %73 = vmatpush2.bf16.msra.mxu0 0
  %74 = vmatprep.subr.bf16.mxu0 0
  %75 = vmatpush2.bf16.msra.mxu0 0
  %76 = vmatprep.subr.bf16.mxu0 0
  %77 = vmatpush2.bf16.msra.mxu0 0
  %78 = vmatprep.subr.bf16.mxu0 0
  %79 = vmatpush2.bf16.msra.mxu0 0
  %80 = vmatprep.subr.bf16.mxu0 0
  %81 = vmatpush2.bf16.msra.mxu0 0
  %82 = vmatprep.subr.bf16.mxu0 0
  %83 = vmatpush2.bf16.msra.mxu0 0
  %84 = vmatprep.mubr.bf16.mxu0 0
  %85 = vmatmul.mubr.bf16.gmra.mxu0 %v47
  %v86 = vpop.f32.mrf.mxu0
  %v87 = vadd.f32 %v43, %v86
  %v88 = vpop.f32.mrf.mxu0
  %v89 = vpop.f32.mrf.mxu0
  %v90 = vadd.f32 %v43, %v89
  %v91 = vpop.f32.mrf.mxu0
  %92 = vmatprep.mubr.bf16.mxu0 0
  %93 = vmatmul.mubr.bf16.gmra.mxu0 %v50
  %v94 = vpop.f32.mrf.mxu0
  %v95 = vadd.f32 %v43, %v94
  %v96 = vpop.f32.mrf.mxu0
  %v97 = vpop.f32.mrf.mxu0
  %v98 = vpop.f32.mrf.mxu0
  %99 = vdwg.mxu0
  %v100 = vmax.f32 %v87, 0.0
  %v101 = vmax.f32 %v90, 0.0
  %v102 = vmax.f32 %v95, 0.0
  %v103 = vpack.c.bf16 %v101, %v100
  %v104 = vpack.c.bf16 %v102, %v102
  %v105 = vld [vmem:[%s3] sm:$0xff]
  %v106 = vld [vmem:[%s3 + $0x8] sm:$0xff]
  %v107 = vld [vmem:[%s3 + $0x10] sm:$0xff]
  %v108 = vld [vmem:[%s3 + $0x18] sm:$0xff]
  %v109 = vld [vmem:[%s3 + $0x20] sm:$0xff]
  %v110 = vld [vmem:[%s3 + $0x28] sm:$0xff]
  %v111 = vld [vmem:[%s3 + $0x30] sm:$0xff]
  %v112 = vld [vmem:[%s3 + $0x38] sm:$0xff]
  %v113 = vpack.c.bf16 %v106, %v105
  %v114 = vpack.c.bf16 %v108, %v107
  %v115 = vpack.c.bf16 %v110, %v109
  %v116 = vpack.c.bf16 %v112, %v111
  %v117 = vld [vmem:[%s4] sm:$0x1]
  %v119 = vlaneseq
  %v120 = vshrl.u32 %v119, 7
  %v121 = vsub.s32 0, %v120
  %v122 = vrot.slane %v117, %v121
  %vm124 = vcmask 523264
  %v126 = vsel %vm124, %v103, 0
  %v129 = vsel %vm124, %v104, 0
  %131 = vmatprep.subr.bf16.mxu0 0
  %132 = vmatpush1.bf16.msra.mxu0 0
  %133 = vmatprep.subr.bf16.mxu0 0
  %134 = vmatpush1.bf16.msra.mxu0 0
  %135 = vmatprep.subr.bf16.mxu0 0
  %136 = vmatpush1.bf16.msra.mxu0 0
  %137 = vmatprep.subr.bf16.mxu0 0
  %138 = vmatpush1.bf16.msra.mxu0 0
  %139 = vmatprep.subr.bf16.mxu0 0
  %140 = vmatpush1.bf16.msra.mxu0 %v116
  %141 = vmatprep.subr.bf16.mxu0 0
  %142 = vmatpush1.bf16.msra.mxu0 %v115
  %143 = vmatprep.subr.bf16.mxu0 0
  %144 = vmatpush1.bf16.msra.mxu0 %v114
  %145 = vmatprep.subr.bf16.mxu0 0
  %146 = vmatpush1.bf16.msra.mxu0 %v113
  %147 = vmatprep.subr.bf16.mxu0 0
  %148 = vmatpush2.bf16.msra.mxu0 0
  %149 = vmatprep.subr.bf16.mxu0 0
  %150 = vmatpush2.bf16.msra.mxu0 0
  %151 = vmatprep.subr.bf16.mxu0 0
  %152 = vmatpush2.bf16.msra.mxu0 0
  %153 = vmatprep.subr.bf16.mxu0 0
  %154 = vmatpush2.bf16.msra.mxu0 0
  %155 = vmatprep.subr.bf16.mxu0 0
  %156 = vmatpush2.bf16.msra.mxu0 0
  %157 = vmatprep.subr.bf16.mxu0 0
  %158 = vmatpush2.bf16.msra.mxu0 0
  %159 = vmatprep.subr.bf16.mxu0 0
  %160 = vmatpush2.bf16.msra.mxu0 0
  %161 = vmatprep.subr.bf16.mxu0 0
  %162 = vmatpush2.bf16.msra.mxu0 0
  %163 = vmatprep.mubr.bf16.mxu0 0
  %164 = vmatmul.mubr.bf16.gmra.mxu0 %v126
  %v165 = vpop.f32.mrf.mxu0
  %v166 = vadd.f32 %v122, %v165
  %v167 = vpop.f32.mrf.mxu0
  %v168 = vpop.f32.mrf.mxu0
  %v169 = vadd.f32 %v122, %v168
  %v170 = vpop.f32.mrf.mxu0
  %171 = vmatprep.mubr.bf16.mxu0 0
  %172 = vmatmul.mubr.bf16.gmra.mxu0 %v129
  %v173 = vpop.f32.mrf.mxu0
  %v174 = vadd.f32 %v122, %v173
  %v175 = vpop.f32.mrf.mxu0
  %v176 = vpop.f32.mrf.mxu0
  %v177 = vpop.f32.mrf.mxu0
  %178 = vdwg.mxu0
  %v179 = vadd.f32 %v166, %v27
  %v180 = vadd.f32 %v169, %v28
  %v181 = vadd.f32 %v174, %v29
  %v182 = vsel %vm45, %v179, 0.0
  %183 = vadd.xlane.f32.xlu0 %v182
  %v184 = vpop.xlane.xlu0 %183
  %v185 = vsel %vm45, %v180, 0.0
  %186 = vadd.xlane.f32.xlu0 %v185
  %v187 = vpop.xlane.xlu0 %186
  %v188 = vsel %vm45, %v181, 0.0
  %189 = vadd.xlane.f32.xlu0 %v188
  %v190 = vpop.xlane.xlu0 %189
  %v191 = vrcp.pop 32.0
  %v192 = vmul.f32 %v184, %v191
  %v193 = vmul.f32 %v187, %v191
  %v194 = vmul.f32 %v190, %v191
  %v195 = vsub.f32 %v179, %v192
  %v196 = vsub.f32 %v180, %v193
  %v197 = vsub.f32 %v181, %v194
  %v198 = vmul.f32 %v195, %v195
  %v199 = vmul.f32 %v196, %v196
  %v200 = vmul.f32 %v197, %v197
  %v201 = vsel %vm45, %v198, 0.0
  %202 = vadd.xlane.f32.xlu0 %v201
  %v203 = vpop.xlane.xlu0 %202
  %v204 = vsel %vm45, %v199, 0.0
  %205 = vadd.xlane.f32.xlu0 %v204
  %v206 = vpop.xlane.xlu0 %205
  %v207 = vsel %vm45, %v200, 0.0
  %208 = vadd.xlane.f32.xlu0 %v207
  %v209 = vpop.xlane.xlu0 %208
  %v210 = vmul.f32 %v203, %v191
  %v211 = vmul.f32 %v206, %v191
  %v212 = vmul.f32 %v209, %v191
  %v213 = vadd.f32 %v210, 1e-05
  %v214 = vadd.f32 %v211, 1e-05
  %v215 = vadd.f32 %v212, 1e-05
  %v216 = vrsqrt.pop %v213
  %v217 = vrsqrt.pop %v214
  %v218 = vrsqrt.pop %v215
  %v219 = vmul.f32 %v195, %v216
  %v220 = vmul.f32 %v196, %v217
  %v221 = vmul.f32 %v197, %v218
  %v222 = vld [vmem:[%s5] sm:$0x1]
  %v224 = vlaneseq
  %v225 = vshrl.u32 %v224, 7
  %v226 = vsub.s32 0, %v225
  %v227 = vrot.slane %v222, %v226
  %v229 = vmul.f32 %v219, %v227
  %v230 = vmul.f32 %v220, %v227
  %v231 = vmul.f32 %v221, %v227
  %v232 = vld [vmem:[%s6] sm:$0x1]
  %v234 = vlaneseq
  %v235 = vshrl.u32 %v234, 7
  %v236 = vsub.s32 0, %v235
  %v237 = vrot.slane %v232, %v236
  %v239 = vadd.f32 %v229, %v237
  %v240 = vadd.f32 %v230, %v237
  %v241 = vadd.f32 %v231, %v237
  %242 = vst.msk [vmem:[%s7] sm:$0xff] %vm45, %v239
  %243 = vst.msk [vmem:[%s7 + $0x8] sm:$0xff] %vm45, %v240
  %244 = vst.msk [vmem:[%s7 + $0x10] sm:$0xff] %vm45, %v241
  // Predicated region
  $region30: #{_lambda_.16} parent=0 // pred_check
    _
  $region31: #{_lambda_.16} parent=0 // pred_check_branch
    %246 = sbr.rel (0) target = $region33
  $region32: #{_lambda_.16} parent=0 // pred_region
    _
  $region33: #{_lambda_.16} parent=0 // pred_fallthru
    _
  // Predicated region
  $region34: #{_lambda_.16} parent=0 // pred_check
    _
  $region35: #{_lambda_.16} parent=0 // pred_check_branch
    %248 = sbr.rel (0) target = $region37
  $region36: #{_lambda_.16} parent=0 // pred_region
    _
  $region37: #{_lambda_.16} parent=0 // pred_fallthru
    _

// kernel: custom-call.14
$region0: #{custom-call.14}
  %s0 = inlined_call_operand.vmem [shape: s32[7,2,5], index: 0, kind: output, shape index: {}]

// kernel: _lambda_.14
$region0: #{_lambda_.14}
  #allocation0 [shape = 'u32[]', space=smem, size = 0x4, offset = 0x4, fixed_abs, tag = 'smem constant byte address 0x4 - core index']
  #allocation1 [shape = 'u32[144,128]{1,0:T(1,128)}', space=vmem, size = 0x12000, scoped, tag = 'internal scratch']
  %s0 = inlined_call_operand.vmem [shape: f32[2,12,32], index: 0, kind: input, shape index: {}]
  %s1 = inlined_call_operand.vmem [shape: f32[2,12,32], index: 1, kind: input, shape index: {}]
  %s2 = inlined_call_operand.vmem [shape: f32[2,12,32], index: 2, kind: input, shape index: {}]
  %s3 = inlined_call_operand.vmem [shape: f32[2,12,32], index: 3, kind: input, shape index: {}]
  %s4 = inlined_call_operand.vmem [shape: f32[2,12,12,32], index: 4, kind: input, shape index: {}]
  %s5 = inlined_call_operand.vmem [shape: f32[2,1,12], index: 5, kind: input, shape index: {}]
  %s6 = inlined_call_operand.vmem [shape: f32[2,12,32], index: 6, kind: output, shape index: {}]
  %s7 = sld [smem:[#allocation0]]
  $region57: #{_lambda_.14} parent=0
    _
  %s9 = ssub.s32 1, %s7
  %s10 = scalar_select 0, %s9, %s7
  loop: start=0, step=1, limit=4
  $region2: #{_lambda_.14} parent=0 // loop_pre_header
    _
  $region3: #{_lambda_.14} parent=0 // loop_header
    %s12 = sphi 0, %s16
    %p13 = scmp.ge.s32.totalorder %s12, 4
    %s22 = sphi 0, %s24
    %s25 = sphi 0, %s22
    %s26 = sphi 0, %s25
    %s42 = sphi 0, %s26
    %s48 = sphi 0, %s50
    %s51 = sphi 0, %s48
    %s52 = sphi 0, %s51
    %s68 = sphi 0, %s52
    %s74 = sphi 0, %s76
    %s77 = sphi 0, %s74
    %s78 = sphi 0, %s77
    %s94 = sphi 0, %s78
    %s100 = sphi 0, %s102
    %s103 = sphi 0, %s100
    %s104 = sphi 0, %s103
    %s120 = sphi 0, %s104
    %s126 = sphi 0, %s128
    %s129 = sphi 0, %s126
    %s130 = sphi 0, %s129
    %s146 = sphi 0, %s130
    %s152 = sphi 0, %s154
    %s155 = sphi 0, %s152
    %s156 = sphi 0, %s155
    %s172 = sphi 0, %s156
    %s178 = sphi 0, %s180
    %s181 = sphi 0, %s178
    %s182 = sphi 0, %s181
    %s198 = sphi 0, %s182
  $region4: #{_lambda_.14} parent=0 // loop_header_branch
    %15 = sbr.rel (%p13) target = $region8
  $region5: #{_lambda_.14} parent=0 // loop_body
    %s17 = ssub.s32 %s12, 1
    %s18 = ssub.s32 %s12, 2
    %s19 = sadd.s32 %s12, 1
    %s20 = ssub.s32 %s12, %s19
    %p21 = scmp.eq.s32.totalorder %s20, 0
    %s23 = sadd.s32 %s22, 1
    %s24 = scalar_select %p21, %s22, %s23
    %p27 = pneg %p21
    %p28 = scmp.eq.s32.totalorder %s12, 1
    %p29 = por %p27, %p28
    %p30 = scmp.ne.s32.totalorder %s22, %s25
    %p31 = scmp.eq.s32.totalorder %s12, 0
    %p32 = por %p30, %p31
    %p33 = scmp.ne.s32.totalorder %s22, %s25
    %p34 = scmp.eq.s32.totalorder %s17, 1
    %p35 = por %p33, %p34
    %p36 = scmp.ne.s32.totalorder %s25, %s26
    %p37 = scmp.eq.s32.totalorder %s17, 0
    %p38 = por %p36, %p37
    %p39 = scmp.ne.s32.totalorder %s25, %s26
    %p40 = scmp.eq.s32.totalorder %s18, 1
    %p41 = por %p39, %p40
    %p43 = scmp.ne.s32.totalorder %s26, %s42
    %p44 = scmp.eq.s32.totalorder %s18, 0
    %p45 = por %p43, %p44
    %s46 = ssub.s32 %s12, %s19
    %p47 = scmp.eq.s32.totalorder %s46, 0
    %s49 = sadd.s32 %s48, 1
    %s50 = scalar_select %p47, %s48, %s49
    %p53 = pneg %p47
    %p54 = scmp.eq.s32.totalorder %s12, 1
    %p55 = por %p53, %p54
    %p56 = scmp.ne.s32.totalorder %s48, %s51
    %p57 = scmp.eq.s32.totalorder %s12, 0
    %p58 = por %p56, %p57
    %p59 = scmp.ne.s32.totalorder %s48, %s51
    %p60 = scmp.eq.s32.totalorder %s17, 1
    %p61 = por %p59, %p60
    %p62 = scmp.ne.s32.totalorder %s51, %s52
    %p63 = scmp.eq.s32.totalorder %s17, 0
    %p64 = por %p62, %p63
    %p65 = scmp.ne.s32.totalorder %s51, %s52
    %p66 = scmp.eq.s32.totalorder %s18, 1
    %p67 = por %p65, %p66
    %p69 = scmp.ne.s32.totalorder %s52, %s68
    %p70 = scmp.eq.s32.totalorder %s18, 0
    %p71 = por %p69, %p70
    %s72 = ssub.s32 %s12, %s19
    %p73 = scmp.eq.s32.totalorder %s72, 0
    %s75 = sadd.s32 %s74, 1
    %s76 = scalar_select %p73, %s74, %s75
    %p79 = pneg %p73
    %p80 = scmp.eq.s32.totalorder %s12, 1
    %p81 = por %p79, %p80
    %p82 = scmp.ne.s32.totalorder %s74, %s77
    %p83 = scmp.eq.s32.totalorder %s12, 0
    %p84 = por %p82, %p83
    %p85 = scmp.ne.s32.totalorder %s74, %s77
    %p86 = scmp.eq.s32.totalorder %s17, 1
    %p87 = por %p85, %p86
    %p88 = scmp.ne.s32.totalorder %s77, %s78
    %p89 = scmp.eq.s32.totalorder %s17, 0
    %p90 = por %p88, %p89
    %p91 = scmp.ne.s32.totalorder %s77, %s78
    %p92 = scmp.eq.s32.totalorder %s18, 1
    %p93 = por %p91, %p92
    %p95 = scmp.ne.s32.totalorder %s78, %s94
    %p96 = scmp.eq.s32.totalorder %s18, 0
    %p97 = por %p95, %p96
    %s98 = ssub.s32 %s12, %s19
    %p99 = scmp.eq.s32.totalorder %s98, 0
    %s101 = sadd.s32 %s100, 1
    %s102 = scalar_select %p99, %s100, %s101
    %p105 = pneg %p99
    %p106 = scmp.eq.s32.totalorder %s12, 1
    %p107 = por %p105, %p106
    %p108 = scmp.ne.s32.totalorder %s100, %s103
    %p109 = scmp.eq.s32.totalorder %s12, 0
    %p110 = por %p108, %p109
    %p111 = scmp.ne.s32.totalorder %s100, %s103
    %p112 = scmp.eq.s32.totalorder %s17, 1
    %p113 = por %p111, %p112
    %p114 = scmp.ne.s32.totalorder %s103, %s104
    %p115 = scmp.eq.s32.totalorder %s17, 0
    %p116 = por %p114, %p115
    %p117 = scmp.ne.s32.totalorder %s103, %s104
    %p118 = scmp.eq.s32.totalorder %s18, 1
    %p119 = por %p117, %p118
    %p121 = scmp.ne.s32.totalorder %s104, %s120
    %p122 = scmp.eq.s32.totalorder %s18, 0
    %p123 = por %p121, %p122
    %s124 = ssub.s32 %s12, %s19
    %p125 = scmp.eq.s32.totalorder %s124, 0
    %s127 = sadd.s32 %s126, 1
    %s128 = scalar_select %p125, %s126, %s127
    %p131 = pneg %p125
    %p132 = scmp.eq.s32.totalorder %s12, 1
    %p133 = por %p131, %p132
    %p134 = scmp.ne.s32.totalorder %s126, %s129
    %p135 = scmp.eq.s32.totalorder %s12, 0
    %p136 = por %p134, %p135
    %p137 = scmp.ne.s32.totalorder %s126, %s129
    %p138 = scmp.eq.s32.totalorder %s17, 1
    %p139 = por %p137, %p138
    %p140 = scmp.ne.s32.totalorder %s129, %s130
    %p141 = scmp.eq.s32.totalorder %s17, 0
    %p142 = por %p140, %p141
    %p143 = scmp.ne.s32.totalorder %s129, %s130
    %p144 = scmp.eq.s32.totalorder %s18, 1
    %p145 = por %p143, %p144
    %p147 = scmp.ne.s32.totalorder %s130, %s146
    %p148 = scmp.eq.s32.totalorder %s18, 0
    %p149 = por %p147, %p148
    %s150 = ssub.s32 %s12, %s19
    %p151 = scmp.eq.s32.totalorder %s150, 0
    %s153 = sadd.s32 %s152, 1
    %s154 = scalar_select %p151, %s152, %s153
    %p157 = pneg %p151
    %p158 = scmp.eq.s32.totalorder %s12, 1
    %p159 = por %p157, %p158
    %p160 = scmp.ne.s32.totalorder %s152, %s155
    %p161 = scmp.eq.s32.totalorder %s12, 0
    %p162 = por %p160, %p161
    %p163 = scmp.ne.s32.totalorder %s152, %s155
    %p164 = scmp.eq.s32.totalorder %s17, 1
    %p165 = por %p163, %p164
    %p166 = scmp.ne.s32.totalorder %s155, %s156
    %p167 = scmp.eq.s32.totalorder %s17, 0
    %p168 = por %p166, %p167
    %p169 = scmp.ne.s32.totalorder %s155, %s156
    %p170 = scmp.eq.s32.totalorder %s18, 1
    %p171 = por %p169, %p170
    %p173 = scmp.ne.s32.totalorder %s156, %s172
    %p174 = scmp.eq.s32.totalorder %s18, 0
    %p175 = por %p173, %p174
    %s176 = ssub.s32 %s12, %s19
    %p177 = scmp.eq.s32.totalorder %s176, 0
    %s179 = sadd.s32 %s178, 1
    %s180 = scalar_select %p177, %s178, %s179
    %p183 = pneg %p177
    %p184 = scmp.eq.s32.totalorder %s12, 1
    %p185 = por %p183, %p184
    %p186 = scmp.ne.s32.totalorder %s178, %s181
    %p187 = scmp.eq.s32.totalorder %s12, 0
    %p188 = por %p186, %p187
    %p189 = scmp.ne.s32.totalorder %s178, %s181
    %p190 = scmp.eq.s32.totalorder %s17, 1
    %p191 = por %p189, %p190
    %p192 = scmp.ne.s32.totalorder %s181, %s182
    %p193 = scmp.eq.s32.totalorder %s17, 0
    %p194 = por %p192, %p193
    %p195 = scmp.ne.s32.totalorder %s181, %s182
    %p196 = scmp.eq.s32.totalorder %s18, 1
    %p197 = por %p195, %p196
    %p199 = scmp.ne.s32.totalorder %s182, %s198
    %p200 = scmp.eq.s32.totalorder %s18, 0
    %p201 = por %p199, %p200
    %p202 = scmp.le.s32.totalorder 1, %s12
    %p203 = scmp.lt.s32.totalorder %s12, 3
    %p204 = pnand %p202, %p203
    %p205 = pneg %p204
    // Predicated region
    $region9: #{_lambda_.14} parent=5 // pred_check
      _
    $region10: #{_lambda_.14} parent=5 // pred_check_branch
      %207 = sbr.rel (%p204) target = $region12
    $region11: #{_lambda_.14} parent=5 // pred_region
      %s208 = ssub.s32 %s12, 1
    $region12: #{_lambda_.14} parent=5 // pred_fallthru
      _
    %p209 = scmp.lt.s32.totalorder %s12, 2
    // Predicated region
    $region13: #{_lambda_.14} parent=5 // pred_check
      %p210 = pneg %p209
    $region14: #{_lambda_.14} parent=5 // pred_check_branch
      %212 = sbr.rel (%p210) target = $region16
    $region15: #{_lambda_.14} parent=5 // pred_region
      // Predicated region
      $region17: #{_lambda_.14} parent=15 // pred_check
        %p213 = pneg %p32
      $region18: #{_lambda_.14} parent=15 // pred_check_branch
        %215 = sbr.rel (%p213) target = $region20
      $region19: #{_lambda_.14} parent=15 // pred_region
        %p216 = scmp.lt.s32.totalorder %s12, 1
        %s217 = scalar_select %p216, %s12, 1
        %s218 = smul.addr %s217, 2
        %s219 = smul.addr %s218, 8
        %s220 = scalar_lea.vmem %s0, %s219
      $region20: #{_lambda_.14} parent=15 // pred_fallthru
        _
      // Predicated region
      $region21: #{_lambda_.14} parent=15 // pred_check
        %p221 = pneg %p58
      $region22: #{_lambda_.14} parent=15 // pred_check_branch
        %223 = sbr.rel (%p221) target = $region24
      $region23: #{_lambda_.14} parent=15 // pred_region
        %p224 = scmp.lt.s32.totalorder %s12, 1
        %s225 = scalar_select %p224, %s12, 1
        %s226 = smul.addr %s225, 2
        %s227 = smul.addr %s226, 8
        %s228 = scalar_lea.vmem %s1, %s227
      $region24: #{_lambda_.14} parent=15 // pred_fallthru
        _
      // Predicated region
      $region25: #{_lambda_.14} parent=15 // pred_check
        %p229 = pneg %p84
      $region26: #{_lambda_.14} parent=15 // pred_check_branch
        %231 = sbr.rel (%p229) target = $region28
      $region27: #{_lambda_.14} parent=15 // pred_region
        %p232 = scmp.lt.s32.totalorder %s12, 1
        %s233 = scalar_select %p232, %s12, 1
        %s234 = smul.addr %s233, 2
        %s235 = smul.addr %s234, 8
        %s236 = scalar_lea.vmem %s2, %s235
      $region28: #{_lambda_.14} parent=15 // pred_fallthru
        _
      // Predicated region
      $region29: #{_lambda_.14} parent=15 // pred_check
        %p237 = pneg %p110
      $region30: #{_lambda_.14} parent=15 // pred_check_branch
        %239 = sbr.rel (%p237) target = $region32
      $region31: #{_lambda_.14} parent=15 // pred_region
        %p240 = scmp.lt.s32.totalorder %s12, 1
        %s241 = scalar_select %p240, %s12, 1
        %s242 = smul.addr %s241, 2
        %s243 = smul.addr %s242, 8
        %s244 = scalar_lea.vmem %s3, %s243
      $region32: #{_lambda_.14} parent=15 // pred_fallthru
        _
      // Predicated region
      $region33: #{_lambda_.14} parent=15 // pred_check
        %p245 = pneg %p136
      $region34: #{_lambda_.14} parent=15 // pred_check_branch
        %247 = sbr.rel (%p245) target = $region36
      $region35: #{_lambda_.14} parent=15 // pred_region
        %p248 = scmp.lt.s32.totalorder %s12, 1
        %s249 = scalar_select %p248, %s12, 1
        %s250 = smul.addr %s249, 24
        %s251 = smul.addr %s250, 8
        %s252 = scalar_lea.vmem %s4, %s251
      $region36: #{_lambda_.14} parent=15 // pred_fallthru
        _
      // Predicated region
      $region37: #{_lambda_.14} parent=15 // pred_check
        %p253 = pneg %p162
      $region38: #{_lambda_.14} parent=15 // pred_check_branch
        %255 = sbr.rel (%p253) target = $region40
      $region39: #{_lambda_.14} parent=15 // pred_region
        %p256 = scmp.lt.s32.totalorder %s12, 1
        %s257 = scalar_select %p256, %s12, 1
        %s258 = scalar_lea.vmem %s5, %s257
      $region40: #{_lambda_.14} parent=15 // pred_fallthru
        _
    $region16: #{_lambda_.14} parent=5 // pred_fallthru
      _
    %p259 = scmp.le.s32.totalorder 1, %s12
    %p260 = scmp.lt.s32.totalorder %s12, 3
    %p261 = pnand %p259, %p260
    %p262 = pneg %p261
    // Predicated region
    $region41: #{_lambda_.14} parent=5 // pred_check
      _
    $region42: #{_lambda_.14} parent=5 // pred_check_branch
      %264 = sbr.rel (%p261) target = $region44
    $region43: #{_lambda_.14} parent=5 // pred_region
      %s265 = ssub.s32 %s12, 1
      %p266 = scmp.lt.s32.totalorder %s17, 1
      %s267 = scalar_select %p266, %s17, 1
      %s268 = smul.addr %s267, 2
      %s269 = smul.addr %s268, 8
      %s270 = scalar_lea.vmem %s0, %s269
      %p271 = pneg %p38
      %p272 = pneg %p35
      %p273 = scmp.lt.s32.totalorder %s17, 1
      %s274 = scalar_select %p273, %s17, 1
      %s275 = smul.addr %s274, 2
      %s276 = smul.addr %s275, 8
      %s277 = scalar_lea.vmem %s1, %s276
      %p278 = pneg %p64
      %p279 = pneg %p61
      %p280 = scmp.lt.s32.totalorder %s17, 1
      %s281 = scalar_select %p280, %s17, 1
      %s282 = smul.addr %s281, 2
      %s283 = smul.addr %s282, 8
      %s284 = scalar_lea.vmem %s2, %s283
      %p285 = pneg %p90
      %p286 = pneg %p87
      %p287 = scmp.lt.s32.totalorder %s17, 1
      %s288 = scalar_select %p287, %s17, 1
      %s289 = smul.addr %s288, 2
      %s290 = smul.addr %s289, 8
      %s291 = scalar_lea.vmem %s3, %s290
      %p292 = pneg %p116
      %p293 = pneg %p113
      %p294 = scmp.lt.s32.totalorder %s17, 1
      %s295 = scalar_select %p294, %s17, 1
      %s296 = smul.addr %s295, 24
      %s297 = smul.addr %s296, 8
      %s298 = scalar_lea.vmem %s4, %s297
      %p299 = pneg %p142
      %p300 = pneg %p139
      %p301 = scmp.lt.s32.totalorder %s17, 1
      %s302 = scalar_select %p301, %s17, 1
      %s303 = scalar_lea.vmem %s5, %s302
      %p304 = pneg %p168
      %p305 = pneg %p165
      %p306 = pneg %p194
      %p307 = pneg %p191
      %p308 = scmp.lt.s32.totalorder %s17, 1
      %s309 = scalar_select %p308, %s17, 1
      %s310 = smul.addr %s309, 2
      %s311 = smul.addr %s310, 8
      %s312 = scalar_lea.vmem %s6, %s311
      %p313 = scmp.lt.s32.totalorder %s17, 1
      %s314 = scalar_select %p313, %s17, 1
      %s315 = smul.addr %s314, 2
      %s316 = smul.addr %s315, 8
      %s317 = scalar_lea.vmem %s0, %s316
      %p318 = scmp.lt.s32.totalorder %s17, 1
      %s319 = scalar_select %p318, %s17, 1
      %s320 = smul.addr %s319, 2
      %s321 = smul.addr %s320, 8
      %s322 = scalar_lea.vmem %s1, %s321
      %p323 = scmp.lt.s32.totalorder %s17, 1
      %s324 = scalar_select %p323, %s17, 1
      %s325 = smul.addr %s324, 2
      %s326 = smul.addr %s325, 8
      %s327 = scalar_lea.vmem %s2, %s326
      %p328 = scmp.lt.s32.totalorder %s17, 1
      %s329 = scalar_select %p328, %s17, 1
      %s330 = smul.addr %s329, 2
      %s331 = smul.addr %s330, 8
      %s332 = scalar_lea.vmem %s3, %s331
      %p333 = scmp.lt.s32.totalorder %s17, 1
      %s334 = scalar_select %p333, %s17, 1
      %s335 = smul.addr %s334, 24
      %s336 = smul.addr %s335, 8
      %s337 = scalar_lea.vmem %s4, %s336
      %p338 = scmp.lt.s32.totalorder %s17, 1
      %s339 = scalar_select %p338, %s17, 1
      %s340 = scalar_lea.vmem %s5, %s339
      %p341 = scmp.lt.s32.totalorder %s17, 1
      %s342 = scalar_select %p341, %s17, 1
      %s343 = smul.addr %s342, 2
      %s344 = smul.addr %s343, 8
      %s345 = scalar_lea.vmem %s6, %s344
      %v347 = vld [vmem:[%s317] sm:$0xff]
      %v348 = vld [vmem:[%s317 + $0x8] sm:$0xf]
      %v349 = vld [vmem:[%s322] sm:$0xff]
      %v350 = vld [vmem:[%s322 + $0x8] sm:$0xf]
      %v351 = vld [vmem:[%s327] sm:$0xff]
      %v352 = vld [vmem:[%s327 + $0x8] sm:$0xf]
      %v353 = vld [vmem:[%s332] sm:$0xff]
      %v354 = vld [vmem:[%s332 + $0x8] sm:$0xf]
      %v355 = vld [vmem:[%s337] sm:$0xff]
      %v356 = vld [vmem:[%s337 + $0x8] sm:$0xf]
      %v357 = vld [vmem:[%s337 + $0x10] sm:$0xff]
      %v358 = vld [vmem:[%s337 + $0x18] sm:$0xf]
      %v359 = vld [vmem:[%s337 + $0x20] sm:$0xff]
      %v360 = vld [vmem:[%s337 + $0x28] sm:$0xf]
      %v361 = vld [vmem:[%s337 + $0x30] sm:$0xff]
      %v362 = vld [vmem:[%s337 + $0x38] sm:$0xf]
      %v363 = vld [vmem:[%s337 + $0x40] sm:$0xff]
      %v364 = vld [vmem:[%s337 + $0x48] sm:$0xf]
      %v365 = vld [vmem:[%s337 + $0x50] sm:$0xff]
      %v366 = vld [vmem:[%s337 + $0x58] sm:$0xf]
      %v367 = vld [vmem:[%s337 + $0x60] sm:$0xff]
      %v368 = vld [vmem:[%s337 + $0x68] sm:$0xf]
      %v369 = vld [vmem:[%s337 + $0x70] sm:$0xff]
      %v370 = vld [vmem:[%s337 + $0x78] sm:$0xf]
      %v371 = vld [vmem:[%s337 + $0x80] sm:$0xff]
      %v372 = vld [vmem:[%s337 + $0x88] sm:$0xf]
      %v373 = vld [vmem:[%s337 + $0x90] sm:$0xff]
      %v374 = vld [vmem:[%s337 + $0x98] sm:$0xf]
      %v375 = vld [vmem:[%s337 + $0xa0] sm:$0xff]
      %v376 = vld [vmem:[%s337 + $0xa8] sm:$0xf]
      %v377 = vld [vmem:[%s337 + $0xb0] sm:$0xff]
      %v378 = vld [vmem:[%s337 + $0xb8] sm:$0xf]
      %v379 = vld [vmem:[%s340] sm:$0x1]
      %v380 = vpack.c.bf16 %v348, %v347
      %v381 = vpack.c.bf16 %v352, %v351
      %v384 = vcombine.high %v349, %v349
      %v386 = vunpack.c.l.s4 1966171168
      %v387 = vunpack.c.0.s8 %v386
      %v388 = vlaneseq
      %v389 = vshrl.u32 %v388, 7
      %v390 = vsub.s32 %v387, %v389
      %v391 = vrot.slane %v349, %v390
      %v393 = vunpack.c.l.s4 1966171168
      %v394 = vunpack.c.0.s8 %v393
      %v395 = vlaneseq
      %v396 = vshrl.u32 %v395, 7
      %v397 = vsub.s32 %v394, %v396
      %v398 = vrot.slane %v384, %v397
      %v399 = vcombine.high %v391, %v391
      %v400 = vcombine.high %v398, %v398
      %v402 = vunpack.c.l.s4 1966171168
      %v403 = vunpack.c.0.s8 %v402
      %v404 = vlaneseq
      %v405 = vshrl.u32 %v404, 7
      %v406 = vsub.s32 %v403, %v405
      %v407 = vrot.slane %v391, %v406
      %v409 = vunpack.c.l.s4 1966171168
      %v410 = vunpack.c.0.s8 %v409
      %v411 = vlaneseq
      %v412 = vshrl.u32 %v411, 7
      %v413 = vsub.s32 %v410, %v412
      %v414 = vrot.slane %v398, %v413
      %v416 = vunpack.c.l.s4 1966171168
      %v417 = vunpack.c.0.s8 %v416
      %v418 = vlaneseq
      %v419 = vshrl.u32 %v418, 7
      %v420 = vsub.s32 %v417, %v419
      %v421 = vrot.slane %v399, %v420
      %v423 = vunpack.c.l.s4 1966171168
      %v424 = vunpack.c.0.s8 %v423
      %v425 = vlaneseq
      %v426 = vshrl.u32 %v425, 7
      %v427 = vsub.s32 %v424, %v426
      %v428 = vrot.slane %v400, %v427
      %v429 = vcombine.high %v407, %v407
      %v430 = vcombine.high %v414, %v414
      %v431 = vcombine.high %v421, %v421
      %v432 = vcombine.high %v428, %v428
      %v434 = vunpack.c.l.s4 1966171168
      %v435 = vunpack.c.0.s8 %v434
      %v436 = vlaneseq
      %v437 = vshrl.u32 %v436, 7
      %v438 = vsub.s32 %v435, %v437
      %v439 = vrot.slane %v350, %v438
      %v440 = vcombine.high %v439, %v439
      %v442 = vunpack.c.l.s4 1966171168
      %v443 = vunpack.c.0.s8 %v442
      %v444 = vlaneseq
      %v445 = vshrl.u32 %v444, 7
      %v446 = vsub.s32 %v443, %v445
      %v447 = vrot.slane %v439, %v446
      %v449 = vunpack.c.l.s4 1966171168
      %v450 = vunpack.c.0.s8 %v449
      %v451 = vlaneseq
      %v452 = vshrl.u32 %v451, 7
      %v453 = vsub.s32 %v450, %v452
      %v454 = vrot.slane %v440, %v453
      %v455 = vcombine.high %v447, %v447
      %v456 = vcombine.high %v454, %v454
      %v457 = vlaneseq
      %v458 = vshrl.u32 %v457, 7
      %v459 = vsub.s32 0, %v458
      %v460 = vrot.slane %v407, %v459
      %v461 = vlaneseq
      %v462 = vshrl.u32 %v461, 7
      %v463 = vsub.s32 0, %v462
      %v464 = vrot.slane %v421, %v463
      %v465 = vlaneseq
      %v466 = vshrl.u32 %v465, 7
      %v467 = vsub.s32 0, %v466
      %v468 = vrot.slane %v429, %v467
      %v469 = vlaneseq
      %v470 = vshrl.u32 %v469, 7
      %v471 = vsub.s32 0, %v470
      %v472 = vrot.slane %v431, %v471
      %v473 = vlaneseq
      %v474 = vshrl.u32 %v473, 7
      %v475 = vsub.s32 0, %v474
      %v476 = vrot.slane %v414, %v475
      %v477 = vlaneseq
      %v478 = vshrl.u32 %v477, 7
      %v479 = vsub.s32 0, %v478
      %v480 = vrot.slane %v428, %v479
      %v481 = vlaneseq
      %v482 = vshrl.u32 %v481, 7
      %v483 = vsub.s32 0, %v482
      %v484 = vrot.slane %v430, %v483
      %v485 = vlaneseq
      %v486 = vshrl.u32 %v485, 7
      %v487 = vsub.s32 0, %v486
      %v488 = vrot.slane %v432, %v487
      %v489 = vlaneseq
      %v490 = vshrl.u32 %v489, 7
      %v491 = vsub.s32 0, %v490
      %v492 = vrot.slane %v447, %v491
      %v493 = vlaneseq
      %v494 = vshrl.u32 %v493, 7
      %v495 = vsub.s32 0, %v494
      %v496 = vrot.slane %v454, %v495
      %v497 = vlaneseq
      %v498 = vshrl.u32 %v497, 7
      %v499 = vsub.s32 0, %v498
      %v500 = vrot.slane %v455, %v499
      %v501 = vlaneseq
      %v502 = vshrl.u32 %v501, 7
      %v503 = vsub.s32 0, %v502
      %v504 = vrot.slane %v456, %v503
      %v517 = vmul.f32 %v355, %v460
      %v518 = vmul.f32 %v356, %v460
      %v519 = vmul.f32 %v357, %v464
      %v520 = vmul.f32 %v358, %v464
      %v521 = vmul.f32 %v359, %v468
      %v522 = vmul.f32 %v360, %v468
      %v523 = vmul.f32 %v361, %v472
      %v524 = vmul.f32 %v362, %v472
      %v525 = vmul.f32 %v363, %v476
      %v526 = vmul.f32 %v364, %v476
      %v527 = vmul.f32 %v365, %v480
      %v528 = vmul.f32 %v366, %v480
      %v529 = vmul.f32 %v367, %v484
      %v530 = vmul.f32 %v368, %v484
      %v531 = vmul.f32 %v369, %v488
      %v532 = vmul.f32 %v370, %v488
      %v533 = vmul.f32 %v371, %v492
      %v534 = vmul.f32 %v372, %v492
      %v535 = vmul.f32 %v373, %v496
      %v536 = vmul.f32 %v374, %v496
      %v537 = vmul.f32 %v375, %v500
      %v538 = vmul.f32 %v376, %v500
      %v539 = vmul.f32 %v377, %v504
      %v540 = vmul.f32 %v378, %v504
      %vm541 = vcmask 64512
      %v542 = vsel %vm541, %v517, 0.0
      %543 = vadd.xlane.f32.xlu0 %v542
      %v544 = vpop.xlane.xlu0 %543
      %vm545 = vcmask 60416
      %v546 = vsel %vm545, %v518, 0.0
      %547 = vadd.xlane.f32.xlu0 %v546
      %v548 = vpop.xlane.xlu0 %547
      %v549 = vsel %vm541, %v519, 0.0
      %550 = vadd.xlane.f32.xlu0 %v549
      %v551 = vpop.xlane.xlu0 %550
      %v552 = vsel %vm545, %v520, 0.0
      %553 = vadd.xlane.f32.xlu0 %v552
      %v554 = vpop.xlane.xlu0 %553
      %v555 = vsel %vm541, %v521, 0.0
      %556 = vadd.xlane.f32.xlu0 %v555
      %v557 = vpop.xlane.xlu0 %556
      %v558 = vsel %vm545, %v522, 0.0
      %559 = vadd.xlane.f32.xlu0 %v558
      %v560 = vpop.xlane.xlu0 %559
      %v561 = vsel %vm541, %v523, 0.0
      %562 = vadd.xlane.f32.xlu0 %v561
      %v563 = vpop.xlane.xlu0 %562
      %v564 = vsel %vm545, %v524, 0.0
      %565 = vadd.xlane.f32.xlu0 %v564
      %v566 = vpop.xlane.xlu0 %565
      %v567 = vsel %vm541, %v525, 0.0
      %568 = vadd.xlane.f32.xlu0 %v567
      %v569 = vpop.xlane.xlu0 %568
      %v570 = vsel %vm545, %v526, 0.0
      %571 = vadd.xlane.f32.xlu0 %v570
      %v572 = vpop.xlane.xlu0 %571
      %v573 = vsel %vm541, %v527, 0.0
      %574 = vadd.xlane.f32.xlu0 %v573
      %v575 = vpop.xlane.xlu0 %574
      %v576 = vsel %vm545, %v528, 0.0
      %577 = vadd.xlane.f32.xlu0 %v576
      %v578 = vpop.xlane.xlu0 %577
      %v579 = vsel %vm541, %v529, 0.0
      %580 = vadd.xlane.f32.xlu0 %v579
      %v581 = vpop.xlane.xlu0 %580
      %v582 = vsel %vm545, %v530, 0.0
      %583 = vadd.xlane.f32.xlu0 %v582
      %v584 = vpop.xlane.xlu0 %583
      %v585 = vsel %vm541, %v531, 0.0
      %586 = vadd.xlane.f32.xlu0 %v585
      %v587 = vpop.xlane.xlu0 %586
      %v588 = vsel %vm545, %v532, 0.0
      %589 = vadd.xlane.f32.xlu0 %v588
      %v590 = vpop.xlane.xlu0 %589
      %v591 = vsel %vm541, %v533, 0.0
      %592 = vadd.xlane.f32.xlu0 %v591
      %v593 = vpop.xlane.xlu0 %592
      %v594 = vsel %vm545, %v534, 0.0
      %595 = vadd.xlane.f32.xlu0 %v594
      %v596 = vpop.xlane.xlu0 %595
      %v597 = vsel %vm541, %v535, 0.0
      %598 = vadd.xlane.f32.xlu0 %v597
      %v599 = vpop.xlane.xlu0 %598
      %v600 = vsel %vm545, %v536, 0.0
      %601 = vadd.xlane.f32.xlu0 %v600
      %v602 = vpop.xlane.xlu0 %601
      %v603 = vsel %vm541, %v537, 0.0
      %604 = vadd.xlane.f32.xlu0 %v603
      %v605 = vpop.xlane.xlu0 %604
      %v606 = vsel %vm545, %v538, 0.0
      %607 = vadd.xlane.f32.xlu0 %v606
      %v608 = vpop.xlane.xlu0 %607
      %v609 = vsel %vm541, %v539, 0.0
      %610 = vadd.xlane.f32.xlu0 %v609
      %v611 = vpop.xlane.xlu0 %610
      %v612 = vsel %vm545, %v540, 0.0
      %613 = vadd.xlane.f32.xlu0 %v612
      %v614 = vpop.xlane.xlu0 %613
      %v639 = vlaneseq
      %v640 = vand.u32 %v639, 127
      %v641 = vlaneseq
      %v642 = vshrl.u32 %v641, 7
      %v643 = vsub.s32 %v640, %v642
      %v644 = vrot.slane %v544, %v643
      %v645 = vadd.s32 %v640, 4294967288
      %v646 = vlaneseq
      %v647 = vshrl.u32 %v646, 7
      %v648 = vsub.s32 %v645, %v647
      %v649 = vrot.slane %v548, %v648
      %vm650 = vcmask 130112
      %v651 = vsel %vm650, %v649, %v644
      %v652 = vlaneseq
      %v653 = vshrl.u32 %v652, 7
      %v654 = vsub.s32 %v640, %v653
      %v655 = vrot.slane %v551, %v654
      %v656 = vlaneseq
      %v657 = vshrl.u32 %v656, 7
      %v658 = vsub.s32 %v645, %v657
      %v659 = vrot.slane %v554, %v658
      %v660 = vsel %vm650, %v659, %v655
      %v661 = vlaneseq
      %v662 = vshrl.u32 %v661, 7
      %v663 = vsub.s32 %v640, %v662
      %v664 = vrot.slane %v557, %v663
      %v665 = vlaneseq
      %v666 = vshrl.u32 %v665, 7
      %v667 = vsub.s32 %v645, %v666
      %v668 = vrot.slane %v560, %v667
      %v669 = vsel %vm650, %v668, %v664
      %v670 = vlaneseq
      %v671 = vshrl.u32 %v670, 7
      %v672 = vsub.s32 %v640, %v671
      %v673 = vrot.slane %v563, %v672
      %v674 = vlaneseq
      %v675 = vshrl.u32 %v674, 7
      %v676 = vsub.s32 %v645, %v675
      %v677 = vrot.slane %v566, %v676
      %v678 = vsel %vm650, %v677, %v673
      %v679 = vlaneseq
      %v680 = vshrl.u32 %v679, 7
      %v681 = vsub.s32 %v640, %v680
      %v682 = vrot.slane %v569, %v681
      %v683 = vlaneseq
      %v684 = vshrl.u32 %v683, 7
      %v685 = vsub.s32 %v645, %v684
      %v686 = vrot.slane %v572, %v685
      %v687 = vsel %vm650, %v686, %v682
      %v688 = vlaneseq
      %v689 = vshrl.u32 %v688, 7
      %v690 = vsub.s32 %v640, %v689
      %v691 = vrot.slane %v575, %v690
      %v692 = vlaneseq
      %v693 = vshrl.u32 %v692, 7
      %v694 = vsub.s32 %v645, %v693
      %v695 = vrot.slane %v578, %v694
      %v696 = vsel %vm650, %v695, %v691
      %v697 = vlaneseq
      %v698 = vshrl.u32 %v697, 7
      %v699 = vsub.s32 %v640, %v698
      %v700 = vrot.slane %v581, %v699
      %v701 = vlaneseq
      %v702 = vshrl.u32 %v701, 7
      %v703 = vsub.s32 %v645, %v702
      %v704 = vrot.slane %v584, %v703
      %v705 = vsel %vm650, %v704, %v700
      %v706 = vlaneseq
      %v707 = vshrl.u32 %v706, 7
      %v708 = vsub.s32 %v640, %v707
      %v709 = vrot.slane %v587, %v708
      %v710 = vlaneseq
      %v711 = vshrl.u32 %v710, 7
      %v712 = vsub.s32 %v645, %v711
      %v713 = vrot.slane %v590, %v712
      %v714 = vsel %vm650, %v713, %v709
      %v715 = vlaneseq
      %v716 = vshrl.u32 %v715, 7
      %v717 = vsub.s32 %v640, %v716
      %v718 = vrot.slane %v593, %v717
      %v719 = vlaneseq
      %v720 = vshrl.u32 %v719, 7
      %v721 = vsub.s32 %v645, %v720
      %v722 = vrot.slane %v596, %v721
      %v723 = vsel %vm650, %v722, %v718
      %v724 = vlaneseq
      %v725 = vshrl.u32 %v724, 7
      %v726 = vsub.s32 %v640, %v725
      %v727 = vrot.slane %v599, %v726
      %v728 = vlaneseq
      %v729 = vshrl.u32 %v728, 7
      %v730 = vsub.s32 %v645, %v729
      %v731 = vrot.slane %v602, %v730
      %v732 = vsel %vm650, %v731, %v727
      %v733 = vlaneseq
      %v734 = vshrl.u32 %v733, 7
      %v735 = vsub.s32 %v640, %v734
      %v736 = vrot.slane %v605, %v735
      %v737 = vlaneseq
      %v738 = vshrl.u32 %v737, 7
      %v739 = vsub.s32 %v645, %v738
      %v740 = vrot.slane %v608, %v739
      %v741 = vsel %vm650, %v740, %v736
      %v742 = vlaneseq
      %v743 = vshrl.u32 %v742, 7
      %v744 = vsub.s32 %v640, %v743
      %v745 = vrot.slane %v611, %v744
      %v746 = vlaneseq
      %v747 = vshrl.u32 %v746, 7
      %v748 = vsub.s32 %v645, %v747
      %v749 = vrot.slane %v614, %v748
      %v750 = vsel %vm650, %v749, %v745
      %vm751 = vcmask 1041409
      %v752 = vsel %vm751, %v660, %v651
      %vm753 = vcmask 1042434
      %v754 = vsel %vm753, %v669, %v752
      %vm755 = vcmask 1043459
      %v756 = vsel %vm755, %v678, %v754
      %vm757 = vcmask 1044484
      %v758 = vsel %vm757, %v687, %v756
      %vm759 = vcmask 1045509
      %v760 = vsel %vm759, %v696, %v758
      %vm761 = vcmask 1046534
      %v762 = vsel %vm761, %v705, %v760
      %vm763 = vcmask 1047559
      %v764 = vsel %vm763, %v714, %v762
      %v765 = vsel %vm751, %v732, %v723
      %v766 = vsel %vm753, %v741, %v765
      %v767 = vsel %vm755, %v750, %v766
      %v771 = vsel %vm541, %v380, 0
      %v774 = vsel %vm541, %v381, 0
      %776 = vmatprep.subr.bf16.mxu0 0
      %777 = vmatpush1.bf16.xpose.msra.mxu0 0
      %778 = vmatprep.subr.bf16.mxu0 0
      %779 = vmatpush1.bf16.xpose.msra.mxu0 0
      %780 = vmatprep.subr.bf16.mxu0 0
      %781 = vmatpush1.bf16.xpose.msra.mxu0 0
      %782 = vmatprep.subr.bf16.mxu0 0
      %783 = vmatpush1.bf16.xpose.msra.mxu0 0
      %784 = vmatprep.subr.bf16.mxu0 0
      %785 = vmatpush1.bf16.xpose.msra.mxu0 0
      %786 = vmatprep.subr.bf16.mxu0 0
      %787 = vmatpush1.bf16.xpose.msra.mxu0 0
      %788 = vmatprep.subr.bf16.mxu0 0
      %789 = vmatpush1.bf16.xpose.msra.mxu0 0
      %790 = vmatprep.subr.bf16.mxu0 0
      %791 = vmatpush1.bf16.xpose.msra.mxu0 %v774
      %792 = vmatprep.subr.bf16.mxu0 0
      %793 = vmatpush2.bf16.xpose.msra.mxu0 0
      %794 = vmatprep.subr.bf16.mxu0 0
      %795 = vmatpush2.bf16.xpose.msra.mxu0 0
      %796 = vmatprep.subr.bf16.mxu0 0
      %797 = vmatpush2.bf16.xpose.msra.mxu0 0
      %798 = vmatprep.subr.bf16.mxu0 0
      %799 = vmatpush2.bf16.xpose.msra.mxu0 0
      %800 = vmatprep.subr.bf16.mxu0 0
      %801 = vmatpush2.bf16.xpose.msra.mxu0 0
      %802 = vmatprep.subr.bf16.mxu0 0
      %803 = vmatpush2.bf16.xpose.msra.mxu0 0
      %804 = vmatprep.subr.bf16.mxu0 0
      %805 = vmatpush2.bf16.xpose.msra.mxu0 0
      %806 = vmatprep.subr.bf16.mxu0 0
      %807 = vmatpush2.bf16.xpose.msra.mxu0 0
      %808 = vmatprep.mubr.bf16.mxu0 0
      %809 = vmatmul.mubr.bf16.gmra.mxu0 %v771
      %v810 = vpop.f32.mrf.mxu0
      %v811 = vadd.f32 %v764, %v810
      %v812 = vpop.f32.mrf.mxu0
      %v813 = vpop.f32.mrf.mxu0
      %v814 = vadd.f32 %v767, %v813
      %v815 = vpop.f32.mrf.mxu0
      %816 = vdwg.mxu0
      %v818 = vlaneseq
      %v819 = vshrl.u32 %v818, 7
      %v820 = vsub.s32 0, %v819
      %v821 = vrot.slane %v379, %v820
      %v823 = vadd.f32 %v811, %v821
      %v824 = vadd.f32 %v814, %v821
      %vm825 = vcmask 97280
      %v826 = vsel %vm825, %v823, -inf
      %827 = vmax.xlane.f32.xlu0 %v826
      %v828 = vpop.xlane.xlu0 %827
      %vm829 = vcmask 93184
      %v830 = vsel %vm829, %v824, -inf
      %831 = vmax.xlane.f32.xlu0 %v830
      %v832 = vpop.xlane.xlu0 %831
      %v833 = vsub.f32 %v823, %v828
      %v834 = vsub.f32 %v824, %v832
      %v835 = vmul.f32 %v833, 1.442695
      %v836 = vpow.pop %v835
      %v837 = vmul.f32 %v834, 1.442695
      %v838 = vpow.pop %v837
      %v839 = vsel %vm825, %v836, 0.0
      %840 = vadd.xlane.f32.xlu0 %v839
      %v841 = vpop.xlane.xlu0 %840
      %v842 = vsel %vm829, %v838, 0.0
      %843 = vadd.xlane.f32.xlu0 %v842
      %v844 = vpop.xlane.xlu0 %843
      %v845 = vpack.c.bf16 %v838, %v836
      %v846 = vpack.c.bf16 %v354, %v353
      %v848 = vsel %vm825, %v845, 0
      %vm850 = vcmask 1045504
      %v852 = vsel %vm850, %v846, 0
      %854 = vmatprep.subr.bf16.mxu0 0
      %855 = vmatpush1.bf16.msra.mxu0 0
      %856 = vmatprep.subr.bf16.mxu0 0
      %857 = vmatpush1.bf16.msra.mxu0 0
      %858 = vmatprep.subr.bf16.mxu0 0
      %859 = vmatpush1.bf16.msra.mxu0 0
      %860 = vmatprep.subr.bf16.mxu0 0
      %861 = vmatpush1.bf16.msra.mxu0 0
      %862 = vmatprep.subr.bf16.mxu0 0
      %863 = vmatpush1.bf16.msra.mxu0 0
      %864 = vmatprep.subr.bf16.mxu0 0
      %865 = vmatpush1.bf16.msra.mxu0 0
      %866 = vmatprep.subr.bf16.mxu0 0
      %867 = vmatpush1.bf16.msra.mxu0 0
      %868 = vmatprep.subr.bf16.mxu0 0
      %869 = vmatpush1.bf16.msra.mxu0 %v852
      %870 = vmatprep.subr.bf16.mxu0 0
      %871 = vmatpush2.bf16.msra.mxu0 0
      %872 = vmatprep.subr.bf16.mxu0 0
      %873 = vmatpush2.bf16.msra.mxu0 0
      %874 = vmatprep.subr.bf16.mxu0 0
      %875 = vmatpush2.bf16.msra.mxu0 0
      %876 = vmatprep.subr.bf16.mxu0 0
      %877 = vmatpush2.bf16.msra.mxu0 0
      %878 = vmatprep.subr.bf16.mxu0 0
      %879 = vmatpush2.bf16.msra.mxu0 0
      %880 = vmatprep.subr.bf16.mxu0 0
      %881 = vmatpush2.bf16.msra.mxu0 0
      %882 = vmatprep.subr.bf16.mxu0 0
      %883 = vmatpush2.bf16.msra.mxu0 0
      %884 = vmatprep.subr.bf16.mxu0 0
      %885 = vmatpush2.bf16.msra.mxu0 0
      %886 = vmatprep.mubr.bf16.mxu0 0
      %887 = vmatmul.mubr.bf16.gmra.mxu0 %v848
      %v888 = vpop.f32.mrf.mxu0
      %v889 = vadd.f32 0.0, %v888
      %v890 = vpop.f32.mrf.mxu0
      %v891 = vpop.f32.mrf.mxu0
      %v892 = vadd.f32 0.0, %v891
      %v893 = vpop.f32.mrf.mxu0
      %894 = vdwg.mxu0
      %v895 = vrcp.pop %v841
      %v896 = vrcp.pop %v844
      %v897 = vmul.f32 %v889, %v895
      %v898 = vmul.f32 %v892, %v896
      %923 = vrot.lane.b32.xlu0 %v517, 120
      %v924 = vpop.permute.xlu0 %923
      %925 = vrot.lane.b32.xlu0 %v518, 120
      %v926 = vpop.permute.xlu0 %925
      %927 = vrot.lane.b32.xlu0 %v519, 120
      %v928 = vpop.permute.xlu0 %927
      %929 = vrot.lane.b32.xlu0 %v520, 120
      %v930 = vpop.permute.xlu0 %929
      %931 = vrot.lane.b32.xlu0 %v521, 120
      %v932 = vpop.permute.xlu0 %931
      %933 = vrot.lane.b32.xlu0 %v522, 120
      %v934 = vpop.permute.xlu0 %933
      %935 = vrot.lane.b32.xlu0 %v523, 120
      %v936 = vpop.permute.xlu0 %935
      %937 = vrot.lane.b32.xlu0 %v524, 120
      %v938 = vpop.permute.xlu0 %937
      %939 = vrot.lane.b32.xlu0 %v525, 120
      %v940 = vpop.permute.xlu0 %939
      %941 = vrot.lane.b32.xlu0 %v526, 120
      %v942 = vpop.permute.xlu0 %941
      %943 = vrot.lane.b32.xlu0 %v527, 120
      %v944 = vpop.permute.xlu0 %943
      %945 = vrot.lane.b32.xlu0 %v528, 120
      %v946 = vpop.permute.xlu0 %945
      %947 = vrot.lane.b32.xlu0 %v529, 120
      %v948 = vpop.permute.xlu0 %947
      %949 = vrot.lane.b32.xlu0 %v530, 120
      %v950 = vpop.permute.xlu0 %949
      %951 = vrot.lane.b32.xlu0 %v531, 120
      %v952 = vpop.permute.xlu0 %951
      %953 = vrot.lane.b32.xlu0 %v532, 120
      %v954 = vpop.permute.xlu0 %953
      %955 = vrot.lane.b32.xlu0 %v533, 120
      %v956 = vpop.permute.xlu0 %955
      %957 = vrot.lane.b32.xlu0 %v534, 120
      %v958 = vpop.permute.xlu0 %957
      %959 = vrot.lane.b32.xlu0 %v535, 120
      %v960 = vpop.permute.xlu0 %959
      %961 = vrot.lane.b32.xlu0 %v536, 120
      %v962 = vpop.permute.xlu0 %961
      %963 = vrot.lane.b32.xlu0 %v537, 120
      %v964 = vpop.permute.xlu0 %963
      %965 = vrot.lane.b32.xlu0 %v538, 120
      %v966 = vpop.permute.xlu0 %965
      %967 = vrot.lane.b32.xlu0 %v539, 120
      %v968 = vpop.permute.xlu0 %967
      %969 = vrot.lane.b32.xlu0 %v540, 120
      %v970 = vpop.permute.xlu0 %969
      %v995 = vsel %vm541, %v924, 0.0
      %996 = vadd.xlane.f32.xlu0 %v995
      %v997 = vpop.xlane.xlu0 %996
      %v998 = vsel %vm545, %v926, 0.0
      %999 = vadd.xlane.f32.xlu0 %v998
      %v1000 = vpop.xlane.xlu0 %999
      %v1001 = vsel %vm541, %v928, 0.0
      %1002 = vadd.xlane.f32.xlu0 %v1001
      %v1003 = vpop.xlane.xlu0 %1002
      %v1004 = vsel %vm545, %v930, 0.0
      %1005 = vadd.xlane.f32.xlu0 %v1004
      %v1006 = vpop.xlane.xlu0 %1005
      %v1007 = vsel %vm541, %v932, 0.0
      %1008 = vadd.xlane.f32.xlu0 %v1007
      %v1009 = vpop.xlane.xlu0 %1008
      %v1010 = vsel %vm545, %v934, 0.0
      %1011 = vadd.xlane.f32.xlu0 %v1010
      %v1012 = vpop.xlane.xlu0 %1011
      %v1013 = vsel %vm541, %v936, 0.0
      %1014 = vadd.xlane.f32.xlu0 %v1013
      %v1015 = vpop.xlane.xlu0 %1014
      %v1016 = vsel %vm545, %v938, 0.0
      %1017 = vadd.xlane.f32.xlu0 %v1016
      %v1018 = vpop.xlane.xlu0 %1017
      %v1019 = vsel %vm541, %v940, 0.0
      %1020 = vadd.xlane.f32.xlu0 %v1019
      %v1021 = vpop.xlane.xlu0 %1020
      %v1022 = vsel %vm545, %v942, 0.0
      %1023 = vadd.xlane.f32.xlu0 %v1022
      %v1024 = vpop.xlane.xlu0 %1023
      %v1025 = vsel %vm541, %v944, 0.0
      %1026 = vadd.xlane.f32.xlu0 %v1025
      %v1027 = vpop.xlane.xlu0 %1026
      %v1028 = vsel %vm545, %v946, 0.0
      %1029 = vadd.xlane.f32.xlu0 %v1028
      %v1030 = vpop.xlane.xlu0 %1029
      %v1031 = vsel %vm541, %v948, 0.0
      %1032 = vadd.xlane.f32.xlu0 %v1031
      %v1033 = vpop.xlane.xlu0 %1032
      %v1034 = vsel %vm545, %v950, 0.0
      %1035 = vadd.xlane.f32.xlu0 %v1034
      %v1036 = vpop.xlane.xlu0 %1035
      %v1037 = vsel %vm541, %v952, 0.0
      %1038 = vadd.xlane.f32.xlu0 %v1037
      %v1039 = vpop.xlane.xlu0 %1038
      %v1040 = vsel %vm545, %v954, 0.0
      %1041 = vadd.xlane.f32.xlu0 %v1040
      %v1042 = vpop.xlane.xlu0 %1041
      %v1043 = vsel %vm541, %v956, 0.0
      %1044 = vadd.xlane.f32.xlu0 %v1043
      %v1045 = vpop.xlane.xlu0 %1044
      %v1046 = vsel %vm545, %v958, 0.0
      %1047 = vadd.xlane.f32.xlu0 %v1046
      %v1048 = vpop.xlane.xlu0 %1047
      %v1049 = vsel %vm541, %v960, 0.0
      %1050 = vadd.xlane.f32.xlu0 %v1049
      %v1051 = vpop.xlane.xlu0 %1050
      %v1052 = vsel %vm545, %v962, 0.0
      %1053 = vadd.xlane.f32.xlu0 %v1052
      %v1054 = vpop.xlane.xlu0 %1053
      %v1055 = vsel %vm541, %v964, 0.0
      %1056 = vadd.xlane.f32.xlu0 %v1055
      %v1057 = vpop.xlane.xlu0 %1056
      %v1058 = vsel %vm545, %v966, 0.0
      %1059 = vadd.xlane.f32.xlu0 %v1058
      %v1060 = vpop.xlane.xlu0 %1059
      %v1061 = vsel %vm541, %v968, 0.0
      %1062 = vadd.xlane.f32.xlu0 %v1061
      %v1063 = vpop.xlane.xlu0 %1062
      %v1064 = vsel %vm545, %v970, 0.0
      %1065 = vadd.xlane.f32.xlu0 %v1064
      %v1066 = vpop.xlane.xlu0 %1065
      %1068 = vrot.lane.b32.xlu0 %v380, 120
      %v1069 = vpop.permute.xlu0 %1068
      %1071 = vrot.lane.b32.xlu0 %v381, 120
      %v1072 = vpop.permute.xlu0 %1071
      %v1097 = vlaneseq
      %v1098 = vshrl.u32 %v1097, 7
      %v1099 = vsub.s32 %v640, %v1098
      %v1100 = vrot.slane %v997, %v1099
      %v1101 = vlaneseq
      %v1102 = vshrl.u32 %v1101, 7
      %v1103 = vsub.s32 %v645, %v1102
      %v1104 = vrot.slane %v1000, %v1103
      %v1105 = vsel %vm650, %v1104, %v1100
      %v1106 = vlaneseq
      %v1107 = vshrl.u32 %v1106, 7
      %v1108 = vsub.s32 %v640, %v1107
      %v1109 = vrot.slane %v1003, %v1108
      %v1110 = vlaneseq
      %v1111 = vshrl.u32 %v1110, 7
      %v1112 = vsub.s32 %v645, %v1111
      %v1113 = vrot.slane %v1006, %v1112
      %v1114 = vsel %vm650, %v1113, %v1109
      %v1115 = vlaneseq
      %v1116 = vshrl.u32 %v1115, 7
      %v1117 = vsub.s32 %v640, %v1116
      %v1118 = vrot.slane %v1009, %v1117
      %v1119 = vlaneseq
      %v1120 = vshrl.u32 %v1119, 7
      %v1121 = vsub.s32 %v645, %v1120
      %v1122 = vrot.slane %v1012, %v1121
      %v1123 = vsel %vm650, %v1122, %v1118
      %v1124 = vlaneseq
      %v1125 = vshrl.u32 %v1124, 7
      %v1126 = vsub.s32 %v640, %v1125
      %v1127 = vrot.slane %v1015, %v1126
      %v1128 = vlaneseq
      %v1129 = vshrl.u32 %v1128, 7
      %v1130 = vsub.s32 %v645, %v1129
      %v1131 = vrot.slane %v1018, %v1130
      %v1132 = vsel %vm650, %v1131, %v1127
      %v1133 = vlaneseq
      %v1134 = vshrl.u32 %v1133, 7
      %v1135 = vsub.s32 %v640, %v1134
      %v1136 = vrot.slane %v1021, %v1135
      %v1137 = vlaneseq
      %v1138 = vshrl.u32 %v1137, 7
      %v1139 = vsub.s32 %v645, %v1138
      %v1140 = vrot.slane %v1024, %v1139
      %v1141 = vsel %vm650, %v1140, %v1136
      %v1142 = vlaneseq
      %v1143 = vshrl.u32 %v1142, 7
      %v1144 = vsub.s32 %v640, %v1143
      %v1145 = vrot.slane %v1027, %v1144
      %v1146 = vlaneseq
      %v1147 = vshrl.u32 %v1146, 7
      %v1148 = vsub.s32 %v645, %v1147
      %v1149 = vrot.slane %v1030, %v1148
      %v1150 = vsel %vm650, %v1149, %v1145
      %v1151 = vlaneseq
      %v1152 = vshrl.u32 %v1151, 7
      %v1153 = vsub.s32 %v640, %v1152
      %v1154 = vrot.slane %v1033, %v1153
      %v1155 = vlaneseq
      %v1156 = vshrl.u32 %v1155, 7
      %v1157 = vsub.s32 %v645, %v1156
      %v1158 = vrot.slane %v1036, %v1157
      %v1159 = vsel %vm650, %v1158, %v1154
      %v1160 = vlaneseq
      %v1161 = vshrl.u32 %v1160, 7
      %v1162 = vsub.s32 %v640, %v1161
      %v1163 = vrot.slane %v1039, %v1162
      %v1164 = vlaneseq
      %v1165 = vshrl.u32 %v1164, 7
      %v1166 = vsub.s32 %v645, %v1165
      %v1167 = vrot.slane %v1042, %v1166
      %v1168 = vsel %vm650, %v1167, %v1163
      %v1169 = vlaneseq
      %v1170 = vshrl.u32 %v1169, 7
      %v1171 = vsub.s32 %v640, %v1170
      %v1172 = vrot.slane %v1045, %v1171
      %v1173 = vlaneseq
      %v1174 = vshrl.u32 %v1173, 7
      %v1175 = vsub.s32 %v645, %v1174
      %v1176 = vrot.slane %v1048, %v1175
      %v1177 = vsel %vm650, %v1176, %v1172
      %v1178 = vlaneseq
      %v1179 = vshrl.u32 %v1178, 7
      %v1180 = vsub.s32 %v640, %v1179
      %v1181 = vrot.slane %v1051, %v1180
      %v1182 = vlaneseq
      %v1183 = vshrl.u32 %v1182, 7
      %v1184 = vsub.s32 %v645, %v1183
      %v1185 = vrot.slane %v1054, %v1184
      %v1186 = vsel %vm650, %v1185, %v1181
      %v1187 = vlaneseq
      %v1188 = vshrl.u32 %v1187, 7
      %v1189 = vsub.s32 %v640, %v1188
      %v1190 = vrot.slane %v1057, %v1189
      %v1191 = vlaneseq
      %v1192 = vshrl.u32 %v1191, 7
      %v1193 = vsub.s32 %v645, %v1192
      %v1194 = vrot.slane %v1060, %v1193
      %v1195 = vsel %vm650, %v1194, %v1190
      %v1196 = vlaneseq
      %v1197 = vshrl.u32 %v1196, 7
      %v1198 = vsub.s32 %v640, %v1197
      %v1199 = vrot.slane %v1063, %v1198
      %v1200 = vlaneseq
      %v1201 = vshrl.u32 %v1200, 7
      %v1202 = vsub.s32 %v645, %v1201
      %v1203 = vrot.slane %v1066, %v1202
      %v1204 = vsel %vm650, %v1203, %v1199
      %v1205 = vsel %vm751, %v1114, %v1105
      %v1206 = vsel %vm753, %v1123, %v1205
      %v1207 = vsel %vm755, %v1132, %v1206
      %v1208 = vsel %vm757, %v1141, %v1207
      %v1209 = vsel %vm759, %v1150, %v1208
      %v1210 = vsel %vm761, %v1159, %v1209
      %v1211 = vsel %vm763, %v1168, %v1210
      %v1212 = vsel %vm751, %v1186, %v1177
      %v1213 = vsel %vm753, %v1195, %v1212
      %v1214 = vsel %vm755, %v1204, %v1213
      %v1218 = vsel %vm541, %v1069, 0
      %v1221 = vsel %vm541, %v1072, 0
      %1223 = vmatprep.subr.bf16.mxu0 0
      %1224 = vmatpush1.bf16.xpose.msra.mxu0 0
      %1225 = vmatprep.subr.bf16.mxu0 0
      %1226 = vmatpush1.bf16.xpose.msra.mxu0 0
      %1227 = vmatprep.subr.bf16.mxu0 0
      %1228 = vmatpush1.bf16.xpose.msra.mxu0 0
      %1229 = vmatprep.subr.bf16.mxu0 0
      %1230 = vmatpush1.bf16.xpose.msra.mxu0 0
      %1231 = vmatprep.subr.bf16.mxu0 0
      %1232 = vmatpush1.bf16.xpose.msra.mxu0 0
      %1233 = vmatprep.subr.bf16.mxu0 0
      %1234 = vmatpush1.bf16.xpose.msra.mxu0 0
      %1235 = vmatprep.subr.bf16.mxu0 0
      %1236 = vmatpush1.bf16.xpose.msra.mxu0 0
      %1237 = vmatprep.subr.bf16.mxu0 0
      %1238 = vmatpush1.bf16.xpose.msra.mxu0 %v1221
      %1239 = vmatprep.subr.bf16.mxu0 0
      %1240 = vmatpush2.bf16.xpose.msra.mxu0 0
      %1241 = vmatprep.subr.bf16.mxu0 0
      %1242 = vmatpush2.bf16.xpose.msra.mxu0 0
      %1243 = vmatprep.subr.bf16.mxu0 0
      %1244 = vmatpush2.bf16.xpose.msra.mxu0 0
      %1245 = vmatprep.subr.bf16.mxu0 0
      %1246 = vmatpush2.bf16.xpose.msra.mxu0 0
      %1247 = vmatprep.subr.bf16.mxu0 0
      %1248 = vmatpush2.bf16.xpose.msra.mxu0 0
      %1249 = vmatprep.subr.bf16.mxu0 0
      %1250 = vmatpush2.bf16.xpose.msra.mxu0 0
      %1251 = vmatprep.subr.bf16.mxu0 0
      %1252 = vmatpush2.bf16.xpose.msra.mxu0 0
      %1253 = vmatprep.subr.bf16.mxu0 0
      %1254 = vmatpush2.bf16.xpose.msra.mxu0 0
      %1255 = vmatprep.mubr.bf16.mxu0 0
      %1256 = vmatmul.mubr.bf16.gmra.mxu0 %v1218
      %v1257 = vpop.f32.mrf.mxu0
      %v1258 = vadd.f32 %v1211, %v1257
      %v1259 = vpop.f32.mrf.mxu0
      %v1260 = vpop.f32.mrf.mxu0
      %v1261 = vadd.f32 %v1214, %v1260
      %v1262 = vpop.f32.mrf.mxu0
      %1263 = vdwg.mxu0
      %v1264 = vadd.f32 %v1258, %v821
      %v1265 = vadd.f32 %v1261, %v821
      %v1266 = vsel %vm825, %v1264, -inf
      %1267 = vmax.xlane.f32.xlu0 %v1266
      %v1268 = vpop.xlane.xlu0 %1267
      %v1269 = vsel %vm829, %v1265, -inf
      %1270 = vmax.xlane.f32.xlu0 %v1269
      %v1271 = vpop.xlane.xlu0 %1270
      %v1272 = vsub.f32 %v1264, %v1268
      %v1273 = vsub.f32 %v1265, %v1271
      %v1274 = vmul.f32 %v1272, 1.442695
      %v1275 = vpow.pop %v1274
      %v1276 = vmul.f32 %v1273, 1.442695
      %v1277 = vpow.pop %v1276
      %v1278 = vsel %vm825, %v1275, 0.0
      %1279 = vadd.xlane.f32.xlu0 %v1278
      %v1280 = vpop.xlane.xlu0 %1279
      %v1281 = vsel %vm829, %v1277, 0.0
      %1282 = vadd.xlane.f32.xlu0 %v1281
      %v1283 = vpop.xlane.xlu0 %1282
      %v1284 = vpack.c.bf16 %v1277, %v1275
      %1286 = vrot.lane.b32.xlu0 %v846, 120
      %v1287 = vpop.permute.xlu0 %1286
      %v1289 = vsel %vm825, %v1284, 0
      %v1292 = vsel %vm850, %v1287, 0
      %1294 = vmatprep.subr.bf16.mxu0 0
      %1295 = vmatpush1.bf16.msra.mxu0 0
      %1296 = vmatprep.subr.bf16.mxu0 0
      %1297 = vmatpush1.bf16.msra.mxu0 0
      %1298 = vmatprep.subr.bf16.mxu0 0
      %1299 = vmatpush1.bf16.msra.mxu0 0
      %1300 = vmatprep.subr.bf16.mxu0 0
      %1301 = vmatpush1.bf16.msra.mxu0 0
      %1302 = vmatprep.subr.bf16.mxu0 0
      %1303 = vmatpush1.bf16.msra.mxu0 0
      %1304 = vmatprep.subr.bf16.mxu0 0
      %1305 = vmatpush1.bf16.msra.mxu0 0
      %1306 = vmatprep.subr.bf16.mxu0 0
      %1307 = vmatpush1.bf16.msra.mxu0 0
      %1308 = vmatprep.subr.bf16.mxu0 0
      %1309 = vmatpush1.bf16.msra.mxu0 %v1292
      %1310 = vmatprep.subr.bf16.mxu0 0
      %1311 = vmatpush2.bf16.msra.mxu0 0
      %1312 = vmatprep.subr.bf16.mxu0 0
      %1313 = vmatpush2.bf16.msra.mxu0 0
      %1314 = vmatprep.subr.bf16.mxu0 0
      %1315 = vmatpush2.bf16.msra.mxu0 0
      %1316 = vmatprep.subr.bf16.mxu0 0
      %1317 = vmatpush2.bf16.msra.mxu0 0
      %1318 = vmatprep.subr.bf16.mxu0 0
      %1319 = vmatpush2.bf16.msra.mxu0 0
      %1320 = vmatprep.subr.bf16.mxu0 0
      %1321 = vmatpush2.bf16.msra.mxu0 0
      %1322 = vmatprep.subr.bf16.mxu0 0
      %1323 = vmatpush2.bf16.msra.mxu0 0
      %1324 = vmatprep.subr.bf16.mxu0 0
      %1325 = vmatpush2.bf16.msra.mxu0 0
      %1326 = vmatprep.mubr.bf16.mxu0 0
      %1327 = vmatmul.mubr.bf16.gmra.mxu0 %v1289
      %v1328 = vpop.f32.mrf.mxu0
      %v1329 = vadd.f32 0.0, %v1328
      %v1330 = vpop.f32.mrf.mxu0
      %v1331 = vpop.f32.mrf.mxu0
      %v1332 = vadd.f32 0.0, %v1331
      %v1333 = vpop.f32.mrf.mxu0
      %1334 = vdwg.mxu0
      %v1335 = vrcp.pop %v1280
      %v1336 = vrcp.pop %v1283
      %v1337 = vmul.f32 %v1329, %v1335
      %v1338 = vmul.f32 %v1332, %v1336
      %1339 = vrot.lane.b32.xlu0 %v517, 112
      %v1340 = vpop.permute.xlu0 %1339
      %1341 = vrot.lane.b32.xlu0 %v518, 112
      %v1342 = vpop.permute.xlu0 %1341
      %1343 = vrot.lane.b32.xlu0 %v519, 112
      %v1344 = vpop.permute.xlu0 %1343
      %1345 = vrot.lane.b32.xlu0 %v520, 112
      %v1346 = vpop.permute.xlu0 %1345
      %1347 = vrot.lane.b32.xlu0 %v521, 112
      %v1348 = vpop.permute.xlu0 %1347
      %1349 = vrot.lane.b32.xlu0 %v522, 112
      %v1350 = vpop.permute.xlu0 %1349
      %1351 = vrot.lane.b32.xlu0 %v523, 112
      %v1352 = vpop.permute.xlu0 %1351
      %1353 = vrot.lane.b32.xlu0 %v524, 112
      %v1354 = vpop.permute.xlu0 %1353
      %1355 = vrot.lane.b32.xlu0 %v525, 112
      %v1356 = vpop.permute.xlu0 %1355
      %1357 = vrot.lane.b32.xlu0 %v526, 112
      %v1358 = vpop.permute.xlu0 %1357
      %1359 = vrot.lane.b32.xlu0 %v527, 112
      %v1360 = vpop.permute.xlu0 %1359
      %1361 = vrot.lane.b32.xlu0 %v528, 112
      %v1362 = vpop.permute.xlu0 %1361
      %1363 = vrot.lane.b32.xlu0 %v529, 112
      %v1364 = vpop.permute.xlu0 %1363
      %1365 = vrot.lane.b32.xlu0 %v530, 112
      %v1366 = vpop.permute.xlu0 %1365
      %1367 = vrot.lane.b32.xlu0 %v531, 112
      %v1368 = vpop.permute.xlu0 %1367
      %1369 = vrot.lane.b32.xlu0 %v532, 112
      %v1370 = vpop.permute.xlu0 %1369
      %1371 = vrot.lane.b32.xlu0 %v533, 112
      %v1372 = vpop.permute.xlu0 %1371
      %1373 = vrot.lane.b32.xlu0 %v534, 112
      %v1374 = vpop.permute.xlu0 %1373
      %1375 = vrot.lane.b32.xlu0 %v535, 112
      %v1376 = vpop.permute.xlu0 %1375
      %1377 = vrot.lane.b32.xlu0 %v536, 112
      %v1378 = vpop.permute.xlu0 %1377
      %1379 = vrot.lane.b32.xlu0 %v537, 112
      %v1380 = vpop.permute.xlu0 %1379
      %1381 = vrot.lane.b32.xlu0 %v538, 112
      %v1382 = vpop.permute.xlu0 %1381
      %1383 = vrot.lane.b32.xlu0 %v539, 112
      %v1384 = vpop.permute.xlu0 %1383
      %1385 = vrot.lane.b32.xlu0 %v540, 112
      %v1386 = vpop.permute.xlu0 %1385
      %v1411 = vsel %vm541, %v1340, 0.0
      %1412 = vadd.xlane.f32.xlu0 %v1411
      %v1413 = vpop.xlane.xlu0 %1412
      %v1414 = vsel %vm545, %v1342, 0.0
      %1415 = vadd.xlane.f32.xlu0 %v1414
      %v1416 = vpop.xlane.xlu0 %1415
      %v1417 = vsel %vm541, %v1344, 0.0
      %1418 = vadd.xlane.f32.xlu0 %v1417
      %v1419 = vpop.xlane.xlu0 %1418
      %v1420 = vsel %vm545, %v1346, 0.0
      %1421 = vadd.xlane.f32.xlu0 %v1420
      %v1422 = vpop.xlane.xlu0 %1421
      %v1423 = vsel %vm541, %v1348, 0.0
      %1424 = vadd.xlane.f32.xlu0 %v1423
      %v1425 = vpop.xlane.xlu0 %1424
      %v1426 = vsel %vm545, %v1350, 0.0
      %1427 = vadd.xlane.f32.xlu0 %v1426
      %v1428 = vpop.xlane.xlu0 %1427
      %v1429 = vsel %vm541, %v1352, 0.0
      %1430 = vadd.xlane.f32.xlu0 %v1429
      %v1431 = vpop.xlane.xlu0 %1430
      %v1432 = vsel %vm545, %v1354, 0.0
      %1433 = vadd.xlane.f32.xlu0 %v1432
      %v1434 = vpop.xlane.xlu0 %1433
      %v1435 = vsel %vm541, %v1356, 0.0
      %1436 = vadd.xlane.f32.xlu0 %v1435
      %v1437 = vpop.xlane.xlu0 %1436
      %v1438 = vsel %vm545, %v1358, 0.0
      %1439 = vadd.xlane.f32.xlu0 %v1438
      %v1440 = vpop.xlane.xlu0 %1439
      %v1441 = vsel %vm541, %v1360, 0.0
      %1442 = vadd.xlane.f32.xlu0 %v1441
      %v1443 = vpop.xlane.xlu0 %1442
      %v1444 = vsel %vm545, %v1362, 0.0
      %1445 = vadd.xlane.f32.xlu0 %v1444
      %v1446 = vpop.xlane.xlu0 %1445
      %v1447 = vsel %vm541, %v1364, 0.0
      %1448 = vadd.xlane.f32.xlu0 %v1447
      %v1449 = vpop.xlane.xlu0 %1448
      %v1450 = vsel %vm545, %v1366, 0.0
      %1451 = vadd.xlane.f32.xlu0 %v1450
      %v1452 = vpop.xlane.xlu0 %1451
      %v1453 = vsel %vm541, %v1368, 0.0
      %1454 = vadd.xlane.f32.xlu0 %v1453
      %v1455 = vpop.xlane.xlu0 %1454
      %v1456 = vsel %vm545, %v1370, 0.0
      %1457 = vadd.xlane.f32.xlu0 %v1456
      %v1458 = vpop.xlane.xlu0 %1457
      %v1459 = vsel %vm541, %v1372, 0.0
      %1460 = vadd.xlane.f32.xlu0 %v1459
      %v1461 = vpop.xlane.xlu0 %1460
      %v1462 = vsel %vm545, %v1374, 0.0
      %1463 = vadd.xlane.f32.xlu0 %v1462
      %v1464 = vpop.xlane.xlu0 %1463
      %v1465 = vsel %vm541, %v1376, 0.0
      %1466 = vadd.xlane.f32.xlu0 %v1465
      %v1467 = vpop.xlane.xlu0 %1466
      %v1468 = vsel %vm545, %v1378, 0.0
      %1469 = vadd.xlane.f32.xlu0 %v1468
      %v1470 = vpop.xlane.xlu0 %1469
      %v1471 = vsel %vm541, %v1380, 0.0
      %1472 = vadd.xlane.f32.xlu0 %v1471
      %v1473 = vpop.xlane.xlu0 %1472
      %v1474 = vsel %vm545, %v1382, 0.0
      %1475 = vadd.xlane.f32.xlu0 %v1474
      %v1476 = vpop.xlane.xlu0 %1475
      %v1477 = vsel %vm541, %v1384, 0.0
      %1478 = vadd.xlane.f32.xlu0 %v1477
      %v1479 = vpop.xlane.xlu0 %1478
      %v1480 = vsel %vm545, %v1386, 0.0
      %1481 = vadd.xlane.f32.xlu0 %v1480
      %v1482 = vpop.xlane.xlu0 %1481
      %1483 = vrot.lane.b32.xlu0 %v380, 112
      %v1484 = vpop.permute.xlu0 %1483
      %1485 = vrot.lane.b32.xlu0 %v381, 112
      %v1486 = vpop.permute.xlu0 %1485
      %v1511 = vlaneseq
      %v1512 = vshrl.u32 %v1511, 7
      %v1513 = vsub.s32 %v640, %v1512
      %v1514 = vrot.slane %v1413, %v1513
      %v1515 = vlaneseq
      %v1516 = vshrl.u32 %v1515, 7
      %v1517 = vsub.s32 %v645, %v1516
      %v1518 = vrot.slane %v1416, %v1517
      %v1519 = vsel %vm650, %v1518, %v1514
      %v1520 = vlaneseq
      %v1521 = vshrl.u32 %v1520, 7
      %v1522 = vsub.s32 %v640, %v1521
      %v1523 = vrot.slane %v1419, %v1522
      %v1524 = vlaneseq
      %v1525 = vshrl.u32 %v1524, 7
      %v1526 = vsub.s32 %v645, %v1525
      %v1527 = vrot.slane %v1422, %v1526
      %v1528 = vsel %vm650, %v1527, %v1523
      %v1529 = vlaneseq
      %v1530 = vshrl.u32 %v1529, 7
      %v1531 = vsub.s32 %v640, %v1530
      %v1532 = vrot.slane %v1425, %v1531
      %v1533 = vlaneseq
      %v1534 = vshrl.u32 %v1533, 7
      %v1535 = vsub.s32 %v645, %v1534
      %v1536 = vrot.slane %v1428, %v1535
      %v1537 = vsel %vm650, %v1536, %v1532
      %v1538 = vlaneseq
      %v1539 = vshrl.u32 %v1538, 7
      %v1540 = vsub.s32 %v640, %v1539
      %v1541 = vrot.slane %v1431, %v1540
      %v1542 = vlaneseq
      %v1543 = vshrl.u32 %v1542, 7
      %v1544 = vsub.s32 %v645, %v1543
      %v1545 = vrot.slane %v1434, %v1544
      %v1546 = vsel %vm650, %v1545, %v1541
      %v1547 = vlaneseq
      %v1548 = vshrl.u32 %v1547, 7
      %v1549 = vsub.s32 %v640, %v1548
      %v1550 = vrot.slane %v1437, %v1549
      %v1551 = vlaneseq
      %v1552 = vshrl.u32 %v1551, 7
      %v1553 = vsub.s32 %v645, %v1552
      %v1554 = vrot.slane %v1440, %v1553
      %v1555 = vsel %vm650, %v1554, %v1550
      %v1556 = vlaneseq
      %v1557 = vshrl.u32 %v1556, 7
      %v1558 = vsub.s32 %v640, %v1557
      %v1559 = vrot.slane %v1443, %v1558
      %v1560 = vlaneseq
      %v1561 = vshrl.u32 %v1560, 7
      %v1562 = vsub.s32 %v645, %v1561
      %v1563 = vrot.slane %v1446, %v1562
      %v1564 = vsel %vm650, %v1563, %v1559
      %v1565 = vlaneseq
      %v1566 = vshrl.u32 %v1565, 7
      %v1567 = vsub.s32 %v640, %v1566
      %v1568 = vrot.slane %v1449, %v1567
      %v1569 = vlaneseq
      %v1570 = vshrl.u32 %v1569, 7
      %v1571 = vsub.s32 %v645, %v1570
      %v1572 = vrot.slane %v1452, %v1571
      %v1573 = vsel %vm650, %v1572, %v1568
      %v1574 = vlaneseq
      %v1575 = vshrl.u32 %v1574, 7
      %v1576 = vsub.s32 %v640, %v1575
      %v1577 = vrot.slane %v1455, %v1576
      %v1578 = vlaneseq
      %v1579 = vshrl.u32 %v1578, 7
      %v1580 = vsub.s32 %v645, %v1579
      %v1581 = vrot.slane %v1458, %v1580
      %v1582 = vsel %vm650, %v1581, %v1577
      %v1583 = vlaneseq
      %v1584 = vshrl.u32 %v1583, 7
      %v1585 = vsub.s32 %v640, %v1584
      %v1586 = vrot.slane %v1461, %v1585
      %v1587 = vlaneseq
      %v1588 = vshrl.u32 %v1587, 7
      %v1589 = vsub.s32 %v645, %v1588
      %v1590 = vrot.slane %v1464, %v1589
      %v1591 = vsel %vm650, %v1590, %v1586
      %v1592 = vlaneseq
      %v1593 = vshrl.u32 %v1592, 7
      %v1594 = vsub.s32 %v640, %v1593
      %v1595 = vrot.slane %v1467, %v1594
      %v1596 = vlaneseq
      %v1597 = vshrl.u32 %v1596, 7
      %v1598 = vsub.s32 %v645, %v1597
      %v1599 = vrot.slane %v1470, %v1598
      %v1600 = vsel %vm650, %v1599, %v1595
      %v1601 = vlaneseq
      %v1602 = vshrl.u32 %v1601, 7
      %v1603 = vsub.s32 %v640, %v1602
      %v1604 = vrot.slane %v1473, %v1603
      %v1605 = vlaneseq
      %v1606 = vshrl.u32 %v1605, 7
      %v1607 = vsub.s32 %v645, %v1606
      %v1608 = vrot.slane %v1476, %v1607
      %v1609 = vsel %vm650, %v1608, %v1604
      %v1610 = vlaneseq
      %v1611 = vshrl.u32 %v1610, 7
      %v1612 = vsub.s32 %v640, %v1611
      %v1613 = vrot.slane %v1479, %v1612
      %v1614 = vlaneseq
      %v1615 = vshrl.u32 %v1614, 7
      %v1616 = vsub.s32 %v645, %v1615
      %v1617 = vrot.slane %v1482, %v1616
      %v1618 = vsel %vm650, %v1617, %v1613
      %v1619 = vsel %vm751, %v1528, %v1519
      %v1620 = vsel %vm753, %v1537, %v1619
      %v1621 = vsel %vm755, %v1546, %v1620
      %v1622 = vsel %vm757, %v1555, %v1621
      %v1623 = vsel %vm759, %v1564, %v1622
      %v1624 = vsel %vm761, %v1573, %v1623
      %v1625 = vsel %vm763, %v1582, %v1624
      %v1626 = vsel %vm751, %v1600, %v1591
      %v1627 = vsel %vm753, %v1609, %v1626
      %v1628 = vsel %vm755, %v1618, %v1627
      %v1632 = vsel %vm541, %v1484, 0
      %v1635 = vsel %vm541, %v1486, 0
      %1637 = vmatprep.subr.bf16.mxu0 0
      %1638 = vmatpush1.bf16.xpose.msra.mxu0 0
      %1639 = vmatprep.subr.bf16.mxu0 0
      %1640 = vmatpush1.bf16.xpose.msra.mxu0 0
      %1641 = vmatprep.subr.bf16.mxu0 0
      %1642 = vmatpush1.bf16.xpose.msra.mxu0 0
      %1643 = vmatprep.subr.bf16.mxu0 0
      %1644 = vmatpush1.bf16.xpose.msra.mxu0 0
      %1645 = vmatprep.subr.bf16.mxu0 0
      %1646 = vmatpush1.bf16.xpose.msra.mxu0 0
      %1647 = vmatprep.subr.bf16.mxu0 0
      %1648 = vmatpush1.bf16.xpose.msra.mxu0 0
      %1649 = vmatprep.subr.bf16.mxu0 0
      %1650 = vmatpush1.bf16.xpose.msra.mxu0 0
      %1651 = vmatprep.subr.bf16.mxu0 0
      %1652 = vmatpush1.bf16.xpose.msra.mxu0 %v1635
      %1653 = vmatprep.subr.bf16.mxu0 0
      %1654 = vmatpush2.bf16.xpose.msra.mxu0 0
      %1655 = vmatprep.subr.bf16.mxu0 0
      %1656 = vmatpush2.bf16.xpose.msra.mxu0 0
      %1657 = vmatprep.subr.bf16.mxu0 0
      %1658 = vmatpush2.bf16.xpose.msra.mxu0 0
      %1659 = vmatprep.subr.bf16.mxu0 0
      %1660 = vmatpush2.bf16.xpose.msra.mxu0 0
      %1661 = vmatprep.subr.bf16.mxu0 0
      %1662 = vmatpush2.bf16.xpose.msra.mxu0 0
      %1663 = vmatprep.subr.bf16.mxu0 0
      %1664 = vmatpush2.bf16.xpose.msra.mxu0 0
      %1665 = vmatprep.subr.bf16.mxu0 0
      %1666 = vmatpush2.bf16.xpose.msra.mxu0 0
      %1667 = vmatprep.subr.bf16.mxu0 0
      %1668 = vmatpush2.bf16.xpose.msra.mxu0 0
      %1669 = vmatprep.mubr.bf16.mxu0 0
      %1670 = vmatmul.mubr.bf16.gmra.mxu0 %v1632
      %v1671 = vpop.f32.mrf.mxu0
      %v1672 = vadd.f32 %v1625, %v1671
      %v1673 = vpop.f32.mrf.mxu0
      %v1674 = vpop.f32.mrf.mxu0
      %v1675 = vadd.f32 %v1628, %v1674
      %v1676 = vpop.f32.mrf.mxu0
      %1677 = vdwg.mxu0
      %v1678 = vadd.f32 %v1672, %v821
      %v1679 = vadd.f32 %v1675, %v821
      %v1680 = vsel %vm825, %v1678, -inf
      %1681 = vmax.xlane.f32.xlu0 %v1680
      %v1682 = vpop.xlane.xlu0 %1681
      %v1683 = vsel %vm829, %v1679, -inf
      %1684 = vmax.xlane.f32.xlu0 %v1683
      %v1685 = vpop.xlane.xlu0 %1684
      %v1686 = vsub.f32 %v1678, %v1682
      %v1687 = vsub.f32 %v1679, %v1685
      %v1688 = vmul.f32 %v1686, 1.442695
      %v1689 = vpow.pop %v1688
      %v1690 = vmul.f32 %v1687, 1.442695
      %v1691 = vpow.pop %v1690
      %v1692 = vsel %vm825, %v1689, 0.0
      %1693 = vadd.xlane.f32.xlu0 %v1692
      %v1694 = vpop.xlane.xlu0 %1693
      %v1695 = vsel %vm829, %v1691, 0.0
      %1696 = vadd.xlane.f32.xlu0 %v1695
      %v1697 = vpop.xlane.xlu0 %1696
      %v1698 = vpack.c.bf16 %v1691, %v1689
      %1699 = vrot.lane.b32.xlu0 %v846, 112
      %v1700 = vpop.permute.xlu0 %1699
      %v1702 = vsel %vm825, %v1698, 0
      %v1705 = vsel %vm850, %v1700, 0
      %1707 = vmatprep.subr.bf16.mxu0 0
      %1708 = vmatpush1.bf16.msra.mxu0 0
      %1709 = vmatprep.subr.bf16.mxu0 0
      %1710 = vmatpush1.bf16.msra.mxu0 0
      %1711 = vmatprep.subr.bf16.mxu0 0
      %1712 = vmatpush1.bf16.msra.mxu0 0
      %1713 = vmatprep.subr.bf16.mxu0 0
      %1714 = vmatpush1.bf16.msra.mxu0 0
      %1715 = vmatprep.subr.bf16.mxu0 0
      %1716 = vmatpush1.bf16.msra.mxu0 0
      %1717 = vmatprep.subr.bf16.mxu0 0
      %1718 = vmatpush1.bf16.msra.mxu0 0
      %1719 = vmatprep.subr.bf16.mxu0 0
      %1720 = vmatpush1.bf16.msra.mxu0 0
      %1721 = vmatprep.subr.bf16.mxu0 0
      %1722 = vmatpush1.bf16.msra.mxu0 %v1705
      %1723 = vmatprep.subr.bf16.mxu0 0
      %1724 = vmatpush2.bf16.msra.mxu0 0
      %1725 = vmatprep.subr.bf16.mxu0 0
      %1726 = vmatpush2.bf16.msra.mxu0 0
      %1727 = vmatprep.subr.bf16.mxu0 0
      %1728 = vmatpush2.bf16.msra.mxu0 0
      %1729 = vmatprep.subr.bf16.mxu0 0
      %1730 = vmatpush2.bf16.msra.mxu0 0
      %1731 = vmatprep.subr.bf16.mxu0 0
      %1732 = vmatpush2.bf16.msra.mxu0 0
      %1733 = vmatprep.subr.bf16.mxu0 0
      %1734 = vmatpush2.bf16.msra.mxu0 0
      %1735 = vmatprep.subr.bf16.mxu0 0
      %1736 = vmatpush2.bf16.msra.mxu0 0
      %1737 = vmatprep.subr.bf16.mxu0 0
      %1738 = vmatpush2.bf16.msra.mxu0 0
      %1739 = vmatprep.mubr.bf16.mxu0 0
      %1740 = vmatmul.mubr.bf16.gmra.mxu0 %v1702
      %v1741 = vpop.f32.mrf.mxu0
      %v1742 = vadd.f32 0.0, %v1741
      %v1743 = vpop.f32.mrf.mxu0
      %v1744 = vpop.f32.mrf.mxu0
      %v1745 = vadd.f32 0.0, %v1744
      %v1746 = vpop.f32.mrf.mxu0
      %1747 = vdwg.mxu0
      %v1748 = vrcp.pop %v1694
      %v1749 = vrcp.pop %v1697
      %v1750 = vmul.f32 %v1742, %v1748
      %v1751 = vmul.f32 %v1745, %v1749
      %1752 = vrot.lane.b32.xlu0 %v517, 104
      %v1753 = vpop.permute.xlu0 %1752
      %1754 = vrot.lane.b32.xlu0 %v518, 104
      %v1755 = vpop.permute.xlu0 %1754
      %1756 = vrot.lane.b32.xlu0 %v519, 104
      %v1757 = vpop.permute.xlu0 %1756
      %1758 = vrot.lane.b32.xlu0 %v520, 104
      %v1759 = vpop.permute.xlu0 %1758
      %1760 = vrot.lane.b32.xlu0 %v521, 104
      %v1761 = vpop.permute.xlu0 %1760
      %1762 = vrot.lane.b32.xlu0 %v522, 104
      %v1763 = vpop.permute.xlu0 %1762
      %1764 = vrot.lane.b32.xlu0 %v523, 104
      %v1765 = vpop.permute.xlu0 %1764
      %1766 = vrot.lane.b32.xlu0 %v524, 104
      %v1767 = vpop.permute.xlu0 %1766
      %1768 = vrot.lane.b32.xlu0 %v525, 104
      %v1769 = vpop.permute.xlu0 %1768
      %1770 = vrot.lane.b32.xlu0 %v526, 104
      %v1771 = vpop.permute.xlu0 %1770
      %1772 = vrot.lane.b32.xlu0 %v527, 104
      %v1773 = vpop.permute.xlu0 %1772
      %1774 = vrot.lane.b32.xlu0 %v528, 104
      %v1775 = vpop.permute.xlu0 %1774
      %1776 = vrot.lane.b32.xlu0 %v529, 104
      %v1777 = vpop.permute.xlu0 %1776
      %1778 = vrot.lane.b32.xlu0 %v530, 104
      %v1779 = vpop.permute.xlu0 %1778
      %1780 = vrot.lane.b32.xlu0 %v531, 104
      %v1781 = vpop.permute.xlu0 %1780
      %1782 = vrot.lane.b32.xlu0 %v532, 104
      %v1783 = vpop.permute.xlu0 %1782
      %1784 = vrot.lane.b32.xlu0 %v533, 104
      %v1785 = vpop.permute.xlu0 %1784
      %1786 = vrot.lane.b32.xlu0 %v534, 104
      %v1787 = vpop.permute.xlu0 %1786
      %1788 = vrot.lane.b32.xlu0 %v535, 104
      %v1789 = vpop.permute.xlu0 %1788
      %1790 = vrot.lane.b32.xlu0 %v536, 104
      %v1791 = vpop.permute.xlu0 %1790
      %1792 = vrot.lane.b32.xlu0 %v537, 104
      %v1793 = vpop.permute.xlu0 %1792
      %1794 = vrot.lane.b32.xlu0 %v538, 104
      %v1795 = vpop.permute.xlu0 %1794
      %1796 = vrot.lane.b32.xlu0 %v539, 104
      %v1797 = vpop.permute.xlu0 %1796
      %1798 = vrot.lane.b32.xlu0 %v540, 104
      %v1799 = vpop.permute.xlu0 %1798
      %v1824 = vsel %vm541, %v1753, 0.0
      %1825 = vadd.xlane.f32.xlu0 %v1824
      %v1826 = vpop.xlane.xlu0 %1825
      %v1827 = vsel %vm545, %v1755, 0.0
      %1828 = vadd.xlane.f32.xlu0 %v1827
      %v1829 = vpop.xlane.xlu0 %1828
      %v1830 = vsel %vm541, %v1757, 0.0
      %1831 = vadd.xlane.f32.xlu0 %v1830
      %v1832 = vpop.xlane.xlu0 %1831
      %v1833 = vsel %vm545, %v1759, 0.0
      %1834 = vadd.xlane.f32.xlu0 %v1833
      %v1835 = vpop.xlane.xlu0 %1834
      %v1836 = vsel %vm541, %v1761, 0.0
      %1837 = vadd.xlane.f32.xlu0 %v1836
      %v1838 = vpop.xlane.xlu0 %1837
      %v1839 = vsel %vm545, %v1763, 0.0
      %1840 = vadd.xlane.f32.xlu0 %v1839
      %v1841 = vpop.xlane.xlu0 %1840
      %v1842 = vsel %vm541, %v1765, 0.0
      %1843 = vadd.xlane.f32.xlu0 %v1842
      %v1844 = vpop.xlane.xlu0 %1843
      %v1845 = vsel %vm545, %v1767, 0.0
      %1846 = vadd.xlane.f32.xlu0 %v1845
      %v1847 = vpop.xlane.xlu0 %1846
      %v1848 = vsel %vm541, %v1769, 0.0
      %1849 = vadd.xlane.f32.xlu0 %v1848
      %v1850 = vpop.xlane.xlu0 %1849
      %v1851 = vsel %vm545, %v1771, 0.0
      %1852 = vadd.xlane.f32.xlu0 %v1851
      %v1853 = vpop.xlane.xlu0 %1852
      %v1854 = vsel %vm541, %v1773, 0.0
      %1855 = vadd.xlane.f32.xlu0 %v1854
      %v1856 = vpop.xlane.xlu0 %1855
      %v1857 = vsel %vm545, %v1775, 0.0
      %1858 = vadd.xlane.f32.xlu0 %v1857
      %v1859 = vpop.xlane.xlu0 %1858
      %v1860 = vsel %vm541, %v1777, 0.0
      %1861 = vadd.xlane.f32.xlu0 %v1860
      %v1862 = vpop.xlane.xlu0 %1861
      %v1863 = vsel %vm545, %v1779, 0.0
      %1864 = vadd.xlane.f32.xlu0 %v1863
      %v1865 = vpop.xlane.xlu0 %1864
      %v1866 = vsel %vm541, %v1781, 0.0
      %1867 = vadd.xlane.f32.xlu0 %v1866
      %v1868 = vpop.xlane.xlu0 %1867
      %v1869 = vsel %vm545, %v1783, 0.0
      %1870 = vadd.xlane.f32.xlu0 %v1869
      %v1871 = vpop.xlane.xlu0 %1870
      %v1872 = vsel %vm541, %v1785, 0.0
      %1873 = vadd.xlane.f32.xlu0 %v1872
      %v1874 = vpop.xlane.xlu0 %1873
      %v1875 = vsel %vm545, %v1787, 0.0
      %1876 = vadd.xlane.f32.xlu0 %v1875
      %v1877 = vpop.xlane.xlu0 %1876
      %v1878 = vsel %vm541, %v1789, 0.0
      %1879 = vadd.xlane.f32.xlu0 %v1878
      %v1880 = vpop.xlane.xlu0 %1879
      %v1881 = vsel %vm545, %v1791, 0.0
      %1882 = vadd.xlane.f32.xlu0 %v1881
      %v1883 = vpop.xlane.xlu0 %1882
      %v1884 = vsel %vm541, %v1793, 0.0
      %1885 = vadd.xlane.f32.xlu0 %v1884
      %v1886 = vpop.xlane.xlu0 %1885
      %v1887 = vsel %vm545, %v1795, 0.0
      %1888 = vadd.xlane.f32.xlu0 %v1887
      %v1889 = vpop.xlane.xlu0 %1888
      %v1890 = vsel %vm541, %v1797, 0.0
      %1891 = vadd.xlane.f32.xlu0 %v1890
      %v1892 = vpop.xlane.xlu0 %1891
      %v1893 = vsel %vm545, %v1799, 0.0
      %1894 = vadd.xlane.f32.xlu0 %v1893
      %v1895 = vpop.xlane.xlu0 %1894
      %1896 = vrot.lane.b32.xlu0 %v380, 104
      %v1897 = vpop.permute.xlu0 %1896
      %1898 = vrot.lane.b32.xlu0 %v381, 104
      %v1899 = vpop.permute.xlu0 %1898
      %v1924 = vlaneseq
      %v1925 = vshrl.u32 %v1924, 7
      %v1926 = vsub.s32 %v640, %v1925
      %v1927 = vrot.slane %v1826, %v1926
      %v1928 = vlaneseq
      %v1929 = vshrl.u32 %v1928, 7
      %v1930 = vsub.s32 %v645, %v1929
      %v1931 = vrot.slane %v1829, %v1930
      %v1932 = vsel %vm650, %v1931, %v1927
      %v1933 = vlaneseq
      %v1934 = vshrl.u32 %v1933, 7
      %v1935 = vsub.s32 %v640, %v1934
      %v1936 = vrot.slane %v1832, %v1935
      %v1937 = vlaneseq
      %v1938 = vshrl.u32 %v1937, 7
      %v1939 = vsub.s32 %v645, %v1938
      %v1940 = vrot.slane %v1835, %v1939
      %v1941 = vsel %vm650, %v1940, %v1936
      %v1942 = vlaneseq
      %v1943 = vshrl.u32 %v1942, 7
      %v1944 = vsub.s32 %v640, %v1943
      %v1945 = vrot.slane %v1838, %v1944
      %v1946 = vlaneseq
      %v1947 = vshrl.u32 %v1946, 7
      %v1948 = vsub.s32 %v645, %v1947
      %v1949 = vrot.slane %v1841, %v1948
      %v1950 = vsel %vm650, %v1949, %v1945
      %v1951 = vlaneseq
      %v1952 = vshrl.u32 %v1951, 7
      %v1953 = vsub.s32 %v640, %v1952
      %v1954 = vrot.slane %v1844, %v1953
      %v1955 = vlaneseq
      %v1956 = vshrl.u32 %v1955, 7
      %v1957 = vsub.s32 %v645, %v1956
      %v1958 = vrot.slane %v1847, %v1957
      %v1959 = vsel %vm650, %v1958, %v1954
      %v1960 = vlaneseq
      %v1961 = vshrl.u32 %v1960, 7
      %v1962 = vsub.s32 %v640, %v1961
      %v1963 = vrot.slane %v1850, %v1962
      %v1964 = vlaneseq
      %v1965 = vshrl.u32 %v1964, 7
      %v1966 = vsub.s32 %v645, %v1965
      %v1967 = vrot.slane %v1853, %v1966
      %v1968 = vsel %vm650, %v1967, %v1963
      %v1969 = vlaneseq
      %v1970 = vshrl.u32 %v1969, 7
      %v1971 = vsub.s32 %v640, %v1970
      %v1972 = vrot.slane %v1856, %v1971
      %v1973 = vlaneseq
      %v1974 = vshrl.u32 %v1973, 7
      %v1975 = vsub.s32 %v645, %v1974
      %v1976 = vrot.slane %v1859, %v1975
      %v1977 = vsel %vm650, %v1976, %v1972
      %v1978 = vlaneseq
      %v1979 = vshrl.u32 %v1978, 7
      %v1980 = vsub.s32 %v640, %v1979
      %v1981 = vrot.slane %v1862, %v1980
      %v1982 = vlaneseq
      %v1983 = vshrl.u32 %v1982, 7
      %v1984 = vsub.s32 %v645, %v1983
      %v1985 = vrot.slane %v1865, %v1984
      %v1986 = vsel %vm650, %v1985, %v1981
      %v1987 = vlaneseq
      %v1988 = vshrl.u32 %v1987, 7
      %v1989 = vsub.s32 %v640, %v1988
      %v1990 = vrot.slane %v1868, %v1989
      %v1991 = vlaneseq
      %v1992 = vshrl.u32 %v1991, 7
      %v1993 = vsub.s32 %v645, %v1992
      %v1994 = vrot.slane %v1871, %v1993
      %v1995 = vsel %vm650, %v1994, %v1990
      %v1996 = vlaneseq
      %v1997 = vshrl.u32 %v1996, 7
      %v1998 = vsub.s32 %v640, %v1997
      %v1999 = vrot.slane %v1874, %v1998
      %v2000 = vlaneseq
      %v2001 = vshrl.u32 %v2000, 7
      %v2002 = vsub.s32 %v645, %v2001
      %v2003 = vrot.slane %v1877, %v2002
      %v2004 = vsel %vm650, %v2003, %v1999
      %v2005 = vlaneseq
      %v2006 = vshrl.u32 %v2005, 7
      %v2007 = vsub.s32 %v640, %v2006
      %v2008 = vrot.slane %v1880, %v2007
      %v2009 = vlaneseq
      %v2010 = vshrl.u32 %v2009, 7
      %v2011 = vsub.s32 %v645, %v2010
      %v2012 = vrot.slane %v1883, %v2011
      %v2013 = vsel %vm650, %v2012, %v2008
      %v2014 = vlaneseq
      %v2015 = vshrl.u32 %v2014, 7
      %v2016 = vsub.s32 %v640, %v2015
      %v2017 = vrot.slane %v1886, %v2016
      %v2018 = vlaneseq
      %v2019 = vshrl.u32 %v2018, 7
      %v2020 = vsub.s32 %v645, %v2019
      %v2021 = vrot.slane %v1889, %v2020
      %v2022 = vsel %vm650, %v2021, %v2017
      %v2023 = vlaneseq
      %v2024 = vshrl.u32 %v2023, 7
      %v2025 = vsub.s32 %v640, %v2024
      %v2026 = vrot.slane %v1892, %v2025
      %v2027 = vlaneseq
      %v2028 = vshrl.u32 %v2027, 7
      %v2029 = vsub.s32 %v645, %v2028
      %v2030 = vrot.slane %v1895, %v2029
      %v2031 = vsel %vm650, %v2030, %v2026
      %v2032 = vsel %vm751, %v1941, %v1932
      %v2033 = vsel %vm753, %v1950, %v2032
      %v2034 = vsel %vm755, %v1959, %v2033
      %v2035 = vsel %vm757, %v1968, %v2034
      %v2036 = vsel %vm759, %v1977, %v2035
      %v2037 = vsel %vm761, %v1986, %v2036
      %v2038 = vsel %vm763, %v1995, %v2037
      %v2039 = vsel %vm751, %v2013, %v2004
      %v2040 = vsel %vm753, %v2022, %v2039
      %v2041 = vsel %vm755, %v2031, %v2040
      %v2045 = vsel %vm541, %v1897, 0
      %v2048 = vsel %vm541, %v1899, 0
      %2050 = vmatprep.subr.bf16.mxu0 0
      %2051 = vmatpush1.bf16.xpose.msra.mxu0 0
      %2052 = vmatprep.subr.bf16.mxu0 0
      %2053 = vmatpush1.bf16.xpose.msra.mxu0 0
      %2054 = vmatprep.subr.bf16.mxu0 0
      %2055 = vmatpush1.bf16.xpose.msra.mxu0 0
      %2056 = vmatprep.subr.bf16.mxu0 0
      %2057 = vmatpush1.bf16.xpose.msra.mxu0 0
      %2058 = vmatprep.subr.bf16.mxu0 0
      %2059 = vmatpush1.bf16.xpose.msra.mxu0 0
      %2060 = vmatprep.subr.bf16.mxu0 0
      %2061 = vmatpush1.bf16.xpose.msra.mxu0 0
      %2062 = vmatprep.subr.bf16.mxu0 0
      %2063 = vmatpush1.bf16.xpose.msra.mxu0 0
      %2064 = vmatprep.subr.bf16.mxu0 0
      %2065 = vmatpush1.bf16.xpose.msra.mxu0 %v2048
      %2066 = vmatprep.subr.bf16.mxu0 0
      %2067 = vmatpush2.bf16.xpose.msra.mxu0 0
      %2068 = vmatprep.subr.bf16.mxu0 0
      %2069 = vmatpush2.bf16.xpose.msra.mxu0 0
      %2070 = vmatprep.subr.bf16.mxu0 0
      %2071 = vmatpush2.bf16.xpose.msra.mxu0 0
      %2072 = vmatprep.subr.bf16.mxu0 0
      %2073 = vmatpush2.bf16.xpose.msra.mxu0 0
      %2074 = vmatprep.subr.bf16.mxu0 0
      %2075 = vmatpush2.bf16.xpose.msra.mxu0 0
      %2076 = vmatprep.subr.bf16.mxu0 0
      %2077 = vmatpush2.bf16.xpose.msra.mxu0 0
      %2078 = vmatprep.subr.bf16.mxu0 0
      %2079 = vmatpush2.bf16.xpose.msra.mxu0 0
      %2080 = vmatprep.subr.bf16.mxu0 0
      %2081 = vmatpush2.bf16.xpose.msra.mxu0 0
      %2082 = vmatprep.mubr.bf16.mxu0 0
      %2083 = vmatmul.mubr.bf16.gmra.mxu0 %v2045
      %v2084 = vpop.f32.mrf.mxu0
      %v2085 = vadd.f32 %v2038, %v2084
      %v2086 = vpop.f32.mrf.mxu0
      %v2087 = vpop.f32.mrf.mxu0
      %v2088 = vadd.f32 %v2041, %v2087
      %v2089 = vpop.f32.mrf.mxu0
      %2090 = vdwg.mxu0
      %v2091 = vadd.f32 %v2085, %v821
      %v2092 = vadd.f32 %v2088, %v821
      %v2093 = vsel %vm825, %v2091, -inf
      %2094 = vmax.xlane.f32.xlu0 %v2093
      %v2095 = vpop.xlane.xlu0 %2094
      %v2096 = vsel %vm829, %v2092, -inf
      %2097 = vmax.xlane.f32.xlu0 %v2096
      %v2098 = vpop.xlane.xlu0 %2097
      %v2099 = vsub.f32 %v2091, %v2095
      %v2100 = vsub.f32 %v2092, %v2098
      %v2101 = vmul.f32 %v2099, 1.442695
      %v2102 = vpow.pop %v2101
      %v2103 = vmul.f32 %v2100, 1.442695
      %v2104 = vpow.pop %v2103
      %v2105 = vsel %vm825, %v2102, 0.0
      %2106 = vadd.xlane.f32.xlu0 %v2105
      %v2107 = vpop.xlane.xlu0 %2106
      %v2108 = vsel %vm829, %v2104, 0.0
      %2109 = vadd.xlane.f32.xlu0 %v2108
      %v2110 = vpop.xlane.xlu0 %2109
      %v2111 = vpack.c.bf16 %v2104, %v2102
      %2112 = vrot.lane.b32.xlu0 %v846, 104
      %v2113 = vpop.permute.xlu0 %2112
      %v2115 = vsel %vm825, %v2111, 0
      %v2118 = vsel %vm850, %v2113, 0
      %2120 = vmatprep.subr.bf16.mxu0 0
      %2121 = vmatpush1.bf16.msra.mxu0 0
      %2122 = vmatprep.subr.bf16.mxu0 0
      %2123 = vmatpush1.bf16.msra.mxu0 0
      %2124 = vmatprep.subr.bf16.mxu0 0
      %2125 = vmatpush1.bf16.msra.mxu0 0
      %2126 = vmatprep.subr.bf16.mxu0 0
      %2127 = vmatpush1.bf16.msra.mxu0 0
      %2128 = vmatprep.subr.bf16.mxu0 0
      %2129 = vmatpush1.bf16.msra.mxu0 0
      %2130 = vmatprep.subr.bf16.mxu0 0
      %2131 = vmatpush1.bf16.msra.mxu0 0
      %2132 = vmatprep.subr.bf16.mxu0 0
      %2133 = vmatpush1.bf16.msra.mxu0 0
      %2134 = vmatprep.subr.bf16.mxu0 0
      %2135 = vmatpush1.bf16.msra.mxu0 %v2118
      %2136 = vmatprep.subr.bf16.mxu0 0
      %2137 = vmatpush2.bf16.msra.mxu0 0
      %2138 = vmatprep.subr.bf16.mxu0 0
      %2139 = vmatpush2.bf16.msra.mxu0 0
      %2140 = vmatprep.subr.bf16.mxu0 0
      %2141 = vmatpush2.bf16.msra.mxu0 0
      %2142 = vmatprep.subr.bf16.mxu0 0
      %2143 = vmatpush2.bf16.msra.mxu0 0
      %2144 = vmatprep.subr.bf16.mxu0 0
      %2145 = vmatpush2.bf16.msra.mxu0 0
      %2146 = vmatprep.subr.bf16.mxu0 0
      %2147 = vmatpush2.bf16.msra.mxu0 0
      %2148 = vmatprep.subr.bf16.mxu0 0
      %2149 = vmatpush2.bf16.msra.mxu0 0
      %2150 = vmatprep.subr.bf16.mxu0 0
      %2151 = vmatpush2.bf16.msra.mxu0 0
      %2152 = vmatprep.mubr.bf16.mxu0 0
      %2153 = vmatmul.mubr.bf16.gmra.mxu0 %v2115
      %v2154 = vpop.f32.mrf.mxu0
      %v2155 = vadd.f32 0.0, %v2154
      %v2156 = vpop.f32.mrf.mxu0
      %v2157 = vpop.f32.mrf.mxu0
      %v2158 = vadd.f32 0.0, %v2157
      %v2159 = vpop.f32.mrf.mxu0
      %2160 = vdwg.mxu0
      %v2161 = vrcp.pop %v2107
      %v2162 = vrcp.pop %v2110
      %v2163 = vmul.f32 %v2155, %v2161
      %v2164 = vmul.f32 %v2158, %v2162
      %2167 = vrot.lane.b32.xlu0 %v1337, 8
      %v2168 = vpop.permute.xlu0 %2167
      %2169 = vrot.lane.b32.xlu0 %v1338, 8
      %v2170 = vpop.permute.xlu0 %2169
      %2175 = vrot.lane.b32.xlu0 %v1750, 16
      %v2176 = vpop.permute.xlu0 %2175
      %2177 = vrot.lane.b32.xlu0 %v1751, 16
      %v2178 = vpop.permute.xlu0 %2177
      %2183 = vrot.lane.b32.xlu0 %v2163, 24
      %v2184 = vpop.permute.xlu0 %2183
      %2185 = vrot.lane.b32.xlu0 %v2164, 24
      %v2186 = vpop.permute.xlu0 %2185
      %v2189 = vsel %vm541, %v897, %v2168
      %v2190 = vsel %vm541, %v898, %v2170
      %vm2191 = vcmask 130048
      %v2192 = vsel %vm2191, %v2189, %v2176
      %v2193 = vsel %vm2191, %v2190, %v2178
      %vm2194 = vcmask 195584
      %v2195 = vsel %vm2194, %v2192, %v2184
      %v2196 = vsel %vm2194, %v2193, %v2186
      %vm2197 = vcmask 261120
      %2198 = vst.msk [vmem:[%s345] sm:$0xff] %vm2197, %v2195
      %vm2199 = vcmask 257024
      %2200 = vst.msk [vmem:[%s345 + $0x8] sm:$0xf] %vm2199, %v2196
      %p2201 = scmp.lt.s32.totalorder %s17, 1
      %s2202 = scalar_select %p2201, %s17, 1
      %s2203 = smul.addr %s2202, 2
      %s2204 = smul.addr %s2203, 8
      %s2205 = scalar_lea.vmem %s6, %s2204
      // Predicated region
      $region45: #{_lambda_.14} parent=43 // pred_check
        %p2206 = pneg %p191
      $region46: #{_lambda_.14} parent=43 // pred_check_branch
        %2208 = sbr.rel (%p2206) target = $region48
      $region47: #{_lambda_.14} parent=43 // pred_region
        _
      $region48: #{_lambda_.14} parent=43 // pred_fallthru
        _
    $region44: #{_lambda_.14} parent=5 // pred_fallthru
      _
    %p2209 = scmp.le.s32.totalorder 2, %s12
    // Predicated region
    $region49: #{_lambda_.14} parent=5 // pred_check
      %p2210 = pneg %p2209
    $region50: #{_lambda_.14} parent=5 // pred_check_branch
      %2212 = sbr.rel (%p2210) target = $region52
    $region51: #{_lambda_.14} parent=5 // pred_region
      %s2213 = ssub.s32 %s12, 2
      // Predicated region
      $region53: #{_lambda_.14} parent=51 // pred_check
        %p2214 = pneg %p197
      $region54: #{_lambda_.14} parent=51 // pred_check_branch
        %2216 = sbr.rel (%p2214) target = $region56
      $region55: #{_lambda_.14} parent=51 // pred_region
        %p2217 = scmp.lt.s32.totalorder %s18, 1
        %s2218 = scalar_select %p2217, %s18, 1
        %s2219 = smul.addr %s2218, 2
        %s2220 = smul.addr %s2219, 8
        %s2221 = scalar_lea.vmem %s6, %s2220
      $region56: #{_lambda_.14} parent=51 // pred_fallthru
        _
    $region52: #{_lambda_.14} parent=5 // pred_fallthru
      _
  $region6: #{_lambda_.14} parent=0 // loop_footer
    %s16 = sadd.s32 1, %s12
  $region7: #{_lambda_.14} parent=0 // loop_footer_branch
    %11 = sbr.rel target = $region3
  $region8: #{_lambda_.14} parent=0 // loop_exit
    _

</llo_original>
